<compile_context>
chip_gen: v6e
topology: v6e:2x2x1
jax: 0.10.0
libtpu: 0.0.40
codegen_flags: <defaults>
</compile_context>

<pallas_src>
import math
import functools

import jax
import jax.numpy as jnp
import numpy as np
from jax import lax
from jax.experimental import pallas as pl
from jax.experimental.pallas import tpu as pltpu


def _round_up(v, m):
    return ((v + m - 1) // m) * m


# ---------------------------------------------------------------------------
# Fused kernel: per image ->
#   in-VMEM im2col -> matmul -> bias -> pixel-norm -> LeakyReLU (layer 1)
#   stage y1 (+halo) in VMEM -> in-VMEM im2col -> matmul -> bias -> PN -> LReLU (layer 2)
#   tile-aligned transpose -> lane-dense flattened-NCHW store
# ---------------------------------------------------------------------------
def _conv_block_kernel(x_ref, w1_ref, b1_ref, w2_ref, b2_ref, o_ref,
                       pat1_ref, y1_ref, pat2_ref, *,
                       H1, W1, H2, W2, k1, k2, pad2, c1, c2,
                       pixel_norm, compute_dtype):
    cin = x_ref.shape[-1]
    c1p = w1_ref.shape[-1]          # lane-padded layer-1 width (multiple of 128)

    # ---------------- layer 1: im2col in VMEM + one MXU matmul -----------------
    for t in range(k1 * k1):
        ki, kj = divmod(t, k1)
        xt = x_ref[0, ki:ki + H1, kj:kj + W1, :]                     # (H1, W1, Cin)
        pat1_ref[:, t * cin:(t + 1) * cin] = (
            xt.reshape(H1 * W1, cin).astype(compute_dtype))
    y = jnp.dot(pat1_ref[...], w1_ref[...],
                preferred_element_type=jnp.float32)                  # (H1*W1, c1p) f32
    y = y + b1_ref[...]
    if pixel_norm:
        # Divide by the TRUE channel count; padded channels are exactly zero.
        ms = jnp.sum(y * y, axis=-1, keepdims=True) * (1.0 / c1)
        y = y * lax.rsqrt(ms + 1e-8)
    y = jnp.where(y > 0, y, 0.1 * y)                                 # LeakyReLU(0.1)

    # -------- stage activated y1 (+ conv-2 zero halo) entirely in VMEM ---------
    if pad2 > 0:
        y1_ref[...] = jnp.zeros_like(y1_ref)
    y1_ref[pad2:pad2 + H1, pad2:pad2 + W1, :] = y.reshape(H1, W1, c1p)

    # ---------------- layer 2: im2col from VMEM + one MXU matmul ---------------
    for t in range(k2 * k2):
        ki, kj = divmod(t, k2)
        yt = y1_ref[ki:ki + H2, kj:kj + W2, :]                       # (H2, W2, c1p)
        pat2_ref[:, t * c1p:(t + 1) * c1p] = (
            yt.reshape(H2 * W2, c1p).astype(compute_dtype))
    z = jnp.dot(pat2_ref[...], w2_ref[...],
                preferred_element_type=jnp.float32)                  # (H2*W2, c2p) f32
    z = z + b2_ref[...]
    if pixel_norm:
        ms = jnp.sum(z * z, axis=-1, keepdims=True) * (1.0 / c2)
        z = z * lax.rsqrt(ms + 1e-8)
    z = jnp.where(z > 0, z, 0.1 * z)

    # Lane-dense flattened-NCHW store: tile-aligned transpose, keep true channels.
    zt = jnp.transpose(z, (1, 0))                                    # (c2p, H2*W2)
    o_ref[0] = zt[:c2, :].astype(o_ref.dtype)


# ---------------------------------------------------------------------------
# Wrapper: weight prep (equal-LR scale + reorder + lane pad) and pallas_call
# ---------------------------------------------------------------------------
def _scaled_weight_matrix(w_oihw, cin_pad, cout_pad, compute_dtype):
    """Equal-LR scale w*sqrt(2/fanin); reorder to (kh, kw, cin, cout) so the in-kernel
    patch build needs no transpose; zero-pad channel dims; flatten to (K, cout_pad)."""
    cout, cin, kh, kw = w_oihw.shape
    ws = w_oihw * math.sqrt(2.0 / (cin * kh * kw))       # ELR uses the TRUE fan-in
    w = jnp.transpose(ws, (2, 3, 1, 0))                  # (kh, kw, cin, cout)
    w = jnp.pad(w, ((0, 0), (0, 0), (0, cin_pad - cin), (0, cout_pad - cout)))
    return w.reshape(kh * kw * cin_pad, cout_pad).astype(compute_dtype)


def _padded_bias(b, cpad):
    return jnp.pad(b.astype(jnp.float32).reshape(1, -1), ((0, 0), (0, cpad - b.shape[0])))


def conv_block_forward(x_nchw, params, *, kern_size, pad, kern_size2=None, pad2=None,
                       pixel_norm=True, compute_dtype=jnp.bfloat16):
    """ConvBlock forward.  x_nchw: (N, Cin, H, W) f32 -> (N, Cout, H2, W2) f32."""
    if kern_size2 is None:
        kern_size2 = kern_size
    if pad2 is None:
        pad2 = pad
    w1, b1, w2, b2 = params
    N, cin, H, W = x_nchw.shape
    c1, c2 = w1.shape[0], w2.shape[0]
    k1, p1, k2, p2 = kern_size, pad, kern_size2, pad2

    H1 = H + 2 * p1 - k1 + 1
    W1 = W + 2 * p1 - k1 + 1
    H2 = H1 + 2 * p2 - k2 + 1
    W2 = W1 + 2 * p2 - k2 + 1
    Hp1, Wp1 = H + 2 * p1, W + 2 * p1

    # Lane-pad output-channel widths to a multiple of 128 (128-wide MXU columns,
    # tile-aligned transpose, unmasked im2col column writes for layer 2).
    c1p = _round_up(c1, 128)
    c2p = _round_up(c2, 128)
    K1 = k1 * k1 * cin
    K2p = k2 * k2 * c1p

    # Raw input: NCHW -> NHWC + conv-1 zero pad (cheap: no kh*kw expansion here).
    x = jnp.transpose(x_nchw, (0, 2, 3, 1))
    if p1 > 0:
        x = jnp.pad(x, ((0, 0), (p1, p1), (p1, p1), (0, 0)))

    w1m = _scaled_weight_matrix(w1, cin, c1p, compute_dtype)   # (K1,  c1p)
    w2m = _scaled_weight_matrix(w2, c1p, c2p, compute_dtype)   # (K2p, c2p)
    b1r = _padded_bias(b1, c1p)                                # (1, c1p) f32
    b2r = _padded_bias(b2, c2p)                                # (1, c2p) f32

    kernel = functools.partial(
        _conv_block_kernel,
        H1=H1, W1=W1, H2=H2, W2=W2, k1=k1, k2=k2, pad2=p2, c1=c1, c2=c2,
        pixel_norm=pixel_norm, compute_dtype=compute_dtype)

    itemsize = jnp.dtype(compute_dtype).itemsize
    cost = pl.CostEstimate(
        flops=2 * N * (H1 * W1 * K1 * c1p + H2 * W2 * K2p * c2p),
        transcendentals=(N * (H1 * W1 + H2 * W2)) if pixel_norm else 0,
        bytes_accessed=(N * Hp1 * Wp1 * cin * 4
                        + (K1 * c1p + K2p * c2p) * itemsize
                        + (c1p + c2p) * 4
                        + N * c2 * H2 * W2 * 4))

    out = pl.pallas_call(
        kernel,
        out_shape=jax.ShapeDtypeStruct((N, c2, H2 * W2), jnp.float32),
        grid_spec=pltpu.PrefetchScalarGridSpec(
            num_scalar_prefetch=0,
            grid=(N,),                       # >=2 steps -> shards across v7x's 2 TCs
            in_specs=[
                pl.BlockSpec((1, Hp1, Wp1, cin), lambda n: (n, 0, 0, 0)),
                pl.BlockSpec((K1, c1p), lambda n: (0, 0)),
                pl.BlockSpec((1, c1p), lambda n: (0, 0)),
                pl.BlockSpec((K2p, c2p), lambda n: (0, 0)),
                pl.BlockSpec((1, c2p), lambda n: (0, 0)),
            ],
            out_specs=pl.BlockSpec((1, c2, H2 * W2), lambda n: (n, 0, 0)),
            scratch_shapes=[
                pltpu.VMEM((H1 * W1, K1), compute_dtype),                  # layer-1 patches
                pltpu.VMEM((H1 + 2 * p2, W1 + 2 * p2, c1p), jnp.float32),  # y1 + halo
                pltpu.VMEM((H2 * W2, K2p), compute_dtype),                 # layer-2 patches
            ],
        ),
        compiler_params=pltpu.CompilerParams(
            dimension_semantics=("parallel",)),
        cost_estimate=cost,
    )(x, w1m, b1r, w2m, b2r)

    # Output is already flattened NCHW; just split H*W.
    return out.reshape(N, c2, H2, W2)


# ---------------------------------------------------------------------------
# Pure-JAX reference (sanity check only)
# ---------------------------------------------------------------------------
def _reference_forward(x_nchw, params, *, kern_size, pad, kern_size2=None, pad2=None,
                       pixel_norm=True):
    if kern_size2 is None:
        kern_size2 = kern_size
    if pad2 is None:
        pad2 = pad
    w1, b1, w2, b2 = params

    def conv(x, w, b, k, p):
        fanin = w.shape[1] * k * k
        ws = w * math.sqrt(2.0 / fanin)
        y = lax.conv_general_dilated(
            x, ws, window_strides=(1, 1), padding=[(p, p), (p, p)],
            dimension_numbers=("NCHW", "OIHW", "NCHW"),
            precision=lax.Precision.HIGHEST)
        return y + b.reshape(1, -1, 1, 1)

    def pn(x):
        return x / jnp.sqrt(jnp.mean(x * x, axis=1, keepdims=True) + 1e-8)

    def lrelu(x):
        return jnp.where(x > 0, x, 0.1 * x)

    y = conv(x_nchw, w1, b1, kern_size, pad)
    if pixel_norm:
        y = pn(y)
    y = lrelu(y)
    y = conv(y, w2, b2, kern_size2, pad2)
    if pixel_norm:
        y = pn(y)
    y = lrelu(y)
    return y


# ---------------------------------------------------------------------------
if __name__ == "__main__":
    # ConvBlock(in_c=4, out_c=8, kern_size=3, pad=1)
    N, in_c, H, W = 2, 4, 16, 16
    out_c, kern, pad = 8, 3, 1

    key = jax.random.PRNGKey(0)
    kx, kw1, kw2 = jax.random.split(key, 3)
    x = jax.random.normal(kx, (N, in_c, H, W), dtype=jnp.float32)
    # ELRConv2d init: weight ~ N(0, 1), bias = 0
    w1 = jax.random.normal(kw1, (out_c, in_c, kern, kern), dtype=jnp.float32)
    b1 = jnp.zeros((out_c,), dtype=jnp.float32)
    w2 = jax.random.normal(kw2, (out_c, out_c, kern, kern), dtype=jnp.float32)
    b2 = jnp.zeros((out_c,), dtype=jnp.float32)
    params = (w1, b1, w2, b2)

    ref = jax.block_until_ready(
        _reference_forward(x, params, kern_size=kern, pad=pad))

    # Strict check: f32 matmul operands.
    fwd_f32 = jax.jit(functools.partial(conv_block_forward, kern_size=kern, pad=pad,
                                        compute_dtype=jnp.float32))
    out_f32 = jax.block_until_ready(fwd_f32(x, params))
    np.testing.assert_allclose(np.asarray(out_f32), np.asarray(ref),
                               rtol=1e-2, atol=1e-2)

    # Fast path: bf16 matmul operands (f32 accumulation + f32 elementwise).
    fwd_bf16 = jax.jit(functools.partial(conv_block_forward, kern_size=kern, pad=pad,
                                         compute_dtype=jnp.bfloat16))
    out_bf16 = jax.block_until_ready(fwd_bf16(x, params))
    np.testing.assert_allclose(np.asarray(out_bf16), np.asarray(ref),
                               rtol=5e-2, atol=5e-2)

    assert out_f32.shape == (N, out_c, H, W)
    print("KERNEL_OK")
</pallas_src>

<mosaic_0001>
module attributes {stable_mosaic.version = 11 : i64} {
  func.func @_conv_block_kernel(%arg0: i32, %arg1: memref<1x18x18x4xf32, #tpu.memory_space<vmem>>, %arg2: memref<36x128xf32, #tpu.memory_space<vmem>>, %arg3: memref<1x128xf32, #tpu.memory_space<vmem>>, %arg4: memref<1152x128xf32, #tpu.memory_space<vmem>>, %arg5: memref<1x128xf32, #tpu.memory_space<vmem>>, %arg6: memref<1x8x256xf32, #tpu.memory_space<vmem>>, %arg7: memref<256x36xf32, #tpu.memory_space<vmem>>, %arg8: memref<18x18x128xf32, #tpu.memory_space<vmem>>, %arg9: memref<256x1152xf32, #tpu.memory_space<vmem>>) attributes {dimension_semantics = [#tpu.dimension_semantics<parallel>], iteration_bounds = array<i64: 2>, scalar_prefetch = 0 : i64, scratch_operands = 3 : i64, tpu.core_type = #tpu.core_type<tc>, window_params = [{transform_indices = @transform_0, window_bounds = array<i64: 1, 18, 18, 4>}, {pipeline_mode = #tpu.pipeline_mode<synchronous>, transform_indices = @transform_1, window_bounds = array<i64: 36, 128>}, {pipeline_mode = #tpu.pipeline_mode<synchronous>, transform_indices = @transform_2, window_bounds = array<i64: 1, 128>}, {pipeline_mode = #tpu.pipeline_mode<synchronous>, transform_indices = @transform_3, window_bounds = array<i64: 1152, 128>}, {pipeline_mode = #tpu.pipeline_mode<synchronous>, transform_indices = @transform_4, window_bounds = array<i64: 1, 128>}, {transform_indices = @transform_5, window_bounds = array<i64: 1, 8, 256>}]} {
    %c0 = arith.constant 0 : index
    %c0_0 = arith.constant 0 : index
    %c0_1 = arith.constant 0 : index
    %c0_2 = arith.constant 0 : index
    %0 = vector.load %arg1[%c0, %c0_0, %c0_1, %c0_2] : memref<1x18x18x4xf32, #tpu.memory_space<vmem>>, vector<1x16x16x4xf32>
    %1 = vector.shape_cast %0 : vector<1x16x16x4xf32> to vector<16x16x4xf32>
    %2 = vector.shape_cast %1 : vector<16x16x4xf32> to vector<256x4xf32>
    %c0_3 = arith.constant 0 : index
    %c0_4 = arith.constant 0 : index
    %3 = vector.load %arg7[%c0_3, %c0_4] : memref<256x36xf32, #tpu.memory_space<vmem>>, vector<256x4xf32>
    tpu.vector_store %arg7[%c0_3, %c0_4], %2 {strides = array<i32>} : memref<256x36xf32, #tpu.memory_space<vmem>>, vector<256x4xf32>,
    %c0_5 = arith.constant 0 : index
    %c0_6 = arith.constant 0 : index
    %c1 = arith.constant 1 : index
    %c0_7 = arith.constant 0 : index
    %4 = vector.load %arg1[%c0_5, %c0_6, %c1, %c0_7] : memref<1x18x18x4xf32, #tpu.memory_space<vmem>>, vector<1x16x16x4xf32>
    %5 = vector.shape_cast %4 : vector<1x16x16x4xf32> to vector<16x16x4xf32>
    %6 = vector.shape_cast %5 : vector<16x16x4xf32> to vector<256x4xf32>
    %c0_8 = arith.constant 0 : index
    %c4 = arith.constant 4 : index
    %7 = vector.load %arg7[%c0_8, %c4] : memref<256x36xf32, #tpu.memory_space<vmem>>, vector<256x4xf32>
    tpu.vector_store %arg7[%c0_8, %c4], %6 {strides = array<i32>} : memref<256x36xf32, #tpu.memory_space<vmem>>, vector<256x4xf32>,
    %c0_9 = arith.constant 0 : index
    %c0_10 = arith.constant 0 : index
    %c2 = arith.constant 2 : index
    %c0_11 = arith.constant 0 : index
    %8 = vector.load %arg1[%c0_9, %c0_10, %c2, %c0_11] : memref<1x18x18x4xf32, #tpu.memory_space<vmem>>, vector<1x16x16x4xf32>
    %9 = vector.shape_cast %8 : vector<1x16x16x4xf32> to vector<16x16x4xf32>
    %10 = vector.shape_cast %9 : vector<16x16x4xf32> to vector<256x4xf32>
    %c0_12 = arith.constant 0 : index
    %c8 = arith.constant 8 : index
    %11 = vector.load %arg7[%c0_12, %c8] : memref<256x36xf32, #tpu.memory_space<vmem>>, vector<256x4xf32>
    tpu.vector_store %arg7[%c0_12, %c8], %10 {strides = array<i32>} : memref<256x36xf32, #tpu.memory_space<vmem>>, vector<256x4xf32>,
    %c0_13 = arith.constant 0 : index
    %c1_14 = arith.constant 1 : index
    %c0_15 = arith.constant 0 : index
    %c0_16 = arith.constant 0 : index
    %12 = vector.load %arg1[%c0_13, %c1_14, %c0_15, %c0_16] : memref<1x18x18x4xf32, #tpu.memory_space<vmem>>, vector<1x16x16x4xf32>
    %13 = vector.shape_cast %12 : vector<1x16x16x4xf32> to vector<16x16x4xf32>
    %14 = vector.shape_cast %13 : vector<16x16x4xf32> to vector<256x4xf32>
    %c0_17 = arith.constant 0 : index
    %c12 = arith.constant 12 : index
    %15 = vector.load %arg7[%c0_17, %c12] : memref<256x36xf32, #tpu.memory_space<vmem>>, vector<256x4xf32>
    tpu.vector_store %arg7[%c0_17, %c12], %14 {strides = array<i32>} : memref<256x36xf32, #tpu.memory_space<vmem>>, vector<256x4xf32>,
    %c0_18 = arith.constant 0 : index
    %c1_19 = arith.constant 1 : index
    %c1_20 = arith.constant 1 : index
    %c0_21 = arith.constant 0 : index
    %16 = vector.load %arg1[%c0_18, %c1_19, %c1_20, %c0_21] : memref<1x18x18x4xf32, #tpu.memory_space<vmem>>, vector<1x16x16x4xf32>
    %17 = vector.shape_cast %16 : vector<1x16x16x4xf32> to vector<16x16x4xf32>
    %18 = vector.shape_cast %17 : vector<16x16x4xf32> to vector<256x4xf32>
    %c0_22 = arith.constant 0 : index
    %c16 = arith.constant 16 : index
    %19 = vector.load %arg7[%c0_22, %c16] : memref<256x36xf32, #tpu.memory_space<vmem>>, vector<256x4xf32>
    tpu.vector_store %arg7[%c0_22, %c16], %18 {strides = array<i32>} : memref<256x36xf32, #tpu.memory_space<vmem>>, vector<256x4xf32>,
    %c0_23 = arith.constant 0 : index
    %c1_24 = arith.constant 1 : index
    %c2_25 = arith.constant 2 : index
    %c0_26 = arith.constant 0 : index
    %20 = vector.load %arg1[%c0_23, %c1_24, %c2_25, %c0_26] : memref<1x18x18x4xf32, #tpu.memory_space<vmem>>, vector<1x16x16x4xf32>
    %21 = vector.shape_cast %20 : vector<1x16x16x4xf32> to vector<16x16x4xf32>
    %22 = vector.shape_cast %21 : vector<16x16x4xf32> to vector<256x4xf32>
    %c0_27 = arith.constant 0 : index
    %c20 = arith.constant 20 : index
    %23 = vector.load %arg7[%c0_27, %c20] : memref<256x36xf32, #tpu.memory_space<vmem>>, vector<256x4xf32>
    tpu.vector_store %arg7[%c0_27, %c20], %22 {strides = array<i32>} : memref<256x36xf32, #tpu.memory_space<vmem>>, vector<256x4xf32>,
    %c0_28 = arith.constant 0 : index
    %c2_29 = arith.constant 2 : index
    %c0_30 = arith.constant 0 : index
    %c0_31 = arith.constant 0 : index
    %24 = vector.load %arg1[%c0_28, %c2_29, %c0_30, %c0_31] : memref<1x18x18x4xf32, #tpu.memory_space<vmem>>, vector<1x16x16x4xf32>
    %25 = vector.shape_cast %24 : vector<1x16x16x4xf32> to vector<16x16x4xf32>
    %26 = vector.shape_cast %25 : vector<16x16x4xf32> to vector<256x4xf32>
    %c0_32 = arith.constant 0 : index
    %c24 = arith.constant 24 : index
    %27 = vector.load %arg7[%c0_32, %c24] : memref<256x36xf32, #tpu.memory_space<vmem>>, vector<256x4xf32>
    tpu.vector_store %arg7[%c0_32, %c24], %26 {strides = array<i32>} : memref<256x36xf32, #tpu.memory_space<vmem>>, vector<256x4xf32>,
    %c0_33 = arith.constant 0 : index
    %c2_34 = arith.constant 2 : index
    %c1_35 = arith.constant 1 : index
    %c0_36 = arith.constant 0 : index
    %28 = vector.load %arg1[%c0_33, %c2_34, %c1_35, %c0_36] : memref<1x18x18x4xf32, #tpu.memory_space<vmem>>, vector<1x16x16x4xf32>
    %29 = vector.shape_cast %28 : vector<1x16x16x4xf32> to vector<16x16x4xf32>
    %30 = vector.shape_cast %29 : vector<16x16x4xf32> to vector<256x4xf32>
    %c0_37 = arith.constant 0 : index
    %c28 = arith.constant 28 : index
    %31 = vector.load %arg7[%c0_37, %c28] : memref<256x36xf32, #tpu.memory_space<vmem>>, vector<256x4xf32>
    tpu.vector_store %arg7[%c0_37, %c28], %30 {strides = array<i32>} : memref<256x36xf32, #tpu.memory_space<vmem>>, vector<256x4xf32>,
    %c0_38 = arith.constant 0 : index
    %c2_39 = arith.constant 2 : index
    %c2_40 = arith.constant 2 : index
    %c0_41 = arith.constant 0 : index
    %32 = vector.load %arg1[%c0_38, %c2_39, %c2_40, %c0_41] : memref<1x18x18x4xf32, #tpu.memory_space<vmem>>, vector<1x16x16x4xf32>
    %33 = vector.shape_cast %32 : vector<1x16x16x4xf32> to vector<16x16x4xf32>
    %34 = vector.shape_cast %33 : vector<16x16x4xf32> to vector<256x4xf32>
    %c0_42 = arith.constant 0 : index
    %c32 = arith.constant 32 : index
    %35 = vector.load %arg7[%c0_42, %c32] : memref<256x36xf32, #tpu.memory_space<vmem>>, vector<256x4xf32>
    tpu.vector_store %arg7[%c0_42, %c32], %34 {strides = array<i32>} : memref<256x36xf32, #tpu.memory_space<vmem>>, vector<256x4xf32>,
    %c0_43 = arith.constant 0 : index
    %c0_44 = arith.constant 0 : index
    %36 = vector.load %arg7[%c0_43, %c0_44] : memref<256x36xf32, #tpu.memory_space<vmem>>, vector<256x36xf32>
    %c0_45 = arith.constant 0 : index
    %c0_46 = arith.constant 0 : index
    %37 = vector.load %arg2[%c0_45, %c0_46] : memref<36x128xf32, #tpu.memory_space<vmem>>, vector<36x128xf32>
    %cst = arith.constant dense<0.000000e+00> : vector<256x128xf32>
    %38 = tpu.matmul %36, %37, %cst {dimension_numbers = #tpu.dot_dimension_numbers<[1], [0], [0], [1], [0, 0, 1, 1], [], []>} : vector<256x36xf32>, vector<36x128xf32>, vector<256x128xf32> -> vector<256x128xf32>
    %c0_47 = arith.constant 0 : index
    %c0_48 = arith.constant 0 : index
    %39 = vector.load %arg3[%c0_47, %c0_48] : memref<1x128xf32, #tpu.memory_space<vmem>>, vector<1x128xf32>
    %40 = vector.broadcast %39 : vector<1x128xf32> to vector<256x128xf32>
    %41 = arith.addf %38, %40 : vector<256x128xf32>
    %42 = arith.mulf %41, %41 : vector<256x128xf32>
    %cst_49 = arith.constant dense<0.000000e+00> : vector<256xf32>
    %43 = vector.multi_reduction <add>, %42, %cst_49 [1] : vector<256x128xf32> to vector<256xf32>
    %44 = vector.shape_cast %43 : vector<256xf32> to vector<256x1xf32>
    %cst_50 = arith.constant 1.250000e-01 : f32
    %45 = vector.broadcast %cst_50 : f32 to vector<256x1xf32>
    %46 = arith.mulf %44, %45 : vector<256x1xf32>
    %cst_51 = arith.constant 9.99999993E-9 : f32
    %47 = vector.broadcast %cst_51 : f32 to vector<256x1xf32>
    %48 = arith.addf %46, %47 : vector<256x1xf32>
    %49 = math.rsqrt %48 : vector<256x1xf32>
    %50 = vector.broadcast %49 : vector<256x1xf32> to vector<256x128xf32>
    %51 = arith.mulf %41, %50 : vector<256x128xf32>
    %cst_52 = arith.constant 0.000000e+00 : f32
    %52 = vector.broadcast %cst_52 : f32 to vector<256x128xf32>
    %53 = arith.cmpf ogt, %51, %52 : vector<256x128xf32>
    %cst_53 = arith.constant 1.000000e-01 : f32
    %54 = vector.broadcast %cst_53 : f32 to vector<256x128xf32>
    %55 = arith.mulf %54, %51 : vector<256x128xf32>
    %56 = arith.select %53, %51, %55 : vector<256x128xi1>, vector<256x128xf32>
    %cst_54 = arith.constant 0.000000e+00 : f32
    %57 = vector.broadcast %cst_54 : f32 to vector<18x18x128xf32>
    %c0_55 = arith.constant 0 : index
    %c0_56 = arith.constant 0 : index
    %c0_57 = arith.constant 0 : index
    %58 = vector.load %arg8[%c0_55, %c0_56, %c0_57] : memref<18x18x128xf32, #tpu.memory_space<vmem>>, vector<18x18x128xf32>
    tpu.vector_store %arg8[%c0_55, %c0_56, %c0_57], %57 {strides = array<i32>} : memref<18x18x128xf32, #tpu.memory_space<vmem>>, vector<18x18x128xf32>,
    %59 = vector.shape_cast %56 : vector<256x128xf32> to vector<16x16x128xf32>
    %c1_58 = arith.constant 1 : index
    %c1_59 = arith.constant 1 : index
    %c0_60 = arith.constant 0 : index
    %60 = vector.load %arg8[%c1_58, %c1_59, %c0_60] : memref<18x18x128xf32, #tpu.memory_space<vmem>>, vector<16x16x128xf32>
    tpu.vector_store %arg8[%c1_58, %c1_59, %c0_60], %59 {strides = array<i32>} : memref<18x18x128xf32, #tpu.memory_space<vmem>>, vector<16x16x128xf32>,
    %c0_61 = arith.constant 0 : index
    %c0_62 = arith.constant 0 : index
    %c0_63 = arith.constant 0 : index
    %61 = vector.load %arg8[%c0_61, %c0_62, %c0_63] : memref<18x18x128xf32, #tpu.memory_space<vmem>>, vector<16x16x128xf32>
    %62 = vector.shape_cast %61 : vector<16x16x128xf32> to vector<256x128xf32>
    %c0_64 = arith.constant 0 : index
    %c0_65 = arith.constant 0 : index
    %63 = vector.load %arg9[%c0_64, %c0_65] : memref<256x1152xf32, #tpu.memory_space<vmem>>, vector<256x128xf32>
    tpu.vector_store %arg9[%c0_64, %c0_65], %62 {strides = array<i32>} : memref<256x1152xf32, #tpu.memory_space<vmem>>, vector<256x128xf32>,
    %c0_66 = arith.constant 0 : index
    %c1_67 = arith.constant 1 : index
    %c0_68 = arith.constant 0 : index
    %64 = vector.load %arg8[%c0_66, %c1_67, %c0_68] : memref<18x18x128xf32, #tpu.memory_space<vmem>>, vector<16x16x128xf32>
    %65 = vector.shape_cast %64 : vector<16x16x128xf32> to vector<256x128xf32>
    %c0_69 = arith.constant 0 : index
    %c128 = arith.constant 128 : index
    %66 = vector.load %arg9[%c0_69, %c128] : memref<256x1152xf32, #tpu.memory_space<vmem>>, vector<256x128xf32>
    tpu.vector_store %arg9[%c0_69, %c128], %65 {strides = array<i32>} : memref<256x1152xf32, #tpu.memory_space<vmem>>, vector<256x128xf32>,
    %c0_70 = arith.constant 0 : index
    %c2_71 = arith.constant 2 : index
    %c0_72 = arith.constant 0 : index
    %67 = vector.load %arg8[%c0_70, %c2_71, %c0_72] : memref<18x18x128xf32, #tpu.memory_space<vmem>>, vector<16x16x128xf32>
    %68 = vector.shape_cast %67 : vector<16x16x128xf32> to vector<256x128xf32>
    %c0_73 = arith.constant 0 : index
    %c256 = arith.constant 256 : index
    %69 = vector.load %arg9[%c0_73, %c256] : memref<256x1152xf32, #tpu.memory_space<vmem>>, vector<256x128xf32>
    tpu.vector_store %arg9[%c0_73, %c256], %68 {strides = array<i32>} : memref<256x1152xf32, #tpu.memory_space<vmem>>, vector<256x128xf32>,
    %c1_74 = arith.constant 1 : index
    %c0_75 = arith.constant 0 : index
    %c0_76 = arith.constant 0 : index
    %70 = vector.load %arg8[%c1_74, %c0_75, %c0_76] : memref<18x18x128xf32, #tpu.memory_space<vmem>>, vector<16x16x128xf32>
    %71 = vector.shape_cast %70 : vector<16x16x128xf32> to vector<256x128xf32>
    %c0_77 = arith.constant 0 : index
    %c384 = arith.constant 384 : index
    %72 = vector.load %arg9[%c0_77, %c384] : memref<256x1152xf32, #tpu.memory_space<vmem>>, vector<256x128xf32>
    tpu.vector_store %arg9[%c0_77, %c384], %71 {strides = array<i32>} : memref<256x1152xf32, #tpu.memory_space<vmem>>, vector<256x128xf32>,
    %c1_78 = arith.constant 1 : index
    %c1_79 = arith.constant 1 : index
    %c0_80 = arith.constant 0 : index
    %73 = vector.load %arg8[%c1_78, %c1_79, %c0_80] : memref<18x18x128xf32, #tpu.memory_space<vmem>>, vector<16x16x128xf32>
    %74 = vector.shape_cast %73 : vector<16x16x128xf32> to vector<256x128xf32>
    %c0_81 = arith.constant 0 : index
    %c512 = arith.constant 512 : index
    %75 = vector.load %arg9[%c0_81, %c512] : memref<256x1152xf32, #tpu.memory_space<vmem>>, vector<256x128xf32>
    tpu.vector_store %arg9[%c0_81, %c512], %74 {strides = array<i32>} : memref<256x1152xf32, #tpu.memory_space<vmem>>, vector<256x128xf32>,
    %c1_82 = arith.constant 1 : index
    %c2_83 = arith.constant 2 : index
    %c0_84 = arith.constant 0 : index
    %76 = vector.load %arg8[%c1_82, %c2_83, %c0_84] : memref<18x18x128xf32, #tpu.memory_space<vmem>>, vector<16x16x128xf32>
    %77 = vector.shape_cast %76 : vector<16x16x128xf32> to vector<256x128xf32>
    %c0_85 = arith.constant 0 : index
    %c640 = arith.constant 640 : index
    %78 = vector.load %arg9[%c0_85, %c640] : memref<256x1152xf32, #tpu.memory_space<vmem>>, vector<256x128xf32>
    tpu.vector_store %arg9[%c0_85, %c640], %77 {strides = array<i32>} : memref<256x1152xf32, #tpu.memory_space<vmem>>, vector<256x128xf32>,
    %c2_86 = arith.constant 2 : index
    %c0_87 = arith.constant 0 : index
    %c0_88 = arith.constant 0 : index
    %79 = vector.load %arg8[%c2_86, %c0_87, %c0_88] : memref<18x18x128xf32, #tpu.memory_space<vmem>>, vector<16x16x128xf32>
    %80 = vector.shape_cast %79 : vector<16x16x128xf32> to vector<256x128xf32>
    %c0_89 = arith.constant 0 : index
    %c768 = arith.constant 768 : index
    %81 = vector.load %arg9[%c0_89, %c768] : memref<256x1152xf32, #tpu.memory_space<vmem>>, vector<256x128xf32>
    tpu.vector_store %arg9[%c0_89, %c768], %80 {strides = array<i32>} : memref<256x1152xf32, #tpu.memory_space<vmem>>, vector<256x128xf32>,
    %c2_90 = arith.constant 2 : index
    %c1_91 = arith.constant 1 : index
    %c0_92 = arith.constant 0 : index
    %82 = vector.load %arg8[%c2_90, %c1_91, %c0_92] : memref<18x18x128xf32, #tpu.memory_space<vmem>>, vector<16x16x128xf32>
    %83 = vector.shape_cast %82 : vector<16x16x128xf32> to vector<256x128xf32>
    %c0_93 = arith.constant 0 : index
    %c896 = arith.constant 896 : index
    %84 = vector.load %arg9[%c0_93, %c896] : memref<256x1152xf32, #tpu.memory_space<vmem>>, vector<256x128xf32>
    tpu.vector_store %arg9[%c0_93, %c896], %83 {strides = array<i32>} : memref<256x1152xf32, #tpu.memory_space<vmem>>, vector<256x128xf32>,
    %c2_94 = arith.constant 2 : index
    %c2_95 = arith.constant 2 : index
    %c0_96 = arith.constant 0 : index
    %85 = vector.load %arg8[%c2_94, %c2_95, %c0_96] : memref<18x18x128xf32, #tpu.memory_space<vmem>>, vector<16x16x128xf32>
    %86 = vector.shape_cast %85 : vector<16x16x128xf32> to vector<256x128xf32>
    %c0_97 = arith.constant 0 : index
    %c1024 = arith.constant 1024 : index
    %87 = vector.load %arg9[%c0_97, %c1024] : memref<256x1152xf32, #tpu.memory_space<vmem>>, vector<256x128xf32>
    tpu.vector_store %arg9[%c0_97, %c1024], %86 {strides = array<i32>} : memref<256x1152xf32, #tpu.memory_space<vmem>>, vector<256x128xf32>,
    %c0_98 = arith.constant 0 : index
    %c0_99 = arith.constant 0 : index
    %88 = vector.load %arg9[%c0_98, %c0_99] : memref<256x1152xf32, #tpu.memory_space<vmem>>, vector<256x1152xf32>
    %c0_100 = arith.constant 0 : index
    %c0_101 = arith.constant 0 : index
    %89 = vector.load %arg4[%c0_100, %c0_101] : memref<1152x128xf32, #tpu.memory_space<vmem>>, vector<1152x128xf32>
    %cst_102 = arith.constant dense<0.000000e+00> : vector<256x128xf32>
    %90 = tpu.matmul %88, %89, %cst_102 {dimension_numbers = #tpu.dot_dimension_numbers<[1], [0], [0], [1], [0, 0, 1, 1], [], []>} : vector<256x1152xf32>, vector<1152x128xf32>, vector<256x128xf32> -> vector<256x128xf32>
    %c0_103 = arith.constant 0 : index
    %c0_104 = arith.constant 0 : index
    %91 = vector.load %arg5[%c0_103, %c0_104] : memref<1x128xf32, #tpu.memory_space<vmem>>, vector<1x128xf32>
    %92 = vector.broadcast %91 : vector<1x128xf32> to vector<256x128xf32>
    %93 = arith.addf %90, %92 : vector<256x128xf32>
    %94 = arith.mulf %93, %93 : vector<256x128xf32>
    %cst_105 = arith.constant dense<0.000000e+00> : vector<256xf32>
    %95 = vector.multi_reduction <add>, %94, %cst_105 [1] : vector<256x128xf32> to vector<256xf32>
    %96 = vector.shape_cast %95 : vector<256xf32> to vector<256x1xf32>
    %cst_106 = arith.constant 1.250000e-01 : f32
    %97 = vector.broadcast %cst_106 : f32 to vector<256x1xf32>
    %98 = arith.mulf %96, %97 : vector<256x1xf32>
    %cst_107 = arith.constant 9.99999993E-9 : f32
    %99 = vector.broadcast %cst_107 : f32 to vector<256x1xf32>
    %100 = arith.addf %98, %99 : vector<256x1xf32>
    %101 = math.rsqrt %100 : vector<256x1xf32>
    %102 = vector.broadcast %101 : vector<256x1xf32> to vector<256x128xf32>
    %103 = arith.mulf %93, %102 : vector<256x128xf32>
    %cst_108 = arith.constant 0.000000e+00 : f32
    %104 = vector.broadcast %cst_108 : f32 to vector<256x128xf32>
    %105 = arith.cmpf ogt, %103, %104 : vector<256x128xf32>
    %cst_109 = arith.constant 1.000000e-01 : f32
    %106 = vector.broadcast %cst_109 : f32 to vector<256x128xf32>
    %107 = arith.mulf %106, %103 : vector<256x128xf32>
    %108 = arith.select %105, %103, %107 : vector<256x128xi1>, vector<256x128xf32>
    %109 = tpu.transpose %108, [1, 0] : vector<256x128xf32> -> vector<128x256xf32>
    %110 = vector.extract_strided_slice %109 {offsets = [0, 0], sizes = [8, 256], strides = [1, 1]} : vector<128x256xf32> to vector<8x256xf32>
    %c0_110 = arith.constant 0 : index
    %c0_111 = arith.constant 0 : index
    %c0_112 = arith.constant 0 : index
    %111 = vector.load %arg6[%c0_110, %c0_111, %c0_112] : memref<1x8x256xf32, #tpu.memory_space<vmem>>, vector<1x8x256xf32>
    %112 = vector.shape_cast %111 : vector<1x8x256xf32> to vector<8x256xf32>
    %113 = vector.shape_cast %110 : vector<8x256xf32> to vector<1x8x256xf32>
    tpu.vector_store %arg6[%c0_110, %c0_111, %c0_112], %113 {strides = array<i32>} : memref<1x8x256xf32, #tpu.memory_space<vmem>>, vector<1x8x256xf32>,
    return
  }
  func.func @transform_0(%arg0: i32) -> (i32, i32, i32, i32) {
    %c0_i32 = arith.constant 0 : i32
    %c0_i32_0 = arith.constant 0 : i32
    %c0_i32_1 = arith.constant 0 : i32
    %c0_i32_2 = arith.constant 0 : i32
    return %arg0, %c0_i32, %c0_i32_0, %c0_i32_1 : i32, i32, i32, i32
  }
  func.func @transform_1(%arg0: i32) -> (i32, i32) {
    %c0_i32 = arith.constant 0 : i32
    %c0_i32_0 = arith.constant 0 : i32
    %c0_i32_1 = arith.constant 0 : i32
    return %c0_i32, %c0_i32_0 : i32, i32
  }
  func.func @transform_2(%arg0: i32) -> (i32, i32) {
    %c0_i32 = arith.constant 0 : i32
    %c0_i32_0 = arith.constant 0 : i32
    %c0_i32_1 = arith.constant 0 : i32
    return %c0_i32, %c0_i32_0 : i32, i32
  }
  func.func @transform_3(%arg0: i32) -> (i32, i32) {
    %c0_i32 = arith.constant 0 : i32
    %c0_i32_0 = arith.constant 0 : i32
    %c0_i32_1 = arith.constant 0 : i32
    return %c0_i32, %c0_i32_0 : i32, i32
  }
  func.func @transform_4(%arg0: i32) -> (i32, i32) {
    %c0_i32 = arith.constant 0 : i32
    %c0_i32_0 = arith.constant 0 : i32
    %c0_i32_1 = arith.constant 0 : i32
    return %c0_i32, %c0_i32_0 : i32, i32
  }
  func.func @transform_5(%arg0: i32) -> (i32, i32, i32) {
    %c0_i32 = arith.constant 0 : i32
    %c0_i32_0 = arith.constant 0 : i32
    %c0_i32_1 = arith.constant 0 : i32
    return %arg0, %c0_i32, %c0_i32_0 : i32, i32, i32
  }
}

</mosaic_0001>

<llo_original>
// kernel: conv_block_forward.1
$region0: #{conv_block_forward.1}
  #allocation0 [shape = 'u32[]', space=smem, size = 0x4, offset = 0x4, fixed_abs, tag = 'smem constant byte address 0x4 - core index']
  #allocation1 [shape = 'u32[144,128]{1,0:T(1,128)}', space=vmem, size = 0x12000, scoped, tag = 'internal scratch']
  #allocation2 [shape = 'f32[256,36]{1,0:T(8,128)}', space=vmem, size = 0x20000, scoped, tag = 'scratch operand']
  #allocation3 [shape = 'f32[18,18,128]{2,1,0:T(8,128)}', space=vmem, size = 0x36000, scoped, tag = 'scratch operand']
  #allocation4 [shape = 'f32[256,1152]{1,0:T(8,128)}', space=vmem, size = 0x120000, scoped, tag = 'scratch operand']
  %s0 = inlined_call_operand.vmem [shape: f32[2,18,18,4], index: 0, kind: input, shape index: {}]
  %s1 = inlined_call_operand.vmem [shape: f32[36,128], index: 1, kind: input, shape index: {}]
  %s2 = inlined_call_operand.vmem [shape: f32[1,128], index: 2, kind: input, shape index: {}]
  %s3 = inlined_call_operand.vmem [shape: f32[1152,128], index: 3, kind: input, shape index: {}]
  %s4 = inlined_call_operand.vmem [shape: f32[1,128], index: 4, kind: input, shape index: {}]
  %s5 = inlined_call_operand.vmem [shape: f32[2,8,256], index: 5, kind: output, shape index: {}]
  %s6 = sld [smem:[#allocation0]]
  $region53: #{conv_block_forward.1} parent=0
    _
  %s8 = ssub.s32 1, %s6
  %s9 = scalar_select 0, %s8, %s6
  loop: start=0, step=1, limit=4
  $region2: #{conv_block_forward.1} parent=0 // loop_pre_header
    _
  $region3: #{conv_block_forward.1} parent=0 // loop_header
    %s11 = sphi 0, %s15
    %p12 = scmp.ge.s32.totalorder %s11, 4
    %s21 = sphi 0, %s23
    %s24 = sphi 0, %s21
    %s25 = sphi 0, %s24
    %s41 = sphi 0, %s25
    %s45 = sphi 0, %s45
    %s47 = sphi 0, %s45
    %s48 = sphi 0, %s47
    %s62 = sphi 0, %s48
    %s66 = sphi 0, %s66
    %s68 = sphi 0, %s66
    %s69 = sphi 0, %s68
    %s83 = sphi 0, %s69
    %s87 = sphi 0, %s87
    %s89 = sphi 0, %s87
    %s90 = sphi 0, %s89
    %s104 = sphi 0, %s90
    %s108 = sphi 0, %s108
    %s110 = sphi 0, %s108
    %s111 = sphi 0, %s110
    %s125 = sphi 0, %s111
    %s131 = sphi 0, %s133
    %s134 = sphi 0, %s131
    %s135 = sphi 0, %s134
    %s151 = sphi 0, %s135
  $region4: #{conv_block_forward.1} parent=0 // loop_header_branch
    %14 = sbr.rel (%p12) target = $region8
  $region5: #{conv_block_forward.1} parent=0 // loop_body
    %s16 = ssub.s32 %s11, 1
    %s17 = ssub.s32 %s11, 2
    %s18 = sadd.s32 %s11, 1
    %s19 = ssub.s32 %s11, %s18
    %p20 = scmp.eq.s32.totalorder %s19, 0
    %s22 = sadd.s32 %s21, 1
    %s23 = scalar_select %p20, %s21, %s22
    %p26 = pneg %p20
    %p27 = scmp.eq.s32.totalorder %s11, 1
    %p28 = por %p26, %p27
    %p29 = scmp.ne.s32.totalorder %s21, %s24
    %p30 = scmp.eq.s32.totalorder %s11, 0
    %p31 = por %p29, %p30
    %p32 = scmp.ne.s32.totalorder %s21, %s24
    %p33 = scmp.eq.s32.totalorder %s16, 1
    %p34 = por %p32, %p33
    %p35 = scmp.ne.s32.totalorder %s24, %s25
    %p36 = scmp.eq.s32.totalorder %s16, 0
    %p37 = por %p35, %p36
    %p38 = scmp.ne.s32.totalorder %s24, %s25
    %p39 = scmp.eq.s32.totalorder %s17, 1
    %p40 = por %p38, %p39
    %p42 = scmp.ne.s32.totalorder %s25, %s41
    %p43 = scmp.eq.s32.totalorder %s17, 0
    %p44 = por %p42, %p43
    %s46 = sadd.s32 %s45, 1
    %p49 = scmp.eq.s32.totalorder %s11, 1
    %p50 = scmp.ne.s32.totalorder %s45, %s47
    %p51 = scmp.eq.s32.totalorder %s11, 0
    %p52 = por %p50, %p51
    %p53 = scmp.ne.s32.totalorder %s45, %s47
    %p54 = scmp.eq.s32.totalorder %s16, 1
    %p55 = por %p53, %p54
    %p56 = scmp.ne.s32.totalorder %s47, %s48
    %p57 = scmp.eq.s32.totalorder %s16, 0
    %p58 = por %p56, %p57
    %p59 = scmp.ne.s32.totalorder %s47, %s48
    %p60 = scmp.eq.s32.totalorder %s17, 1
    %p61 = por %p59, %p60
    %p63 = scmp.ne.s32.totalorder %s48, %s62
    %p64 = scmp.eq.s32.totalorder %s17, 0
    %p65 = por %p63, %p64
    %s67 = sadd.s32 %s66, 1
    %p70 = scmp.eq.s32.totalorder %s11, 1
    %p71 = scmp.ne.s32.totalorder %s66, %s68
    %p72 = scmp.eq.s32.totalorder %s11, 0
    %p73 = por %p71, %p72
    %p74 = scmp.ne.s32.totalorder %s66, %s68
    %p75 = scmp.eq.s32.totalorder %s16, 1
    %p76 = por %p74, %p75
    %p77 = scmp.ne.s32.totalorder %s68, %s69
    %p78 = scmp.eq.s32.totalorder %s16, 0
    %p79 = por %p77, %p78
    %p80 = scmp.ne.s32.totalorder %s68, %s69
    %p81 = scmp.eq.s32.totalorder %s17, 1
    %p82 = por %p80, %p81
    %p84 = scmp.ne.s32.totalorder %s69, %s83
    %p85 = scmp.eq.s32.totalorder %s17, 0
    %p86 = por %p84, %p85
    %s88 = sadd.s32 %s87, 1
    %p91 = scmp.eq.s32.totalorder %s11, 1
    %p92 = scmp.ne.s32.totalorder %s87, %s89
    %p93 = scmp.eq.s32.totalorder %s11, 0
    %p94 = por %p92, %p93
    %p95 = scmp.ne.s32.totalorder %s87, %s89
    %p96 = scmp.eq.s32.totalorder %s16, 1
    %p97 = por %p95, %p96
    %p98 = scmp.ne.s32.totalorder %s89, %s90
    %p99 = scmp.eq.s32.totalorder %s16, 0
    %p100 = por %p98, %p99
    %p101 = scmp.ne.s32.totalorder %s89, %s90
    %p102 = scmp.eq.s32.totalorder %s17, 1
    %p103 = por %p101, %p102
    %p105 = scmp.ne.s32.totalorder %s90, %s104
    %p106 = scmp.eq.s32.totalorder %s17, 0
    %p107 = por %p105, %p106
    %s109 = sadd.s32 %s108, 1
    %p112 = scmp.eq.s32.totalorder %s11, 1
    %p113 = scmp.ne.s32.totalorder %s108, %s110
    %p114 = scmp.eq.s32.totalorder %s11, 0
    %p115 = por %p113, %p114
    %p116 = scmp.ne.s32.totalorder %s108, %s110
    %p117 = scmp.eq.s32.totalorder %s16, 1
    %p118 = por %p116, %p117
    %p119 = scmp.ne.s32.totalorder %s110, %s111
    %p120 = scmp.eq.s32.totalorder %s16, 0
    %p121 = por %p119, %p120
    %p122 = scmp.ne.s32.totalorder %s110, %s111
    %p123 = scmp.eq.s32.totalorder %s17, 1
    %p124 = por %p122, %p123
    %p126 = scmp.ne.s32.totalorder %s111, %s125
    %p127 = scmp.eq.s32.totalorder %s17, 0
    %p128 = por %p126, %p127
    %s129 = ssub.s32 %s11, %s18
    %p130 = scmp.eq.s32.totalorder %s129, 0
    %s132 = sadd.s32 %s131, 1
    %s133 = scalar_select %p130, %s131, %s132
    %p136 = pneg %p130
    %p137 = scmp.eq.s32.totalorder %s11, 1
    %p138 = por %p136, %p137
    %p139 = scmp.ne.s32.totalorder %s131, %s134
    %p140 = scmp.eq.s32.totalorder %s11, 0
    %p141 = por %p139, %p140
    %p142 = scmp.ne.s32.totalorder %s131, %s134
    %p143 = scmp.eq.s32.totalorder %s16, 1
    %p144 = por %p142, %p143
    %p145 = scmp.ne.s32.totalorder %s134, %s135
    %p146 = scmp.eq.s32.totalorder %s16, 0
    %p147 = por %p145, %p146
    %p148 = scmp.ne.s32.totalorder %s134, %s135
    %p149 = scmp.eq.s32.totalorder %s17, 1
    %p150 = por %p148, %p149
    %p152 = scmp.ne.s32.totalorder %s135, %s151
    %p153 = scmp.eq.s32.totalorder %s17, 0
    %p154 = por %p152, %p153
    %p155 = scmp.le.s32.totalorder 1, %s11
    %p156 = scmp.lt.s32.totalorder %s11, 3
    %p157 = pnand %p155, %p156
    %p158 = pneg %p157
    // Predicated region
    $region9: #{conv_block_forward.1} parent=5 // pred_check
      _
    $region10: #{conv_block_forward.1} parent=5 // pred_check_branch
      %160 = sbr.rel (%p157) target = $region12
    $region11: #{conv_block_forward.1} parent=5 // pred_region
      %s161 = ssub.s32 %s11, 1
      // Predicated region
      $region13: #{conv_block_forward.1} parent=11 // pred_check
        %p162 = pneg %p58
      $region14: #{conv_block_forward.1} parent=11 // pred_check_branch
        %164 = sbr.rel (%p162) target = $region16
      $region15: #{conv_block_forward.1} parent=11 // pred_region
        _
      $region16: #{conv_block_forward.1} parent=11 // pred_fallthru
        _
      // Predicated region
      $region17: #{conv_block_forward.1} parent=11 // pred_check
        %p165 = pneg %p79
      $region18: #{conv_block_forward.1} parent=11 // pred_check_branch
        %167 = sbr.rel (%p165) target = $region20
      $region19: #{conv_block_forward.1} parent=11 // pred_region
        _
      $region20: #{conv_block_forward.1} parent=11 // pred_fallthru
        _
      // Predicated region
      $region21: #{conv_block_forward.1} parent=11 // pred_check
        %p168 = pneg %p100
      $region22: #{conv_block_forward.1} parent=11 // pred_check_branch
        %170 = sbr.rel (%p168) target = $region24
      $region23: #{conv_block_forward.1} parent=11 // pred_region
        _
      $region24: #{conv_block_forward.1} parent=11 // pred_fallthru
        _
      // Predicated region
      $region25: #{conv_block_forward.1} parent=11 // pred_check
        %p171 = pneg %p121
      $region26: #{conv_block_forward.1} parent=11 // pred_check_branch
        %173 = sbr.rel (%p171) target = $region28
      $region27: #{conv_block_forward.1} parent=11 // pred_region
        _
      $region28: #{conv_block_forward.1} parent=11 // pred_fallthru
        _
    $region12: #{conv_block_forward.1} parent=5 // pred_fallthru
      _
    %p174 = scmp.lt.s32.totalorder %s11, 2
    // Predicated region
    $region29: #{conv_block_forward.1} parent=5 // pred_check
      %p175 = pneg %p174
    $region30: #{conv_block_forward.1} parent=5 // pred_check_branch
      %177 = sbr.rel (%p175) target = $region32
    $region31: #{conv_block_forward.1} parent=5 // pred_region
      // Predicated region
      $region33: #{conv_block_forward.1} parent=31 // pred_check
        %p178 = pneg %p31
      $region34: #{conv_block_forward.1} parent=31 // pred_check_branch
        %180 = sbr.rel (%p178) target = $region36
      $region35: #{conv_block_forward.1} parent=31 // pred_region
        %p181 = scmp.lt.s32.totalorder %s11, 1
        %s182 = scalar_select %p181, %s11, 1
        %s183 = smul.addr %s182, 54
        %s184 = smul.addr %s183, 8
        %s185 = scalar_lea.vmem %s0, %s184
      $region36: #{conv_block_forward.1} parent=31 // pred_fallthru
        _
    $region32: #{conv_block_forward.1} parent=5 // pred_fallthru
      _
    %p186 = scmp.le.s32.totalorder 1, %s11
    %p187 = scmp.lt.s32.totalorder %s11, 3
    %p188 = pnand %p186, %p187
    %p189 = pneg %p188
    // Predicated region
    $region37: #{conv_block_forward.1} parent=5 // pred_check
      _
    $region38: #{conv_block_forward.1} parent=5 // pred_check_branch
      %191 = sbr.rel (%p188) target = $region40
    $region39: #{conv_block_forward.1} parent=5 // pred_region
      %s192 = ssub.s32 %s11, 1
      %p193 = scmp.lt.s32.totalorder %s16, 1
      %s194 = scalar_select %p193, %s16, 1
      %s195 = smul.addr %s194, 54
      %s196 = smul.addr %s195, 8
      %s197 = scalar_lea.vmem %s0, %s196
      %p198 = pneg %p37
      %p199 = pneg %p34
      %p200 = pneg %p58
      %p201 = pneg %p55
      %p202 = pneg %p79
      %p203 = pneg %p76
      %p204 = pneg %p100
      %p205 = pneg %p97
      %p206 = pneg %p121
      %p207 = pneg %p118
      %p208 = pneg %p147
      %p209 = pneg %p144
      %p210 = scmp.lt.s32.totalorder %s16, 1
      %s211 = scalar_select %p210, %s16, 1
      %s212 = smul.addr %s211, 2
      %s213 = smul.addr %s212, 8
      %s214 = scalar_lea.vmem %s5, %s213
      %p215 = scmp.lt.s32.totalorder %s16, 1
      %s216 = scalar_select %p215, %s16, 1
      %s217 = smul.addr %s216, 54
      %s218 = smul.addr %s217, 8
      %s219 = scalar_lea.vmem %s0, %s218
      %p220 = scmp.lt.s32.totalorder %s16, 1
      %s221 = scalar_select %p220, %s16, 1
      %s222 = smul.addr %s221, 2
      %s223 = smul.addr %s222, 8
      %s224 = scalar_lea.vmem %s5, %s223
      %v225 = vld [vmem:[%s219] sm:$0xff]
      %v226 = vld [vmem:[%s219 + $0x8] sm:$0xff]
      %v227 = vld [vmem:[%s219 + $0x18] sm:$0xff]
      %v228 = vld [vmem:[%s219 + $0x20] sm:$0xff]
      %v229 = vld [vmem:[%s219 + $0x30] sm:$0xff]
      %v230 = vld [vmem:[%s219 + $0x38] sm:$0xff]
      %v231 = vld [vmem:[%s219 + $0x48] sm:$0xff]
      %v232 = vld [vmem:[%s219 + $0x50] sm:$0xff]
      %v233 = vld [vmem:[%s219 + $0x60] sm:$0xff]
      %v234 = vld [vmem:[%s219 + $0x68] sm:$0xff]
      %v235 = vld [vmem:[%s219 + $0x78] sm:$0xff]
      %v236 = vld [vmem:[%s219 + $0x80] sm:$0xff]
      %v237 = vld [vmem:[%s219 + $0x90] sm:$0xff]
      %v238 = vld [vmem:[%s219 + $0x98] sm:$0xff]
      %v239 = vld [vmem:[%s219 + $0xa8] sm:$0xff]
      %v240 = vld [vmem:[%s219 + $0xb0] sm:$0xff]
      %v241 = vld [vmem:[%s219 + $0xc0] sm:$0xff]
      %v242 = vld [vmem:[%s219 + $0xc8] sm:$0xff]
      %v243 = vld [vmem:[%s219 + $0xd8] sm:$0xff]
      %v244 = vld [vmem:[%s219 + $0xe0] sm:$0xff]
      %v245 = vld [vmem:[%s219 + $0xf0] sm:$0xff]
      %v246 = vld [vmem:[%s219 + $0xf8] sm:$0xff]
      %v247 = vld [vmem:[%s219 + $0x108] sm:$0xff]
      %v248 = vld [vmem:[%s219 + $0x110] sm:$0xff]
      %v249 = vld [vmem:[%s219 + $0x120] sm:$0xff]
      %v250 = vld [vmem:[%s219 + $0x128] sm:$0xff]
      %v251 = vld [vmem:[%s219 + $0x138] sm:$0xff]
      %v252 = vld [vmem:[%s219 + $0x140] sm:$0xff]
      %v253 = vld [vmem:[%s219 + $0x150] sm:$0xff]
      %v254 = vld [vmem:[%s219 + $0x158] sm:$0xff]
      %v255 = vld [vmem:[%s219 + $0x168] sm:$0xff]
      %v256 = vld [vmem:[%s219 + $0x170] sm:$0xff]
      %vm257 = vcmask 31744
      %258 = vst.msk [vmem:[#allocation2] sm:$0xff] %vm257, %v225
      %259 = vst.msk [vmem:[#allocation2 + $0x8] sm:$0xff] %vm257, %v226
      %260 = vst.msk [vmem:[#allocation2 + $0x10] sm:$0xff] %vm257, %v227
      %261 = vst.msk [vmem:[#allocation2 + $0x18] sm:$0xff] %vm257, %v228
      %262 = vst.msk [vmem:[#allocation2 + $0x20] sm:$0xff] %vm257, %v229
      %263 = vst.msk [vmem:[#allocation2 + $0x28] sm:$0xff] %vm257, %v230
      %264 = vst.msk [vmem:[#allocation2 + $0x30] sm:$0xff] %vm257, %v231
      %265 = vst.msk [vmem:[#allocation2 + $0x38] sm:$0xff] %vm257, %v232
      %266 = vst.msk [vmem:[#allocation2 + $0x40] sm:$0xff] %vm257, %v233
      %267 = vst.msk [vmem:[#allocation2 + $0x48] sm:$0xff] %vm257, %v234
      %268 = vst.msk [vmem:[#allocation2 + $0x50] sm:$0xff] %vm257, %v235
      %269 = vst.msk [vmem:[#allocation2 + $0x58] sm:$0xff] %vm257, %v236
      %270 = vst.msk [vmem:[#allocation2 + $0x60] sm:$0xff] %vm257, %v237
      %271 = vst.msk [vmem:[#allocation2 + $0x68] sm:$0xff] %vm257, %v238
      %272 = vst.msk [vmem:[#allocation2 + $0x70] sm:$0xff] %vm257, %v239
      %273 = vst.msk [vmem:[#allocation2 + $0x78] sm:$0xff] %vm257, %v240
      %274 = vst.msk [vmem:[#allocation2 + $0x80] sm:$0xff] %vm257, %v241
      %275 = vst.msk [vmem:[#allocation2 + $0x88] sm:$0xff] %vm257, %v242
      %276 = vst.msk [vmem:[#allocation2 + $0x90] sm:$0xff] %vm257, %v243
      %277 = vst.msk [vmem:[#allocation2 + $0x98] sm:$0xff] %vm257, %v244
      %278 = vst.msk [vmem:[#allocation2 + $0xa0] sm:$0xff] %vm257, %v245
      %279 = vst.msk [vmem:[#allocation2 + $0xa8] sm:$0xff] %vm257, %v246
      %280 = vst.msk [vmem:[#allocation2 + $0xb0] sm:$0xff] %vm257, %v247
      %281 = vst.msk [vmem:[#allocation2 + $0xb8] sm:$0xff] %vm257, %v248
      %282 = vst.msk [vmem:[#allocation2 + $0xc0] sm:$0xff] %vm257, %v249
      %283 = vst.msk [vmem:[#allocation2 + $0xc8] sm:$0xff] %vm257, %v250
      %284 = vst.msk [vmem:[#allocation2 + $0xd0] sm:$0xff] %vm257, %v251
      %285 = vst.msk [vmem:[#allocation2 + $0xd8] sm:$0xff] %vm257, %v252
      %286 = vst.msk [vmem:[#allocation2 + $0xe0] sm:$0xff] %vm257, %v253
      %287 = vst.msk [vmem:[#allocation2 + $0xe8] sm:$0xff] %vm257, %v254
      %288 = vst.msk [vmem:[#allocation2 + $0xf0] sm:$0xff] %vm257, %v255
      %289 = vst.msk [vmem:[#allocation2 + $0xf8] sm:$0xff] %vm257, %v256
      %v290 = vld [vmem:[%s219 + $0x1] sm:$0xff]
      %v291 = vld [vmem:[%s219 + $0x9] sm:$0xff]
      %v292 = vld [vmem:[%s219 + $0x19] sm:$0xff]
      %v293 = vld [vmem:[%s219 + $0x21] sm:$0xff]
      %v294 = vld [vmem:[%s219 + $0x31] sm:$0xff]
      %v295 = vld [vmem:[%s219 + $0x39] sm:$0xff]
      %v296 = vld [vmem:[%s219 + $0x49] sm:$0xff]
      %v297 = vld [vmem:[%s219 + $0x51] sm:$0xff]
      %v298 = vld [vmem:[%s219 + $0x61] sm:$0xff]
      %v299 = vld [vmem:[%s219 + $0x69] sm:$0xff]
      %v300 = vld [vmem:[%s219 + $0x79] sm:$0xff]
      %v301 = vld [vmem:[%s219 + $0x81] sm:$0xff]
      %v302 = vld [vmem:[%s219 + $0x91] sm:$0xff]
      %v303 = vld [vmem:[%s219 + $0x99] sm:$0xff]
      %v304 = vld [vmem:[%s219 + $0xa9] sm:$0xff]
      %v305 = vld [vmem:[%s219 + $0xb1] sm:$0xff]
      %v306 = vld [vmem:[%s219 + $0xc1] sm:$0xff]
      %v307 = vld [vmem:[%s219 + $0xc9] sm:$0xff]
      %v308 = vld [vmem:[%s219 + $0xd9] sm:$0xff]
      %v309 = vld [vmem:[%s219 + $0xe1] sm:$0xff]
      %v310 = vld [vmem:[%s219 + $0xf1] sm:$0xff]
      %v311 = vld [vmem:[%s219 + $0xf9] sm:$0xff]
      %v312 = vld [vmem:[%s219 + $0x109] sm:$0xff]
      %v313 = vld [vmem:[%s219 + $0x111] sm:$0xff]
      %v314 = vld [vmem:[%s219 + $0x121] sm:$0xff]
      %v315 = vld [vmem:[%s219 + $0x129] sm:$0xff]
      %v316 = vld [vmem:[%s219 + $0x139] sm:$0xff]
      %v317 = vld [vmem:[%s219 + $0x141] sm:$0xff]
      %v318 = vld [vmem:[%s219 + $0x151] sm:$0xff]
      %v319 = vld [vmem:[%s219 + $0x159] sm:$0xff]
      %v320 = vld [vmem:[%s219 + $0x169] sm:$0xff]
      %v321 = vld [vmem:[%s219 + $0x171] sm:$0xff]
      %354 = vrot.lane.b32.xlu0 %v290, 4
      %v355 = vpop.permute.xlu0 %354
      %356 = vrot.lane.b32.xlu0 %v291, 4
      %v357 = vpop.permute.xlu0 %356
      %358 = vrot.lane.b32.xlu0 %v292, 4
      %v359 = vpop.permute.xlu0 %358
      %360 = vrot.lane.b32.xlu0 %v293, 4
      %v361 = vpop.permute.xlu0 %360
      %362 = vrot.lane.b32.xlu0 %v294, 4
      %v363 = vpop.permute.xlu0 %362
      %364 = vrot.lane.b32.xlu0 %v295, 4
      %v365 = vpop.permute.xlu0 %364
      %366 = vrot.lane.b32.xlu0 %v296, 4
      %v367 = vpop.permute.xlu0 %366
      %368 = vrot.lane.b32.xlu0 %v297, 4
      %v369 = vpop.permute.xlu0 %368
      %370 = vrot.lane.b32.xlu0 %v298, 4
      %v371 = vpop.permute.xlu0 %370
      %372 = vrot.lane.b32.xlu0 %v299, 4
      %v373 = vpop.permute.xlu0 %372
      %374 = vrot.lane.b32.xlu0 %v300, 4
      %v375 = vpop.permute.xlu0 %374
      %376 = vrot.lane.b32.xlu0 %v301, 4
      %v377 = vpop.permute.xlu0 %376
      %378 = vrot.lane.b32.xlu0 %v302, 4
      %v379 = vpop.permute.xlu0 %378
      %380 = vrot.lane.b32.xlu0 %v303, 4
      %v381 = vpop.permute.xlu0 %380
      %382 = vrot.lane.b32.xlu0 %v304, 4
      %v383 = vpop.permute.xlu0 %382
      %384 = vrot.lane.b32.xlu0 %v305, 4
      %v385 = vpop.permute.xlu0 %384
      %386 = vrot.lane.b32.xlu0 %v306, 4
      %v387 = vpop.permute.xlu0 %386
      %388 = vrot.lane.b32.xlu0 %v307, 4
      %v389 = vpop.permute.xlu0 %388
      %390 = vrot.lane.b32.xlu0 %v308, 4
      %v391 = vpop.permute.xlu0 %390
      %392 = vrot.lane.b32.xlu0 %v309, 4
      %v393 = vpop.permute.xlu0 %392
      %394 = vrot.lane.b32.xlu0 %v310, 4
      %v395 = vpop.permute.xlu0 %394
      %396 = vrot.lane.b32.xlu0 %v311, 4
      %v397 = vpop.permute.xlu0 %396
      %398 = vrot.lane.b32.xlu0 %v312, 4
      %v399 = vpop.permute.xlu0 %398
      %400 = vrot.lane.b32.xlu0 %v313, 4
      %v401 = vpop.permute.xlu0 %400
      %402 = vrot.lane.b32.xlu0 %v314, 4
      %v403 = vpop.permute.xlu0 %402
      %404 = vrot.lane.b32.xlu0 %v315, 4
      %v405 = vpop.permute.xlu0 %404
      %406 = vrot.lane.b32.xlu0 %v316, 4
      %v407 = vpop.permute.xlu0 %406
      %408 = vrot.lane.b32.xlu0 %v317, 4
      %v409 = vpop.permute.xlu0 %408
      %410 = vrot.lane.b32.xlu0 %v318, 4
      %v411 = vpop.permute.xlu0 %410
      %412 = vrot.lane.b32.xlu0 %v319, 4
      %v413 = vpop.permute.xlu0 %412
      %414 = vrot.lane.b32.xlu0 %v320, 4
      %v415 = vpop.permute.xlu0 %414
      %416 = vrot.lane.b32.xlu0 %v321, 4
      %v417 = vpop.permute.xlu0 %416
      %vm450 = vcmask 64544
      %451 = vst.msk [vmem:[#allocation2] sm:$0xff] %vm450, %v355
      %452 = vst.msk [vmem:[#allocation2 + $0x8] sm:$0xff] %vm450, %v357
      %453 = vst.msk [vmem:[#allocation2 + $0x10] sm:$0xff] %vm450, %v359
      %454 = vst.msk [vmem:[#allocation2 + $0x18] sm:$0xff] %vm450, %v361
      %455 = vst.msk [vmem:[#allocation2 + $0x20] sm:$0xff] %vm450, %v363
      %456 = vst.msk [vmem:[#allocation2 + $0x28] sm:$0xff] %vm450, %v365
      %457 = vst.msk [vmem:[#allocation2 + $0x30] sm:$0xff] %vm450, %v367
      %458 = vst.msk [vmem:[#allocation2 + $0x38] sm:$0xff] %vm450, %v369
      %459 = vst.msk [vmem:[#allocation2 + $0x40] sm:$0xff] %vm450, %v371
      %460 = vst.msk [vmem:[#allocation2 + $0x48] sm:$0xff] %vm450, %v373
      %461 = vst.msk [vmem:[#allocation2 + $0x50] sm:$0xff] %vm450, %v375
      %462 = vst.msk [vmem:[#allocation2 + $0x58] sm:$0xff] %vm450, %v377
      %463 = vst.msk [vmem:[#allocation2 + $0x60] sm:$0xff] %vm450, %v379
      %464 = vst.msk [vmem:[#allocation2 + $0x68] sm:$0xff] %vm450, %v381
      %465 = vst.msk [vmem:[#allocation2 + $0x70] sm:$0xff] %vm450, %v383
      %466 = vst.msk [vmem:[#allocation2 + $0x78] sm:$0xff] %vm450, %v385
      %467 = vst.msk [vmem:[#allocation2 + $0x80] sm:$0xff] %vm450, %v387
      %468 = vst.msk [vmem:[#allocation2 + $0x88] sm:$0xff] %vm450, %v389
      %469 = vst.msk [vmem:[#allocation2 + $0x90] sm:$0xff] %vm450, %v391
      %470 = vst.msk [vmem:[#allocation2 + $0x98] sm:$0xff] %vm450, %v393
      %471 = vst.msk [vmem:[#allocation2 + $0xa0] sm:$0xff] %vm450, %v395
      %472 = vst.msk [vmem:[#allocation2 + $0xa8] sm:$0xff] %vm450, %v397
      %473 = vst.msk [vmem:[#allocation2 + $0xb0] sm:$0xff] %vm450, %v399
      %474 = vst.msk [vmem:[#allocation2 + $0xb8] sm:$0xff] %vm450, %v401
      %475 = vst.msk [vmem:[#allocation2 + $0xc0] sm:$0xff] %vm450, %v403
      %476 = vst.msk [vmem:[#allocation2 + $0xc8] sm:$0xff] %vm450, %v405
      %477 = vst.msk [vmem:[#allocation2 + $0xd0] sm:$0xff] %vm450, %v407
      %478 = vst.msk [vmem:[#allocation2 + $0xd8] sm:$0xff] %vm450, %v409
      %479 = vst.msk [vmem:[#allocation2 + $0xe0] sm:$0xff] %vm450, %v411
      %480 = vst.msk [vmem:[#allocation2 + $0xe8] sm:$0xff] %vm450, %v413
      %481 = vst.msk [vmem:[#allocation2 + $0xf0] sm:$0xff] %vm450, %v415
      %482 = vst.msk [vmem:[#allocation2 + $0xf8] sm:$0xff] %vm450, %v417
      %v483 = vld [vmem:[%s219 + $0x2] sm:$0xff]
      %v484 = vld [vmem:[%s219 + $0xa] sm:$0xff]
      %v485 = vld [vmem:[%s219 + $0x1a] sm:$0xff]
      %v486 = vld [vmem:[%s219 + $0x22] sm:$0xff]
      %v487 = vld [vmem:[%s219 + $0x32] sm:$0xff]
      %v488 = vld [vmem:[%s219 + $0x3a] sm:$0xff]
      %v489 = vld [vmem:[%s219 + $0x4a] sm:$0xff]
      %v490 = vld [vmem:[%s219 + $0x52] sm:$0xff]
      %v491 = vld [vmem:[%s219 + $0x62] sm:$0xff]
      %v492 = vld [vmem:[%s219 + $0x6a] sm:$0xff]
      %v493 = vld [vmem:[%s219 + $0x7a] sm:$0xff]
      %v494 = vld [vmem:[%s219 + $0x82] sm:$0xff]
      %v495 = vld [vmem:[%s219 + $0x92] sm:$0xff]
      %v496 = vld [vmem:[%s219 + $0x9a] sm:$0xff]
      %v497 = vld [vmem:[%s219 + $0xaa] sm:$0xff]
      %v498 = vld [vmem:[%s219 + $0xb2] sm:$0xff]
      %v499 = vld [vmem:[%s219 + $0xc2] sm:$0xff]
      %v500 = vld [vmem:[%s219 + $0xca] sm:$0xff]
      %v501 = vld [vmem:[%s219 + $0xda] sm:$0xff]
      %v502 = vld [vmem:[%s219 + $0xe2] sm:$0xff]
      %v503 = vld [vmem:[%s219 + $0xf2] sm:$0xff]
      %v504 = vld [vmem:[%s219 + $0xfa] sm:$0xff]
      %v505 = vld [vmem:[%s219 + $0x10a] sm:$0xff]
      %v506 = vld [vmem:[%s219 + $0x112] sm:$0xff]
      %v507 = vld [vmem:[%s219 + $0x122] sm:$0xff]
      %v508 = vld [vmem:[%s219 + $0x12a] sm:$0xff]
      %v509 = vld [vmem:[%s219 + $0x13a] sm:$0xff]
      %v510 = vld [vmem:[%s219 + $0x142] sm:$0xff]
      %v511 = vld [vmem:[%s219 + $0x152] sm:$0xff]
      %v512 = vld [vmem:[%s219 + $0x15a] sm:$0xff]
      %v513 = vld [vmem:[%s219 + $0x16a] sm:$0xff]
      %v514 = vld [vmem:[%s219 + $0x172] sm:$0xff]
      %547 = vrot.lane.b32.xlu0 %v483, 8
      %v548 = vpop.permute.xlu0 %547
      %549 = vrot.lane.b32.xlu0 %v484, 8
      %v550 = vpop.permute.xlu0 %549
      %551 = vrot.lane.b32.xlu0 %v485, 8
      %v552 = vpop.permute.xlu0 %551
      %553 = vrot.lane.b32.xlu0 %v486, 8
      %v554 = vpop.permute.xlu0 %553
      %555 = vrot.lane.b32.xlu0 %v487, 8
      %v556 = vpop.permute.xlu0 %555
      %557 = vrot.lane.b32.xlu0 %v488, 8
      %v558 = vpop.permute.xlu0 %557
      %559 = vrot.lane.b32.xlu0 %v489, 8
      %v560 = vpop.permute.xlu0 %559
      %561 = vrot.lane.b32.xlu0 %v490, 8
      %v562 = vpop.permute.xlu0 %561
      %563 = vrot.lane.b32.xlu0 %v491, 8
      %v564 = vpop.permute.xlu0 %563
      %565 = vrot.lane.b32.xlu0 %v492, 8
      %v566 = vpop.permute.xlu0 %565
      %567 = vrot.lane.b32.xlu0 %v493, 8
      %v568 = vpop.permute.xlu0 %567
      %569 = vrot.lane.b32.xlu0 %v494, 8
      %v570 = vpop.permute.xlu0 %569
      %571 = vrot.lane.b32.xlu0 %v495, 8
      %v572 = vpop.permute.xlu0 %571
      %573 = vrot.lane.b32.xlu0 %v496, 8
      %v574 = vpop.permute.xlu0 %573
      %575 = vrot.lane.b32.xlu0 %v497, 8
      %v576 = vpop.permute.xlu0 %575
      %577 = vrot.lane.b32.xlu0 %v498, 8
      %v578 = vpop.permute.xlu0 %577
      %579 = vrot.lane.b32.xlu0 %v499, 8
      %v580 = vpop.permute.xlu0 %579
      %581 = vrot.lane.b32.xlu0 %v500, 8
      %v582 = vpop.permute.xlu0 %581
      %583 = vrot.lane.b32.xlu0 %v501, 8
      %v584 = vpop.permute.xlu0 %583
      %585 = vrot.lane.b32.xlu0 %v502, 8
      %v586 = vpop.permute.xlu0 %585
      %587 = vrot.lane.b32.xlu0 %v503, 8
      %v588 = vpop.permute.xlu0 %587
      %589 = vrot.lane.b32.xlu0 %v504, 8
      %v590 = vpop.permute.xlu0 %589
      %591 = vrot.lane.b32.xlu0 %v505, 8
      %v592 = vpop.permute.xlu0 %591
      %593 = vrot.lane.b32.xlu0 %v506, 8
      %v594 = vpop.permute.xlu0 %593
      %595 = vrot.lane.b32.xlu0 %v507, 8
      %v596 = vpop.permute.xlu0 %595
      %597 = vrot.lane.b32.xlu0 %v508, 8
      %v598 = vpop.permute.xlu0 %597
      %599 = vrot.lane.b32.xlu0 %v509, 8
      %v600 = vpop.permute.xlu0 %599
      %601 = vrot.lane.b32.xlu0 %v510, 8
      %v602 = vpop.permute.xlu0 %601
      %603 = vrot.lane.b32.xlu0 %v511, 8
      %v604 = vpop.permute.xlu0 %603
      %605 = vrot.lane.b32.xlu0 %v512, 8
      %v606 = vpop.permute.xlu0 %605
      %607 = vrot.lane.b32.xlu0 %v513, 8
      %v608 = vpop.permute.xlu0 %607
      %609 = vrot.lane.b32.xlu0 %v514, 8
      %v610 = vpop.permute.xlu0 %609
      %vm643 = vcmask 97344
      %644 = vst.msk [vmem:[#allocation2] sm:$0xff] %vm643, %v548
      %645 = vst.msk [vmem:[#allocation2 + $0x8] sm:$0xff] %vm643, %v550
      %646 = vst.msk [vmem:[#allocation2 + $0x10] sm:$0xff] %vm643, %v552
      %647 = vst.msk [vmem:[#allocation2 + $0x18] sm:$0xff] %vm643, %v554
      %648 = vst.msk [vmem:[#allocation2 + $0x20] sm:$0xff] %vm643, %v556
      %649 = vst.msk [vmem:[#allocation2 + $0x28] sm:$0xff] %vm643, %v558
      %650 = vst.msk [vmem:[#allocation2 + $0x30] sm:$0xff] %vm643, %v560
      %651 = vst.msk [vmem:[#allocation2 + $0x38] sm:$0xff] %vm643, %v562
      %652 = vst.msk [vmem:[#allocation2 + $0x40] sm:$0xff] %vm643, %v564
      %653 = vst.msk [vmem:[#allocation2 + $0x48] sm:$0xff] %vm643, %v566
      %654 = vst.msk [vmem:[#allocation2 + $0x50] sm:$0xff] %vm643, %v568
      %655 = vst.msk [vmem:[#allocation2 + $0x58] sm:$0xff] %vm643, %v570
      %656 = vst.msk [vmem:[#allocation2 + $0x60] sm:$0xff] %vm643, %v572
      %657 = vst.msk [vmem:[#allocation2 + $0x68] sm:$0xff] %vm643, %v574
      %658 = vst.msk [vmem:[#allocation2 + $0x70] sm:$0xff] %vm643, %v576
      %659 = vst.msk [vmem:[#allocation2 + $0x78] sm:$0xff] %vm643, %v578
      %660 = vst.msk [vmem:[#allocation2 + $0x80] sm:$0xff] %vm643, %v580
      %661 = vst.msk [vmem:[#allocation2 + $0x88] sm:$0xff] %vm643, %v582
      %662 = vst.msk [vmem:[#allocation2 + $0x90] sm:$0xff] %vm643, %v584
      %663 = vst.msk [vmem:[#allocation2 + $0x98] sm:$0xff] %vm643, %v586
      %664 = vst.msk [vmem:[#allocation2 + $0xa0] sm:$0xff] %vm643, %v588
      %665 = vst.msk [vmem:[#allocation2 + $0xa8] sm:$0xff] %vm643, %v590
      %666 = vst.msk [vmem:[#allocation2 + $0xb0] sm:$0xff] %vm643, %v592
      %667 = vst.msk [vmem:[#allocation2 + $0xb8] sm:$0xff] %vm643, %v594
      %668 = vst.msk [vmem:[#allocation2 + $0xc0] sm:$0xff] %vm643, %v596
      %669 = vst.msk [vmem:[#allocation2 + $0xc8] sm:$0xff] %vm643, %v598
      %670 = vst.msk [vmem:[#allocation2 + $0xd0] sm:$0xff] %vm643, %v600
      %671 = vst.msk [vmem:[#allocation2 + $0xd8] sm:$0xff] %vm643, %v602
      %672 = vst.msk [vmem:[#allocation2 + $0xe0] sm:$0xff] %vm643, %v604
      %673 = vst.msk [vmem:[#allocation2 + $0xe8] sm:$0xff] %vm643, %v606
      %674 = vst.msk [vmem:[#allocation2 + $0xf0] sm:$0xff] %vm643, %v608
      %675 = vst.msk [vmem:[#allocation2 + $0xf8] sm:$0xff] %vm643, %v610
      %s676 = scalar_lea.vmem %s219, 24
      %v677 = vld [vmem:[%s676] sm:$0xff]
      %v678 = vld [vmem:[%s676 + $0x8] sm:$0xff]
      %v679 = vld [vmem:[%s676 + $0x18] sm:$0xff]
      %v680 = vld [vmem:[%s676 + $0x20] sm:$0xff]
      %v681 = vld [vmem:[%s676 + $0x30] sm:$0xff]
      %v682 = vld [vmem:[%s676 + $0x38] sm:$0xff]
      %v683 = vld [vmem:[%s676 + $0x48] sm:$0xff]
      %v684 = vld [vmem:[%s676 + $0x50] sm:$0xff]
      %v685 = vld [vmem:[%s676 + $0x60] sm:$0xff]
      %v686 = vld [vmem:[%s676 + $0x68] sm:$0xff]
      %v687 = vld [vmem:[%s676 + $0x78] sm:$0xff]
      %v688 = vld [vmem:[%s676 + $0x80] sm:$0xff]
      %v689 = vld [vmem:[%s676 + $0x90] sm:$0xff]
      %v690 = vld [vmem:[%s676 + $0x98] sm:$0xff]
      %v691 = vld [vmem:[%s676 + $0xa8] sm:$0xff]
      %v692 = vld [vmem:[%s676 + $0xb0] sm:$0xff]
      %v693 = vld [vmem:[%s676 + $0xc0] sm:$0xff]
      %v694 = vld [vmem:[%s676 + $0xc8] sm:$0xff]
      %v695 = vld [vmem:[%s676 + $0xd8] sm:$0xff]
      %v696 = vld [vmem:[%s676 + $0xe0] sm:$0xff]
      %v697 = vld [vmem:[%s676 + $0xf0] sm:$0xff]
      %v698 = vld [vmem:[%s676 + $0xf8] sm:$0xff]
      %v699 = vld [vmem:[%s676 + $0x108] sm:$0xff]
      %v700 = vld [vmem:[%s676 + $0x110] sm:$0xff]
      %v701 = vld [vmem:[%s676 + $0x120] sm:$0xff]
      %v702 = vld [vmem:[%s676 + $0x128] sm:$0xff]
      %v703 = vld [vmem:[%s676 + $0x138] sm:$0xff]
      %v704 = vld [vmem:[%s676 + $0x140] sm:$0xff]
      %v705 = vld [vmem:[%s676 + $0x150] sm:$0xff]
      %v706 = vld [vmem:[%s676 + $0x158] sm:$0xff]
      %v707 = vld [vmem:[%s676 + $0x168] sm:$0xff]
      %v708 = vld [vmem:[%s676 + $0x170] sm:$0xff]
      %741 = vrot.lane.b32.xlu0 %v677, 12
      %v742 = vpop.permute.xlu0 %741
      %743 = vrot.lane.b32.xlu0 %v678, 12
      %v744 = vpop.permute.xlu0 %743
      %745 = vrot.lane.b32.xlu0 %v679, 12
      %v746 = vpop.permute.xlu0 %745
      %747 = vrot.lane.b32.xlu0 %v680, 12
      %v748 = vpop.permute.xlu0 %747
      %749 = vrot.lane.b32.xlu0 %v681, 12
      %v750 = vpop.permute.xlu0 %749
      %751 = vrot.lane.b32.xlu0 %v682, 12
      %v752 = vpop.permute.xlu0 %751
      %753 = vrot.lane.b32.xlu0 %v683, 12
      %v754 = vpop.permute.xlu0 %753
      %755 = vrot.lane.b32.xlu0 %v684, 12
      %v756 = vpop.permute.xlu0 %755
      %757 = vrot.lane.b32.xlu0 %v685, 12
      %v758 = vpop.permute.xlu0 %757
      %759 = vrot.lane.b32.xlu0 %v686, 12
      %v760 = vpop.permute.xlu0 %759
      %761 = vrot.lane.b32.xlu0 %v687, 12
      %v762 = vpop.permute.xlu0 %761
      %763 = vrot.lane.b32.xlu0 %v688, 12
      %v764 = vpop.permute.xlu0 %763
      %765 = vrot.lane.b32.xlu0 %v689, 12
      %v766 = vpop.permute.xlu0 %765
      %767 = vrot.lane.b32.xlu0 %v690, 12
      %v768 = vpop.permute.xlu0 %767
      %769 = vrot.lane.b32.xlu0 %v691, 12
      %v770 = vpop.permute.xlu0 %769
      %771 = vrot.lane.b32.xlu0 %v692, 12
      %v772 = vpop.permute.xlu0 %771
      %773 = vrot.lane.b32.xlu0 %v693, 12
      %v774 = vpop.permute.xlu0 %773
      %775 = vrot.lane.b32.xlu0 %v694, 12
      %v776 = vpop.permute.xlu0 %775
      %777 = vrot.lane.b32.xlu0 %v695, 12
      %v778 = vpop.permute.xlu0 %777
      %779 = vrot.lane.b32.xlu0 %v696, 12
      %v780 = vpop.permute.xlu0 %779
      %781 = vrot.lane.b32.xlu0 %v697, 12
      %v782 = vpop.permute.xlu0 %781
      %783 = vrot.lane.b32.xlu0 %v698, 12
      %v784 = vpop.permute.xlu0 %783
      %785 = vrot.lane.b32.xlu0 %v699, 12
      %v786 = vpop.permute.xlu0 %785
      %787 = vrot.lane.b32.xlu0 %v700, 12
      %v788 = vpop.permute.xlu0 %787
      %789 = vrot.lane.b32.xlu0 %v701, 12
      %v790 = vpop.permute.xlu0 %789
      %791 = vrot.lane.b32.xlu0 %v702, 12
      %v792 = vpop.permute.xlu0 %791
      %793 = vrot.lane.b32.xlu0 %v703, 12
      %v794 = vpop.permute.xlu0 %793
      %795 = vrot.lane.b32.xlu0 %v704, 12
      %v796 = vpop.permute.xlu0 %795
      %797 = vrot.lane.b32.xlu0 %v705, 12
      %v798 = vpop.permute.xlu0 %797
      %799 = vrot.lane.b32.xlu0 %v706, 12
      %v800 = vpop.permute.xlu0 %799
      %801 = vrot.lane.b32.xlu0 %v707, 12
      %v802 = vpop.permute.xlu0 %801
      %803 = vrot.lane.b32.xlu0 %v708, 12
      %v804 = vpop.permute.xlu0 %803
      %vm837 = vcmask 130144
      %838 = vst.msk [vmem:[#allocation2] sm:$0xff] %vm837, %v742
      %839 = vst.msk [vmem:[#allocation2 + $0x8] sm:$0xff] %vm837, %v744
      %840 = vst.msk [vmem:[#allocation2 + $0x10] sm:$0xff] %vm837, %v746
      %841 = vst.msk [vmem:[#allocation2 + $0x18] sm:$0xff] %vm837, %v748
      %842 = vst.msk [vmem:[#allocation2 + $0x20] sm:$0xff] %vm837, %v750
      %843 = vst.msk [vmem:[#allocation2 + $0x28] sm:$0xff] %vm837, %v752
      %844 = vst.msk [vmem:[#allocation2 + $0x30] sm:$0xff] %vm837, %v754
      %845 = vst.msk [vmem:[#allocation2 + $0x38] sm:$0xff] %vm837, %v756
      %846 = vst.msk [vmem:[#allocation2 + $0x40] sm:$0xff] %vm837, %v758
      %847 = vst.msk [vmem:[#allocation2 + $0x48] sm:$0xff] %vm837, %v760
      %848 = vst.msk [vmem:[#allocation2 + $0x50] sm:$0xff] %vm837, %v762
      %849 = vst.msk [vmem:[#allocation2 + $0x58] sm:$0xff] %vm837, %v764
      %850 = vst.msk [vmem:[#allocation2 + $0x60] sm:$0xff] %vm837, %v766
      %851 = vst.msk [vmem:[#allocation2 + $0x68] sm:$0xff] %vm837, %v768
      %852 = vst.msk [vmem:[#allocation2 + $0x70] sm:$0xff] %vm837, %v770
      %853 = vst.msk [vmem:[#allocation2 + $0x78] sm:$0xff] %vm837, %v772
      %854 = vst.msk [vmem:[#allocation2 + $0x80] sm:$0xff] %vm837, %v774
      %855 = vst.msk [vmem:[#allocation2 + $0x88] sm:$0xff] %vm837, %v776
      %856 = vst.msk [vmem:[#allocation2 + $0x90] sm:$0xff] %vm837, %v778
      %857 = vst.msk [vmem:[#allocation2 + $0x98] sm:$0xff] %vm837, %v780
      %858 = vst.msk [vmem:[#allocation2 + $0xa0] sm:$0xff] %vm837, %v782
      %859 = vst.msk [vmem:[#allocation2 + $0xa8] sm:$0xff] %vm837, %v784
      %860 = vst.msk [vmem:[#allocation2 + $0xb0] sm:$0xff] %vm837, %v786
      %861 = vst.msk [vmem:[#allocation2 + $0xb8] sm:$0xff] %vm837, %v788
      %862 = vst.msk [vmem:[#allocation2 + $0xc0] sm:$0xff] %vm837, %v790
      %863 = vst.msk [vmem:[#allocation2 + $0xc8] sm:$0xff] %vm837, %v792
      %864 = vst.msk [vmem:[#allocation2 + $0xd0] sm:$0xff] %vm837, %v794
      %865 = vst.msk [vmem:[#allocation2 + $0xd8] sm:$0xff] %vm837, %v796
      %866 = vst.msk [vmem:[#allocation2 + $0xe0] sm:$0xff] %vm837, %v798
      %867 = vst.msk [vmem:[#allocation2 + $0xe8] sm:$0xff] %vm837, %v800
      %868 = vst.msk [vmem:[#allocation2 + $0xf0] sm:$0xff] %vm837, %v802
      %869 = vst.msk [vmem:[#allocation2 + $0xf8] sm:$0xff] %vm837, %v804
      %v870 = vld [vmem:[%s676 + $0x1] sm:$0xff]
      %v871 = vld [vmem:[%s676 + $0x9] sm:$0xff]
      %v872 = vld [vmem:[%s676 + $0x19] sm:$0xff]
      %v873 = vld [vmem:[%s676 + $0x21] sm:$0xff]
      %v874 = vld [vmem:[%s676 + $0x31] sm:$0xff]
      %v875 = vld [vmem:[%s676 + $0x39] sm:$0xff]
      %v876 = vld [vmem:[%s676 + $0x49] sm:$0xff]
      %v877 = vld [vmem:[%s676 + $0x51] sm:$0xff]
      %v878 = vld [vmem:[%s676 + $0x61] sm:$0xff]
      %v879 = vld [vmem:[%s676 + $0x69] sm:$0xff]
      %v880 = vld [vmem:[%s676 + $0x79] sm:$0xff]
      %v881 = vld [vmem:[%s676 + $0x81] sm:$0xff]
      %v882 = vld [vmem:[%s676 + $0x91] sm:$0xff]
      %v883 = vld [vmem:[%s676 + $0x99] sm:$0xff]
      %v884 = vld [vmem:[%s676 + $0xa9] sm:$0xff]
      %v885 = vld [vmem:[%s676 + $0xb1] sm:$0xff]
      %v886 = vld [vmem:[%s676 + $0xc1] sm:$0xff]
      %v887 = vld [vmem:[%s676 + $0xc9] sm:$0xff]
      %v888 = vld [vmem:[%s676 + $0xd9] sm:$0xff]
      %v889 = vld [vmem:[%s676 + $0xe1] sm:$0xff]
      %v890 = vld [vmem:[%s676 + $0xf1] sm:$0xff]
      %v891 = vld [vmem:[%s676 + $0xf9] sm:$0xff]
      %v892 = vld [vmem:[%s676 + $0x109] sm:$0xff]
      %v893 = vld [vmem:[%s676 + $0x111] sm:$0xff]
      %v894 = vld [vmem:[%s676 + $0x121] sm:$0xff]
      %v895 = vld [vmem:[%s676 + $0x129] sm:$0xff]
      %v896 = vld [vmem:[%s676 + $0x139] sm:$0xff]
      %v897 = vld [vmem:[%s676 + $0x141] sm:$0xff]
      %v898 = vld [vmem:[%s676 + $0x151] sm:$0xff]
      %v899 = vld [vmem:[%s676 + $0x159] sm:$0xff]
      %v900 = vld [vmem:[%s676 + $0x169] sm:$0xff]
      %v901 = vld [vmem:[%s676 + $0x171] sm:$0xff]
      %934 = vrot.lane.b32.xlu0 %v870, 16
      %v935 = vpop.permute.xlu0 %934
      %936 = vrot.lane.b32.xlu0 %v871, 16
      %v937 = vpop.permute.xlu0 %936
      %938 = vrot.lane.b32.xlu0 %v872, 16
      %v939 = vpop.permute.xlu0 %938
      %940 = vrot.lane.b32.xlu0 %v873, 16
      %v941 = vpop.permute.xlu0 %940
      %942 = vrot.lane.b32.xlu0 %v874, 16
      %v943 = vpop.permute.xlu0 %942
      %944 = vrot.lane.b32.xlu0 %v875, 16
      %v945 = vpop.permute.xlu0 %944
      %946 = vrot.lane.b32.xlu0 %v876, 16
      %v947 = vpop.permute.xlu0 %946
      %948 = vrot.lane.b32.xlu0 %v877, 16
      %v949 = vpop.permute.xlu0 %948
      %950 = vrot.lane.b32.xlu0 %v878, 16
      %v951 = vpop.permute.xlu0 %950
      %952 = vrot.lane.b32.xlu0 %v879, 16
      %v953 = vpop.permute.xlu0 %952
      %954 = vrot.lane.b32.xlu0 %v880, 16
      %v955 = vpop.permute.xlu0 %954
      %956 = vrot.lane.b32.xlu0 %v881, 16
      %v957 = vpop.permute.xlu0 %956
      %958 = vrot.lane.b32.xlu0 %v882, 16
      %v959 = vpop.permute.xlu0 %958
      %960 = vrot.lane.b32.xlu0 %v883, 16
      %v961 = vpop.permute.xlu0 %960
      %962 = vrot.lane.b32.xlu0 %v884, 16
      %v963 = vpop.permute.xlu0 %962
      %964 = vrot.lane.b32.xlu0 %v885, 16
      %v965 = vpop.permute.xlu0 %964
      %966 = vrot.lane.b32.xlu0 %v886, 16
      %v967 = vpop.permute.xlu0 %966
      %968 = vrot.lane.b32.xlu0 %v887, 16
      %v969 = vpop.permute.xlu0 %968
      %970 = vrot.lane.b32.xlu0 %v888, 16
      %v971 = vpop.permute.xlu0 %970
      %972 = vrot.lane.b32.xlu0 %v889, 16
      %v973 = vpop.permute.xlu0 %972
      %974 = vrot.lane.b32.xlu0 %v890, 16
      %v975 = vpop.permute.xlu0 %974
      %976 = vrot.lane.b32.xlu0 %v891, 16
      %v977 = vpop.permute.xlu0 %976
      %978 = vrot.lane.b32.xlu0 %v892, 16
      %v979 = vpop.permute.xlu0 %978
      %980 = vrot.lane.b32.xlu0 %v893, 16
      %v981 = vpop.permute.xlu0 %980
      %982 = vrot.lane.b32.xlu0 %v894, 16
      %v983 = vpop.permute.xlu0 %982
      %984 = vrot.lane.b32.xlu0 %v895, 16
      %v985 = vpop.permute.xlu0 %984
      %986 = vrot.lane.b32.xlu0 %v896, 16
      %v987 = vpop.permute.xlu0 %986
      %988 = vrot.lane.b32.xlu0 %v897, 16
      %v989 = vpop.permute.xlu0 %988
      %990 = vrot.lane.b32.xlu0 %v898, 16
      %v991 = vpop.permute.xlu0 %990
      %992 = vrot.lane.b32.xlu0 %v899, 16
      %v993 = vpop.permute.xlu0 %992
      %994 = vrot.lane.b32.xlu0 %v900, 16
      %v995 = vpop.permute.xlu0 %994
      %996 = vrot.lane.b32.xlu0 %v901, 16
      %v997 = vpop.permute.xlu0 %996
      %vm1030 = vcmask 162944
      %1031 = vst.msk [vmem:[#allocation2] sm:$0xff] %vm1030, %v935
      %1032 = vst.msk [vmem:[#allocation2 + $0x8] sm:$0xff] %vm1030, %v937
      %1033 = vst.msk [vmem:[#allocation2 + $0x10] sm:$0xff] %vm1030, %v939
      %1034 = vst.msk [vmem:[#allocation2 + $0x18] sm:$0xff] %vm1030, %v941
      %1035 = vst.msk [vmem:[#allocation2 + $0x20] sm:$0xff] %vm1030, %v943
      %1036 = vst.msk [vmem:[#allocation2 + $0x28] sm:$0xff] %vm1030, %v945
      %1037 = vst.msk [vmem:[#allocation2 + $0x30] sm:$0xff] %vm1030, %v947
      %1038 = vst.msk [vmem:[#allocation2 + $0x38] sm:$0xff] %vm1030, %v949
      %1039 = vst.msk [vmem:[#allocation2 + $0x40] sm:$0xff] %vm1030, %v951
      %1040 = vst.msk [vmem:[#allocation2 + $0x48] sm:$0xff] %vm1030, %v953
      %1041 = vst.msk [vmem:[#allocation2 + $0x50] sm:$0xff] %vm1030, %v955
      %1042 = vst.msk [vmem:[#allocation2 + $0x58] sm:$0xff] %vm1030, %v957
      %1043 = vst.msk [vmem:[#allocation2 + $0x60] sm:$0xff] %vm1030, %v959
      %1044 = vst.msk [vmem:[#allocation2 + $0x68] sm:$0xff] %vm1030, %v961
      %1045 = vst.msk [vmem:[#allocation2 + $0x70] sm:$0xff] %vm1030, %v963
      %1046 = vst.msk [vmem:[#allocation2 + $0x78] sm:$0xff] %vm1030, %v965
      %1047 = vst.msk [vmem:[#allocation2 + $0x80] sm:$0xff] %vm1030, %v967
      %1048 = vst.msk [vmem:[#allocation2 + $0x88] sm:$0xff] %vm1030, %v969
      %1049 = vst.msk [vmem:[#allocation2 + $0x90] sm:$0xff] %vm1030, %v971
      %1050 = vst.msk [vmem:[#allocation2 + $0x98] sm:$0xff] %vm1030, %v973
      %1051 = vst.msk [vmem:[#allocation2 + $0xa0] sm:$0xff] %vm1030, %v975
      %1052 = vst.msk [vmem:[#allocation2 + $0xa8] sm:$0xff] %vm1030, %v977
      %1053 = vst.msk [vmem:[#allocation2 + $0xb0] sm:$0xff] %vm1030, %v979
      %1054 = vst.msk [vmem:[#allocation2 + $0xb8] sm:$0xff] %vm1030, %v981
      %1055 = vst.msk [vmem:[#allocation2 + $0xc0] sm:$0xff] %vm1030, %v983
      %1056 = vst.msk [vmem:[#allocation2 + $0xc8] sm:$0xff] %vm1030, %v985
      %1057 = vst.msk [vmem:[#allocation2 + $0xd0] sm:$0xff] %vm1030, %v987
      %1058 = vst.msk [vmem:[#allocation2 + $0xd8] sm:$0xff] %vm1030, %v989
      %1059 = vst.msk [vmem:[#allocation2 + $0xe0] sm:$0xff] %vm1030, %v991
      %1060 = vst.msk [vmem:[#allocation2 + $0xe8] sm:$0xff] %vm1030, %v993
      %1061 = vst.msk [vmem:[#allocation2 + $0xf0] sm:$0xff] %vm1030, %v995
      %1062 = vst.msk [vmem:[#allocation2 + $0xf8] sm:$0xff] %vm1030, %v997
      %v1063 = vld [vmem:[%s676 + $0x2] sm:$0xff]
      %v1064 = vld [vmem:[%s676 + $0xa] sm:$0xff]
      %v1065 = vld [vmem:[%s676 + $0x1a] sm:$0xff]
      %v1066 = vld [vmem:[%s676 + $0x22] sm:$0xff]
      %v1067 = vld [vmem:[%s676 + $0x32] sm:$0xff]
      %v1068 = vld [vmem:[%s676 + $0x3a] sm:$0xff]
      %v1069 = vld [vmem:[%s676 + $0x4a] sm:$0xff]
      %v1070 = vld [vmem:[%s676 + $0x52] sm:$0xff]
      %v1071 = vld [vmem:[%s676 + $0x62] sm:$0xff]
      %v1072 = vld [vmem:[%s676 + $0x6a] sm:$0xff]
      %v1073 = vld [vmem:[%s676 + $0x7a] sm:$0xff]
      %v1074 = vld [vmem:[%s676 + $0x82] sm:$0xff]
      %v1075 = vld [vmem:[%s676 + $0x92] sm:$0xff]
      %v1076 = vld [vmem:[%s676 + $0x9a] sm:$0xff]
      %v1077 = vld [vmem:[%s676 + $0xaa] sm:$0xff]
      %v1078 = vld [vmem:[%s676 + $0xb2] sm:$0xff]
      %v1079 = vld [vmem:[%s676 + $0xc2] sm:$0xff]
      %v1080 = vld [vmem:[%s676 + $0xca] sm:$0xff]
      %v1081 = vld [vmem:[%s676 + $0xda] sm:$0xff]
      %v1082 = vld [vmem:[%s676 + $0xe2] sm:$0xff]
      %v1083 = vld [vmem:[%s676 + $0xf2] sm:$0xff]
      %v1084 = vld [vmem:[%s676 + $0xfa] sm:$0xff]
      %v1085 = vld [vmem:[%s676 + $0x10a] sm:$0xff]
      %v1086 = vld [vmem:[%s676 + $0x112] sm:$0xff]
      %v1087 = vld [vmem:[%s676 + $0x122] sm:$0xff]
      %v1088 = vld [vmem:[%s676 + $0x12a] sm:$0xff]
      %v1089 = vld [vmem:[%s676 + $0x13a] sm:$0xff]
      %v1090 = vld [vmem:[%s676 + $0x142] sm:$0xff]
      %v1091 = vld [vmem:[%s676 + $0x152] sm:$0xff]
      %v1092 = vld [vmem:[%s676 + $0x15a] sm:$0xff]
      %v1093 = vld [vmem:[%s676 + $0x16a] sm:$0xff]
      %v1094 = vld [vmem:[%s676 + $0x172] sm:$0xff]
      %1127 = vrot.lane.b32.xlu0 %v1063, 20
      %v1128 = vpop.permute.xlu0 %1127
      %1129 = vrot.lane.b32.xlu0 %v1064, 20
      %v1130 = vpop.permute.xlu0 %1129
      %1131 = vrot.lane.b32.xlu0 %v1065, 20
      %v1132 = vpop.permute.xlu0 %1131
      %1133 = vrot.lane.b32.xlu0 %v1066, 20
      %v1134 = vpop.permute.xlu0 %1133
      %1135 = vrot.lane.b32.xlu0 %v1067, 20
      %v1136 = vpop.permute.xlu0 %1135
      %1137 = vrot.lane.b32.xlu0 %v1068, 20
      %v1138 = vpop.permute.xlu0 %1137
      %1139 = vrot.lane.b32.xlu0 %v1069, 20
      %v1140 = vpop.permute.xlu0 %1139
      %1141 = vrot.lane.b32.xlu0 %v1070, 20
      %v1142 = vpop.permute.xlu0 %1141
      %1143 = vrot.lane.b32.xlu0 %v1071, 20
      %v1144 = vpop.permute.xlu0 %1143
      %1145 = vrot.lane.b32.xlu0 %v1072, 20
      %v1146 = vpop.permute.xlu0 %1145
      %1147 = vrot.lane.b32.xlu0 %v1073, 20
      %v1148 = vpop.permute.xlu0 %1147
      %1149 = vrot.lane.b32.xlu0 %v1074, 20
      %v1150 = vpop.permute.xlu0 %1149
      %1151 = vrot.lane.b32.xlu0 %v1075, 20
      %v1152 = vpop.permute.xlu0 %1151
      %1153 = vrot.lane.b32.xlu0 %v1076, 20
      %v1154 = vpop.permute.xlu0 %1153
      %1155 = vrot.lane.b32.xlu0 %v1077, 20
      %v1156 = vpop.permute.xlu0 %1155
      %1157 = vrot.lane.b32.xlu0 %v1078, 20
      %v1158 = vpop.permute.xlu0 %1157
      %1159 = vrot.lane.b32.xlu0 %v1079, 20
      %v1160 = vpop.permute.xlu0 %1159
      %1161 = vrot.lane.b32.xlu0 %v1080, 20
      %v1162 = vpop.permute.xlu0 %1161
      %1163 = vrot.lane.b32.xlu0 %v1081, 20
      %v1164 = vpop.permute.xlu0 %1163
      %1165 = vrot.lane.b32.xlu0 %v1082, 20
      %v1166 = vpop.permute.xlu0 %1165
      %1167 = vrot.lane.b32.xlu0 %v1083, 20
      %v1168 = vpop.permute.xlu0 %1167
      %1169 = vrot.lane.b32.xlu0 %v1084, 20
      %v1170 = vpop.permute.xlu0 %1169
      %1171 = vrot.lane.b32.xlu0 %v1085, 20
      %v1172 = vpop.permute.xlu0 %1171
      %1173 = vrot.lane.b32.xlu0 %v1086, 20
      %v1174 = vpop.permute.xlu0 %1173
      %1175 = vrot.lane.b32.xlu0 %v1087, 20
      %v1176 = vpop.permute.xlu0 %1175
      %1177 = vrot.lane.b32.xlu0 %v1088, 20
      %v1178 = vpop.permute.xlu0 %1177
      %1179 = vrot.lane.b32.xlu0 %v1089, 20
      %v1180 = vpop.permute.xlu0 %1179
      %1181 = vrot.lane.b32.xlu0 %v1090, 20
      %v1182 = vpop.permute.xlu0 %1181
      %1183 = vrot.lane.b32.xlu0 %v1091, 20
      %v1184 = vpop.permute.xlu0 %1183
      %1185 = vrot.lane.b32.xlu0 %v1092, 20
      %v1186 = vpop.permute.xlu0 %1185
      %1187 = vrot.lane.b32.xlu0 %v1093, 20
      %v1188 = vpop.permute.xlu0 %1187
      %1189 = vrot.lane.b32.xlu0 %v1094, 20
      %v1190 = vpop.permute.xlu0 %1189
      %vm1223 = vcmask 195744
      %1224 = vst.msk [vmem:[#allocation2] sm:$0xff] %vm1223, %v1128
      %1225 = vst.msk [vmem:[#allocation2 + $0x8] sm:$0xff] %vm1223, %v1130
      %1226 = vst.msk [vmem:[#allocation2 + $0x10] sm:$0xff] %vm1223, %v1132
      %1227 = vst.msk [vmem:[#allocation2 + $0x18] sm:$0xff] %vm1223, %v1134
      %1228 = vst.msk [vmem:[#allocation2 + $0x20] sm:$0xff] %vm1223, %v1136
      %1229 = vst.msk [vmem:[#allocation2 + $0x28] sm:$0xff] %vm1223, %v1138
      %1230 = vst.msk [vmem:[#allocation2 + $0x30] sm:$0xff] %vm1223, %v1140
      %1231 = vst.msk [vmem:[#allocation2 + $0x38] sm:$0xff] %vm1223, %v1142
      %1232 = vst.msk [vmem:[#allocation2 + $0x40] sm:$0xff] %vm1223, %v1144
      %1233 = vst.msk [vmem:[#allocation2 + $0x48] sm:$0xff] %vm1223, %v1146
      %1234 = vst.msk [vmem:[#allocation2 + $0x50] sm:$0xff] %vm1223, %v1148
      %1235 = vst.msk [vmem:[#allocation2 + $0x58] sm:$0xff] %vm1223, %v1150
      %1236 = vst.msk [vmem:[#allocation2 + $0x60] sm:$0xff] %vm1223, %v1152
      %1237 = vst.msk [vmem:[#allocation2 + $0x68] sm:$0xff] %vm1223, %v1154
      %1238 = vst.msk [vmem:[#allocation2 + $0x70] sm:$0xff] %vm1223, %v1156
      %1239 = vst.msk [vmem:[#allocation2 + $0x78] sm:$0xff] %vm1223, %v1158
      %1240 = vst.msk [vmem:[#allocation2 + $0x80] sm:$0xff] %vm1223, %v1160
      %1241 = vst.msk [vmem:[#allocation2 + $0x88] sm:$0xff] %vm1223, %v1162
      %1242 = vst.msk [vmem:[#allocation2 + $0x90] sm:$0xff] %vm1223, %v1164
      %1243 = vst.msk [vmem:[#allocation2 + $0x98] sm:$0xff] %vm1223, %v1166
      %1244 = vst.msk [vmem:[#allocation2 + $0xa0] sm:$0xff] %vm1223, %v1168
      %1245 = vst.msk [vmem:[#allocation2 + $0xa8] sm:$0xff] %vm1223, %v1170
      %1246 = vst.msk [vmem:[#allocation2 + $0xb0] sm:$0xff] %vm1223, %v1172
      %1247 = vst.msk [vmem:[#allocation2 + $0xb8] sm:$0xff] %vm1223, %v1174
      %1248 = vst.msk [vmem:[#allocation2 + $0xc0] sm:$0xff] %vm1223, %v1176
      %1249 = vst.msk [vmem:[#allocation2 + $0xc8] sm:$0xff] %vm1223, %v1178
      %1250 = vst.msk [vmem:[#allocation2 + $0xd0] sm:$0xff] %vm1223, %v1180
      %1251 = vst.msk [vmem:[#allocation2 + $0xd8] sm:$0xff] %vm1223, %v1182
      %1252 = vst.msk [vmem:[#allocation2 + $0xe0] sm:$0xff] %vm1223, %v1184
      %1253 = vst.msk [vmem:[#allocation2 + $0xe8] sm:$0xff] %vm1223, %v1186
      %1254 = vst.msk [vmem:[#allocation2 + $0xf0] sm:$0xff] %vm1223, %v1188
      %1255 = vst.msk [vmem:[#allocation2 + $0xf8] sm:$0xff] %vm1223, %v1190
      %s1256 = scalar_lea.vmem %s219, 48
      %v1257 = vld [vmem:[%s1256] sm:$0xff]
      %v1258 = vld [vmem:[%s1256 + $0x8] sm:$0xff]
      %v1259 = vld [vmem:[%s1256 + $0x18] sm:$0xff]
      %v1260 = vld [vmem:[%s1256 + $0x20] sm:$0xff]
      %v1261 = vld [vmem:[%s1256 + $0x30] sm:$0xff]
      %v1262 = vld [vmem:[%s1256 + $0x38] sm:$0xff]
      %v1263 = vld [vmem:[%s1256 + $0x48] sm:$0xff]
      %v1264 = vld [vmem:[%s1256 + $0x50] sm:$0xff]
      %v1265 = vld [vmem:[%s1256 + $0x60] sm:$0xff]
      %v1266 = vld [vmem:[%s1256 + $0x68] sm:$0xff]
      %v1267 = vld [vmem:[%s1256 + $0x78] sm:$0xff]
      %v1268 = vld [vmem:[%s1256 + $0x80] sm:$0xff]
      %v1269 = vld [vmem:[%s1256 + $0x90] sm:$0xff]
      %v1270 = vld [vmem:[%s1256 + $0x98] sm:$0xff]
      %v1271 = vld [vmem:[%s1256 + $0xa8] sm:$0xff]
      %v1272 = vld [vmem:[%s1256 + $0xb0] sm:$0xff]
      %v1273 = vld [vmem:[%s1256 + $0xc0] sm:$0xff]
      %v1274 = vld [vmem:[%s1256 + $0xc8] sm:$0xff]
      %v1275 = vld [vmem:[%s1256 + $0xd8] sm:$0xff]
      %v1276 = vld [vmem:[%s1256 + $0xe0] sm:$0xff]
      %v1277 = vld [vmem:[%s1256 + $0xf0] sm:$0xff]
      %v1278 = vld [vmem:[%s1256 + $0xf8] sm:$0xff]
      %v1279 = vld [vmem:[%s1256 + $0x108] sm:$0xff]
      %v1280 = vld [vmem:[%s1256 + $0x110] sm:$0xff]
      %v1281 = vld [vmem:[%s1256 + $0x120] sm:$0xff]
      %v1282 = vld [vmem:[%s1256 + $0x128] sm:$0xff]
      %v1283 = vld [vmem:[%s1256 + $0x138] sm:$0xff]
      %v1284 = vld [vmem:[%s1256 + $0x140] sm:$0xff]
      %v1285 = vld [vmem:[%s1256 + $0x150] sm:$0xff]
      %v1286 = vld [vmem:[%s1256 + $0x158] sm:$0xff]
      %v1287 = vld [vmem:[%s1256 + $0x168] sm:$0xff]
      %v1288 = vld [vmem:[%s1256 + $0x170] sm:$0xff]
      %1321 = vrot.lane.b32.xlu0 %v1257, 24
      %v1322 = vpop.permute.xlu0 %1321
      %1323 = vrot.lane.b32.xlu0 %v1258, 24
      %v1324 = vpop.permute.xlu0 %1323
      %1325 = vrot.lane.b32.xlu0 %v1259, 24
      %v1326 = vpop.permute.xlu0 %1325
      %1327 = vrot.lane.b32.xlu0 %v1260, 24
      %v1328 = vpop.permute.xlu0 %1327
      %1329 = vrot.lane.b32.xlu0 %v1261, 24
      %v1330 = vpop.permute.xlu0 %1329
      %1331 = vrot.lane.b32.xlu0 %v1262, 24
      %v1332 = vpop.permute.xlu0 %1331
      %1333 = vrot.lane.b32.xlu0 %v1263, 24
      %v1334 = vpop.permute.xlu0 %1333
      %1335 = vrot.lane.b32.xlu0 %v1264, 24
      %v1336 = vpop.permute.xlu0 %1335
      %1337 = vrot.lane.b32.xlu0 %v1265, 24
      %v1338 = vpop.permute.xlu0 %1337
      %1339 = vrot.lane.b32.xlu0 %v1266, 24
      %v1340 = vpop.permute.xlu0 %1339
      %1341 = vrot.lane.b32.xlu0 %v1267, 24
      %v1342 = vpop.permute.xlu0 %1341
      %1343 = vrot.lane.b32.xlu0 %v1268, 24
      %v1344 = vpop.permute.xlu0 %1343
      %1345 = vrot.lane.b32.xlu0 %v1269, 24
      %v1346 = vpop.permute.xlu0 %1345
      %1347 = vrot.lane.b32.xlu0 %v1270, 24
      %v1348 = vpop.permute.xlu0 %1347
      %1349 = vrot.lane.b32.xlu0 %v1271, 24
      %v1350 = vpop.permute.xlu0 %1349
      %1351 = vrot.lane.b32.xlu0 %v1272, 24
      %v1352 = vpop.permute.xlu0 %1351
      %1353 = vrot.lane.b32.xlu0 %v1273, 24
      %v1354 = vpop.permute.xlu0 %1353
      %1355 = vrot.lane.b32.xlu0 %v1274, 24
      %v1356 = vpop.permute.xlu0 %1355
      %1357 = vrot.lane.b32.xlu0 %v1275, 24
      %v1358 = vpop.permute.xlu0 %1357
      %1359 = vrot.lane.b32.xlu0 %v1276, 24
      %v1360 = vpop.permute.xlu0 %1359
      %1361 = vrot.lane.b32.xlu0 %v1277, 24
      %v1362 = vpop.permute.xlu0 %1361
      %1363 = vrot.lane.b32.xlu0 %v1278, 24
      %v1364 = vpop.permute.xlu0 %1363
      %1365 = vrot.lane.b32.xlu0 %v1279, 24
      %v1366 = vpop.permute.xlu0 %1365
      %1367 = vrot.lane.b32.xlu0 %v1280, 24
      %v1368 = vpop.permute.xlu0 %1367
      %1369 = vrot.lane.b32.xlu0 %v1281, 24
      %v1370 = vpop.permute.xlu0 %1369
      %1371 = vrot.lane.b32.xlu0 %v1282, 24
      %v1372 = vpop.permute.xlu0 %1371
      %1373 = vrot.lane.b32.xlu0 %v1283, 24
      %v1374 = vpop.permute.xlu0 %1373
      %1375 = vrot.lane.b32.xlu0 %v1284, 24
      %v1376 = vpop.permute.xlu0 %1375
      %1377 = vrot.lane.b32.xlu0 %v1285, 24
      %v1378 = vpop.permute.xlu0 %1377
      %1379 = vrot.lane.b32.xlu0 %v1286, 24
      %v1380 = vpop.permute.xlu0 %1379
      %1381 = vrot.lane.b32.xlu0 %v1287, 24
      %v1382 = vpop.permute.xlu0 %1381
      %1383 = vrot.lane.b32.xlu0 %v1288, 24
      %v1384 = vpop.permute.xlu0 %1383
      %vm1417 = vcmask 228544
      %1418 = vst.msk [vmem:[#allocation2] sm:$0xff] %vm1417, %v1322
      %1419 = vst.msk [vmem:[#allocation2 + $0x8] sm:$0xff] %vm1417, %v1324
      %1420 = vst.msk [vmem:[#allocation2 + $0x10] sm:$0xff] %vm1417, %v1326
      %1421 = vst.msk [vmem:[#allocation2 + $0x18] sm:$0xff] %vm1417, %v1328
      %1422 = vst.msk [vmem:[#allocation2 + $0x20] sm:$0xff] %vm1417, %v1330
      %1423 = vst.msk [vmem:[#allocation2 + $0x28] sm:$0xff] %vm1417, %v1332
      %1424 = vst.msk [vmem:[#allocation2 + $0x30] sm:$0xff] %vm1417, %v1334
      %1425 = vst.msk [vmem:[#allocation2 + $0x38] sm:$0xff] %vm1417, %v1336
      %1426 = vst.msk [vmem:[#allocation2 + $0x40] sm:$0xff] %vm1417, %v1338
      %1427 = vst.msk [vmem:[#allocation2 + $0x48] sm:$0xff] %vm1417, %v1340
      %1428 = vst.msk [vmem:[#allocation2 + $0x50] sm:$0xff] %vm1417, %v1342
      %1429 = vst.msk [vmem:[#allocation2 + $0x58] sm:$0xff] %vm1417, %v1344
      %1430 = vst.msk [vmem:[#allocation2 + $0x60] sm:$0xff] %vm1417, %v1346
      %1431 = vst.msk [vmem:[#allocation2 + $0x68] sm:$0xff] %vm1417, %v1348
      %1432 = vst.msk [vmem:[#allocation2 + $0x70] sm:$0xff] %vm1417, %v1350
      %1433 = vst.msk [vmem:[#allocation2 + $0x78] sm:$0xff] %vm1417, %v1352
      %1434 = vst.msk [vmem:[#allocation2 + $0x80] sm:$0xff] %vm1417, %v1354
      %1435 = vst.msk [vmem:[#allocation2 + $0x88] sm:$0xff] %vm1417, %v1356
      %1436 = vst.msk [vmem:[#allocation2 + $0x90] sm:$0xff] %vm1417, %v1358
      %1437 = vst.msk [vmem:[#allocation2 + $0x98] sm:$0xff] %vm1417, %v1360
      %1438 = vst.msk [vmem:[#allocation2 + $0xa0] sm:$0xff] %vm1417, %v1362
      %1439 = vst.msk [vmem:[#allocation2 + $0xa8] sm:$0xff] %vm1417, %v1364
      %1440 = vst.msk [vmem:[#allocation2 + $0xb0] sm:$0xff] %vm1417, %v1366
      %1441 = vst.msk [vmem:[#allocation2 + $0xb8] sm:$0xff] %vm1417, %v1368
      %1442 = vst.msk [vmem:[#allocation2 + $0xc0] sm:$0xff] %vm1417, %v1370
      %1443 = vst.msk [vmem:[#allocation2 + $0xc8] sm:$0xff] %vm1417, %v1372
      %1444 = vst.msk [vmem:[#allocation2 + $0xd0] sm:$0xff] %vm1417, %v1374
      %1445 = vst.msk [vmem:[#allocation2 + $0xd8] sm:$0xff] %vm1417, %v1376
      %1446 = vst.msk [vmem:[#allocation2 + $0xe0] sm:$0xff] %vm1417, %v1378
      %1447 = vst.msk [vmem:[#allocation2 + $0xe8] sm:$0xff] %vm1417, %v1380
      %1448 = vst.msk [vmem:[#allocation2 + $0xf0] sm:$0xff] %vm1417, %v1382
      %1449 = vst.msk [vmem:[#allocation2 + $0xf8] sm:$0xff] %vm1417, %v1384
      %v1450 = vld [vmem:[%s1256 + $0x1] sm:$0xff]
      %v1451 = vld [vmem:[%s1256 + $0x9] sm:$0xff]
      %v1452 = vld [vmem:[%s1256 + $0x19] sm:$0xff]
      %v1453 = vld [vmem:[%s1256 + $0x21] sm:$0xff]
      %v1454 = vld [vmem:[%s1256 + $0x31] sm:$0xff]
      %v1455 = vld [vmem:[%s1256 + $0x39] sm:$0xff]
      %v1456 = vld [vmem:[%s1256 + $0x49] sm:$0xff]
      %v1457 = vld [vmem:[%s1256 + $0x51] sm:$0xff]
      %v1458 = vld [vmem:[%s1256 + $0x61] sm:$0xff]
      %v1459 = vld [vmem:[%s1256 + $0x69] sm:$0xff]
      %v1460 = vld [vmem:[%s1256 + $0x79] sm:$0xff]
      %v1461 = vld [vmem:[%s1256 + $0x81] sm:$0xff]
      %v1462 = vld [vmem:[%s1256 + $0x91] sm:$0xff]
      %v1463 = vld [vmem:[%s1256 + $0x99] sm:$0xff]
      %v1464 = vld [vmem:[%s1256 + $0xa9] sm:$0xff]
      %v1465 = vld [vmem:[%s1256 + $0xb1] sm:$0xff]
      %v1466 = vld [vmem:[%s1256 + $0xc1] sm:$0xff]
      %v1467 = vld [vmem:[%s1256 + $0xc9] sm:$0xff]
      %v1468 = vld [vmem:[%s1256 + $0xd9] sm:$0xff]
      %v1469 = vld [vmem:[%s1256 + $0xe1] sm:$0xff]
      %v1470 = vld [vmem:[%s1256 + $0xf1] sm:$0xff]
      %v1471 = vld [vmem:[%s1256 + $0xf9] sm:$0xff]
      %v1472 = vld [vmem:[%s1256 + $0x109] sm:$0xff]
      %v1473 = vld [vmem:[%s1256 + $0x111] sm:$0xff]
      %v1474 = vld [vmem:[%s1256 + $0x121] sm:$0xff]
      %v1475 = vld [vmem:[%s1256 + $0x129] sm:$0xff]
      %v1476 = vld [vmem:[%s1256 + $0x139] sm:$0xff]
      %v1477 = vld [vmem:[%s1256 + $0x141] sm:$0xff]
      %v1478 = vld [vmem:[%s1256 + $0x151] sm:$0xff]
      %v1479 = vld [vmem:[%s1256 + $0x159] sm:$0xff]
      %v1480 = vld [vmem:[%s1256 + $0x169] sm:$0xff]
      %v1481 = vld [vmem:[%s1256 + $0x171] sm:$0xff]
      %1514 = vrot.lane.b32.xlu0 %v1450, 28
      %v1515 = vpop.permute.xlu0 %1514
      %1516 = vrot.lane.b32.xlu0 %v1451, 28
      %v1517 = vpop.permute.xlu0 %1516
      %1518 = vrot.lane.b32.xlu0 %v1452, 28
      %v1519 = vpop.permute.xlu0 %1518
      %1520 = vrot.lane.b32.xlu0 %v1453, 28
      %v1521 = vpop.permute.xlu0 %1520
      %1522 = vrot.lane.b32.xlu0 %v1454, 28
      %v1523 = vpop.permute.xlu0 %1522
      %1524 = vrot.lane.b32.xlu0 %v1455, 28
      %v1525 = vpop.permute.xlu0 %1524
      %1526 = vrot.lane.b32.xlu0 %v1456, 28
      %v1527 = vpop.permute.xlu0 %1526
      %1528 = vrot.lane.b32.xlu0 %v1457, 28
      %v1529 = vpop.permute.xlu0 %1528
      %1530 = vrot.lane.b32.xlu0 %v1458, 28
      %v1531 = vpop.permute.xlu0 %1530
      %1532 = vrot.lane.b32.xlu0 %v1459, 28
      %v1533 = vpop.permute.xlu0 %1532
      %1534 = vrot.lane.b32.xlu0 %v1460, 28
      %v1535 = vpop.permute.xlu0 %1534
      %1536 = vrot.lane.b32.xlu0 %v1461, 28
      %v1537 = vpop.permute.xlu0 %1536
      %1538 = vrot.lane.b32.xlu0 %v1462, 28
      %v1539 = vpop.permute.xlu0 %1538
      %1540 = vrot.lane.b32.xlu0 %v1463, 28
      %v1541 = vpop.permute.xlu0 %1540
      %1542 = vrot.lane.b32.xlu0 %v1464, 28
      %v1543 = vpop.permute.xlu0 %1542
      %1544 = vrot.lane.b32.xlu0 %v1465, 28
      %v1545 = vpop.permute.xlu0 %1544
      %1546 = vrot.lane.b32.xlu0 %v1466, 28
      %v1547 = vpop.permute.xlu0 %1546
      %1548 = vrot.lane.b32.xlu0 %v1467, 28
      %v1549 = vpop.permute.xlu0 %1548
      %1550 = vrot.lane.b32.xlu0 %v1468, 28
      %v1551 = vpop.permute.xlu0 %1550
      %1552 = vrot.lane.b32.xlu0 %v1469, 28
      %v1553 = vpop.permute.xlu0 %1552
      %1554 = vrot.lane.b32.xlu0 %v1470, 28
      %v1555 = vpop.permute.xlu0 %1554
      %1556 = vrot.lane.b32.xlu0 %v1471, 28
      %v1557 = vpop.permute.xlu0 %1556
      %1558 = vrot.lane.b32.xlu0 %v1472, 28
      %v1559 = vpop.permute.xlu0 %1558
      %1560 = vrot.lane.b32.xlu0 %v1473, 28
      %v1561 = vpop.permute.xlu0 %1560
      %1562 = vrot.lane.b32.xlu0 %v1474, 28
      %v1563 = vpop.permute.xlu0 %1562
      %1564 = vrot.lane.b32.xlu0 %v1475, 28
      %v1565 = vpop.permute.xlu0 %1564
      %1566 = vrot.lane.b32.xlu0 %v1476, 28
      %v1567 = vpop.permute.xlu0 %1566
      %1568 = vrot.lane.b32.xlu0 %v1477, 28
      %v1569 = vpop.permute.xlu0 %1568
      %1570 = vrot.lane.b32.xlu0 %v1478, 28
      %v1571 = vpop.permute.xlu0 %1570
      %1572 = vrot.lane.b32.xlu0 %v1479, 28
      %v1573 = vpop.permute.xlu0 %1572
      %1574 = vrot.lane.b32.xlu0 %v1480, 28
      %v1575 = vpop.permute.xlu0 %1574
      %1576 = vrot.lane.b32.xlu0 %v1481, 28
      %v1577 = vpop.permute.xlu0 %1576
      %vm1610 = vcmask 261344
      %1611 = vst.msk [vmem:[#allocation2] sm:$0xff] %vm1610, %v1515
      %1612 = vst.msk [vmem:[#allocation2 + $0x8] sm:$0xff] %vm1610, %v1517
      %1613 = vst.msk [vmem:[#allocation2 + $0x10] sm:$0xff] %vm1610, %v1519
      %1614 = vst.msk [vmem:[#allocation2 + $0x18] sm:$0xff] %vm1610, %v1521
      %1615 = vst.msk [vmem:[#allocation2 + $0x20] sm:$0xff] %vm1610, %v1523
      %1616 = vst.msk [vmem:[#allocation2 + $0x28] sm:$0xff] %vm1610, %v1525
      %1617 = vst.msk [vmem:[#allocation2 + $0x30] sm:$0xff] %vm1610, %v1527
      %1618 = vst.msk [vmem:[#allocation2 + $0x38] sm:$0xff] %vm1610, %v1529
      %1619 = vst.msk [vmem:[#allocation2 + $0x40] sm:$0xff] %vm1610, %v1531
      %1620 = vst.msk [vmem:[#allocation2 + $0x48] sm:$0xff] %vm1610, %v1533
      %1621 = vst.msk [vmem:[#allocation2 + $0x50] sm:$0xff] %vm1610, %v1535
      %1622 = vst.msk [vmem:[#allocation2 + $0x58] sm:$0xff] %vm1610, %v1537
      %1623 = vst.msk [vmem:[#allocation2 + $0x60] sm:$0xff] %vm1610, %v1539
      %1624 = vst.msk [vmem:[#allocation2 + $0x68] sm:$0xff] %vm1610, %v1541
      %1625 = vst.msk [vmem:[#allocation2 + $0x70] sm:$0xff] %vm1610, %v1543
      %1626 = vst.msk [vmem:[#allocation2 + $0x78] sm:$0xff] %vm1610, %v1545
      %1627 = vst.msk [vmem:[#allocation2 + $0x80] sm:$0xff] %vm1610, %v1547
      %1628 = vst.msk [vmem:[#allocation2 + $0x88] sm:$0xff] %vm1610, %v1549
      %1629 = vst.msk [vmem:[#allocation2 + $0x90] sm:$0xff] %vm1610, %v1551
      %1630 = vst.msk [vmem:[#allocation2 + $0x98] sm:$0xff] %vm1610, %v1553
      %1631 = vst.msk [vmem:[#allocation2 + $0xa0] sm:$0xff] %vm1610, %v1555
      %1632 = vst.msk [vmem:[#allocation2 + $0xa8] sm:$0xff] %vm1610, %v1557
      %1633 = vst.msk [vmem:[#allocation2 + $0xb0] sm:$0xff] %vm1610, %v1559
      %1634 = vst.msk [vmem:[#allocation2 + $0xb8] sm:$0xff] %vm1610, %v1561
      %1635 = vst.msk [vmem:[#allocation2 + $0xc0] sm:$0xff] %vm1610, %v1563
      %1636 = vst.msk [vmem:[#allocation2 + $0xc8] sm:$0xff] %vm1610, %v1565
      %1637 = vst.msk [vmem:[#allocation2 + $0xd0] sm:$0xff] %vm1610, %v1567
      %1638 = vst.msk [vmem:[#allocation2 + $0xd8] sm:$0xff] %vm1610, %v1569
      %1639 = vst.msk [vmem:[#allocation2 + $0xe0] sm:$0xff] %vm1610, %v1571
      %1640 = vst.msk [vmem:[#allocation2 + $0xe8] sm:$0xff] %vm1610, %v1573
      %1641 = vst.msk [vmem:[#allocation2 + $0xf0] sm:$0xff] %vm1610, %v1575
      %1642 = vst.msk [vmem:[#allocation2 + $0xf8] sm:$0xff] %vm1610, %v1577
      %v1643 = vld [vmem:[%s1256 + $0x2] sm:$0xff]
      %v1644 = vld [vmem:[%s1256 + $0xa] sm:$0xff]
      %v1645 = vld [vmem:[%s1256 + $0x1a] sm:$0xff]
      %v1646 = vld [vmem:[%s1256 + $0x22] sm:$0xff]
      %v1647 = vld [vmem:[%s1256 + $0x32] sm:$0xff]
      %v1648 = vld [vmem:[%s1256 + $0x3a] sm:$0xff]
      %v1649 = vld [vmem:[%s1256 + $0x4a] sm:$0xff]
      %v1650 = vld [vmem:[%s1256 + $0x52] sm:$0xff]
      %v1651 = vld [vmem:[%s1256 + $0x62] sm:$0xff]
      %v1652 = vld [vmem:[%s1256 + $0x6a] sm:$0xff]
      %v1653 = vld [vmem:[%s1256 + $0x7a] sm:$0xff]
      %v1654 = vld [vmem:[%s1256 + $0x82] sm:$0xff]
      %v1655 = vld [vmem:[%s1256 + $0x92] sm:$0xff]
      %v1656 = vld [vmem:[%s1256 + $0x9a] sm:$0xff]
      %v1657 = vld [vmem:[%s1256 + $0xaa] sm:$0xff]
      %v1658 = vld [vmem:[%s1256 + $0xb2] sm:$0xff]
      %v1659 = vld [vmem:[%s1256 + $0xc2] sm:$0xff]
      %v1660 = vld [vmem:[%s1256 + $0xca] sm:$0xff]
      %v1661 = vld [vmem:[%s1256 + $0xda] sm:$0xff]
      %v1662 = vld [vmem:[%s1256 + $0xe2] sm:$0xff]
      %v1663 = vld [vmem:[%s1256 + $0xf2] sm:$0xff]
      %v1664 = vld [vmem:[%s1256 + $0xfa] sm:$0xff]
      %v1665 = vld [vmem:[%s1256 + $0x10a] sm:$0xff]
      %v1666 = vld [vmem:[%s1256 + $0x112] sm:$0xff]
      %v1667 = vld [vmem:[%s1256 + $0x122] sm:$0xff]
      %v1668 = vld [vmem:[%s1256 + $0x12a] sm:$0xff]
      %v1669 = vld [vmem:[%s1256 + $0x13a] sm:$0xff]
      %v1670 = vld [vmem:[%s1256 + $0x142] sm:$0xff]
      %v1671 = vld [vmem:[%s1256 + $0x152] sm:$0xff]
      %v1672 = vld [vmem:[%s1256 + $0x15a] sm:$0xff]
      %v1673 = vld [vmem:[%s1256 + $0x16a] sm:$0xff]
      %v1674 = vld [vmem:[%s1256 + $0x172] sm:$0xff]
      %1707 = vrot.lane.b32.xlu0 %v1643, 32
      %v1708 = vpop.permute.xlu0 %1707
      %1709 = vrot.lane.b32.xlu0 %v1644, 32
      %v1710 = vpop.permute.xlu0 %1709
      %1711 = vrot.lane.b32.xlu0 %v1645, 32
      %v1712 = vpop.permute.xlu0 %1711
      %1713 = vrot.lane.b32.xlu0 %v1646, 32
      %v1714 = vpop.permute.xlu0 %1713
      %1715 = vrot.lane.b32.xlu0 %v1647, 32
      %v1716 = vpop.permute.xlu0 %1715
      %1717 = vrot.lane.b32.xlu0 %v1648, 32
      %v1718 = vpop.permute.xlu0 %1717
      %1719 = vrot.lane.b32.xlu0 %v1649, 32
      %v1720 = vpop.permute.xlu0 %1719
      %1721 = vrot.lane.b32.xlu0 %v1650, 32
      %v1722 = vpop.permute.xlu0 %1721
      %1723 = vrot.lane.b32.xlu0 %v1651, 32
      %v1724 = vpop.permute.xlu0 %1723
      %1725 = vrot.lane.b32.xlu0 %v1652, 32
      %v1726 = vpop.permute.xlu0 %1725
      %1727 = vrot.lane.b32.xlu0 %v1653, 32
      %v1728 = vpop.permute.xlu0 %1727
      %1729 = vrot.lane.b32.xlu0 %v1654, 32
      %v1730 = vpop.permute.xlu0 %1729
      %1731 = vrot.lane.b32.xlu0 %v1655, 32
      %v1732 = vpop.permute.xlu0 %1731
      %1733 = vrot.lane.b32.xlu0 %v1656, 32
      %v1734 = vpop.permute.xlu0 %1733
      %1735 = vrot.lane.b32.xlu0 %v1657, 32
      %v1736 = vpop.permute.xlu0 %1735
      %1737 = vrot.lane.b32.xlu0 %v1658, 32
      %v1738 = vpop.permute.xlu0 %1737
      %1739 = vrot.lane.b32.xlu0 %v1659, 32
      %v1740 = vpop.permute.xlu0 %1739
      %1741 = vrot.lane.b32.xlu0 %v1660, 32
      %v1742 = vpop.permute.xlu0 %1741
      %1743 = vrot.lane.b32.xlu0 %v1661, 32
      %v1744 = vpop.permute.xlu0 %1743
      %1745 = vrot.lane.b32.xlu0 %v1662, 32
      %v1746 = vpop.permute.xlu0 %1745
      %1747 = vrot.lane.b32.xlu0 %v1663, 32
      %v1748 = vpop.permute.xlu0 %1747
      %1749 = vrot.lane.b32.xlu0 %v1664, 32
      %v1750 = vpop.permute.xlu0 %1749
      %1751 = vrot.lane.b32.xlu0 %v1665, 32
      %v1752 = vpop.permute.xlu0 %1751
      %1753 = vrot.lane.b32.xlu0 %v1666, 32
      %v1754 = vpop.permute.xlu0 %1753
      %1755 = vrot.lane.b32.xlu0 %v1667, 32
      %v1756 = vpop.permute.xlu0 %1755
      %1757 = vrot.lane.b32.xlu0 %v1668, 32
      %v1758 = vpop.permute.xlu0 %1757
      %1759 = vrot.lane.b32.xlu0 %v1669, 32
      %v1760 = vpop.permute.xlu0 %1759
      %1761 = vrot.lane.b32.xlu0 %v1670, 32
      %v1762 = vpop.permute.xlu0 %1761
      %1763 = vrot.lane.b32.xlu0 %v1671, 32
      %v1764 = vpop.permute.xlu0 %1763
      %1765 = vrot.lane.b32.xlu0 %v1672, 32
      %v1766 = vpop.permute.xlu0 %1765
      %1767 = vrot.lane.b32.xlu0 %v1673, 32
      %v1768 = vpop.permute.xlu0 %1767
      %1769 = vrot.lane.b32.xlu0 %v1674, 32
      %v1770 = vpop.permute.xlu0 %1769
      %vm1803 = vcmask 294144
      %1804 = vst.msk [vmem:[#allocation2] sm:$0xff] %vm1803, %v1708
      %1805 = vst.msk [vmem:[#allocation2 + $0x8] sm:$0xff] %vm1803, %v1710
      %1806 = vst.msk [vmem:[#allocation2 + $0x10] sm:$0xff] %vm1803, %v1712
      %1807 = vst.msk [vmem:[#allocation2 + $0x18] sm:$0xff] %vm1803, %v1714
      %1808 = vst.msk [vmem:[#allocation2 + $0x20] sm:$0xff] %vm1803, %v1716
      %1809 = vst.msk [vmem:[#allocation2 + $0x28] sm:$0xff] %vm1803, %v1718
      %1810 = vst.msk [vmem:[#allocation2 + $0x30] sm:$0xff] %vm1803, %v1720
      %1811 = vst.msk [vmem:[#allocation2 + $0x38] sm:$0xff] %vm1803, %v1722
      %1812 = vst.msk [vmem:[#allocation2 + $0x40] sm:$0xff] %vm1803, %v1724
      %1813 = vst.msk [vmem:[#allocation2 + $0x48] sm:$0xff] %vm1803, %v1726
      %1814 = vst.msk [vmem:[#allocation2 + $0x50] sm:$0xff] %vm1803, %v1728
      %1815 = vst.msk [vmem:[#allocation2 + $0x58] sm:$0xff] %vm1803, %v1730
      %1816 = vst.msk [vmem:[#allocation2 + $0x60] sm:$0xff] %vm1803, %v1732
      %1817 = vst.msk [vmem:[#allocation2 + $0x68] sm:$0xff] %vm1803, %v1734
      %1818 = vst.msk [vmem:[#allocation2 + $0x70] sm:$0xff] %vm1803, %v1736
      %1819 = vst.msk [vmem:[#allocation2 + $0x78] sm:$0xff] %vm1803, %v1738
      %1820 = vst.msk [vmem:[#allocation2 + $0x80] sm:$0xff] %vm1803, %v1740
      %1821 = vst.msk [vmem:[#allocation2 + $0x88] sm:$0xff] %vm1803, %v1742
      %1822 = vst.msk [vmem:[#allocation2 + $0x90] sm:$0xff] %vm1803, %v1744
      %1823 = vst.msk [vmem:[#allocation2 + $0x98] sm:$0xff] %vm1803, %v1746
      %1824 = vst.msk [vmem:[#allocation2 + $0xa0] sm:$0xff] %vm1803, %v1748
      %1825 = vst.msk [vmem:[#allocation2 + $0xa8] sm:$0xff] %vm1803, %v1750
      %1826 = vst.msk [vmem:[#allocation2 + $0xb0] sm:$0xff] %vm1803, %v1752
      %1827 = vst.msk [vmem:[#allocation2 + $0xb8] sm:$0xff] %vm1803, %v1754
      %1828 = vst.msk [vmem:[#allocation2 + $0xc0] sm:$0xff] %vm1803, %v1756
      %1829 = vst.msk [vmem:[#allocation2 + $0xc8] sm:$0xff] %vm1803, %v1758
      %1830 = vst.msk [vmem:[#allocation2 + $0xd0] sm:$0xff] %vm1803, %v1760
      %1831 = vst.msk [vmem:[#allocation2 + $0xd8] sm:$0xff] %vm1803, %v1762
      %1832 = vst.msk [vmem:[#allocation2 + $0xe0] sm:$0xff] %vm1803, %v1764
      %1833 = vst.msk [vmem:[#allocation2 + $0xe8] sm:$0xff] %vm1803, %v1766
      %1834 = vst.msk [vmem:[#allocation2 + $0xf0] sm:$0xff] %vm1803, %v1768
      %1835 = vst.msk [vmem:[#allocation2 + $0xf8] sm:$0xff] %vm1803, %v1770
      %v1836 = vld [vmem:[#allocation2] sm:$0xff]
      %v1837 = vld [vmem:[#allocation2 + $0x8] sm:$0xff]
      %v1838 = vld [vmem:[#allocation2 + $0x10] sm:$0xff]
      %v1839 = vld [vmem:[#allocation2 + $0x18] sm:$0xff]
      %v1840 = vld [vmem:[#allocation2 + $0x20] sm:$0xff]
      %v1841 = vld [vmem:[#allocation2 + $0x28] sm:$0xff]
      %v1842 = vld [vmem:[#allocation2 + $0x30] sm:$0xff]
      %v1843 = vld [vmem:[#allocation2 + $0x38] sm:$0xff]
      %v1844 = vld [vmem:[#allocation2 + $0x40] sm:$0xff]
      %v1845 = vld [vmem:[#allocation2 + $0x48] sm:$0xff]
      %v1846 = vld [vmem:[#allocation2 + $0x50] sm:$0xff]
      %v1847 = vld [vmem:[#allocation2 + $0x58] sm:$0xff]
      %v1848 = vld [vmem:[#allocation2 + $0x60] sm:$0xff]
      %v1849 = vld [vmem:[#allocation2 + $0x68] sm:$0xff]
      %v1850 = vld [vmem:[#allocation2 + $0x70] sm:$0xff]
      %v1851 = vld [vmem:[#allocation2 + $0x78] sm:$0xff]
      %v1852 = vld [vmem:[#allocation2 + $0x80] sm:$0xff]
      %v1853 = vld [vmem:[#allocation2 + $0x88] sm:$0xff]
      %v1854 = vld [vmem:[#allocation2 + $0x90] sm:$0xff]
      %v1855 = vld [vmem:[#allocation2 + $0x98] sm:$0xff]
      %v1856 = vld [vmem:[#allocation2 + $0xa0] sm:$0xff]
      %v1857 = vld [vmem:[#allocation2 + $0xa8] sm:$0xff]
      %v1858 = vld [vmem:[#allocation2 + $0xb0] sm:$0xff]
      %v1859 = vld [vmem:[#allocation2 + $0xb8] sm:$0xff]
      %v1860 = vld [vmem:[#allocation2 + $0xc0] sm:$0xff]
      %v1861 = vld [vmem:[#allocation2 + $0xc8] sm:$0xff]
      %v1862 = vld [vmem:[#allocation2 + $0xd0] sm:$0xff]
      %v1863 = vld [vmem:[#allocation2 + $0xd8] sm:$0xff]
      %v1864 = vld [vmem:[#allocation2 + $0xe0] sm:$0xff]
      %v1865 = vld [vmem:[#allocation2 + $0xe8] sm:$0xff]
      %v1866 = vld [vmem:[#allocation2 + $0xf0] sm:$0xff]
      %v1867 = vld [vmem:[#allocation2 + $0xf8] sm:$0xff]
      %v1868 = vld [vmem:[%s1] sm:$0xff]
      %v1869 = vld [vmem:[%s1 + $0x8] sm:$0xff]
      %v1870 = vld [vmem:[%s1 + $0x10] sm:$0xff]
      %v1871 = vld [vmem:[%s1 + $0x18] sm:$0xff]
      %v1872 = vld [vmem:[%s1 + $0x20] sm:$0xf]
      %v1873 = vld [vmem:[%s2] sm:$0x1]
      %v1875 = vlaneseq
      %v1876 = vshrl.u32 %v1875, 7
      %v1877 = vsub.s32 0, %v1876
      %v1878 = vrot.slane %v1873, %v1877
      %vm1880 = vcmask 293888
      %v1882 = vsel %vm1880, %v1836, 0
      %v1885 = vsel %vm1880, %v1837, 0
      %v1888 = vsel %vm1880, %v1838, 0
      %v1891 = vsel %vm1880, %v1839, 0
      %v1894 = vsel %vm1880, %v1840, 0
      %v1897 = vsel %vm1880, %v1841, 0
      %v1900 = vsel %vm1880, %v1842, 0
      %v1903 = vsel %vm1880, %v1843, 0
      %v1906 = vsel %vm1880, %v1844, 0
      %v1909 = vsel %vm1880, %v1845, 0
      %v1912 = vsel %vm1880, %v1846, 0
      %v1915 = vsel %vm1880, %v1847, 0
      %v1918 = vsel %vm1880, %v1848, 0
      %v1921 = vsel %vm1880, %v1849, 0
      %v1924 = vsel %vm1880, %v1850, 0
      %v1927 = vsel %vm1880, %v1851, 0
      %v1930 = vsel %vm1880, %v1852, 0
      %v1933 = vsel %vm1880, %v1853, 0
      %v1936 = vsel %vm1880, %v1854, 0
      %v1939 = vsel %vm1880, %v1855, 0
      %v1942 = vsel %vm1880, %v1856, 0
      %v1945 = vsel %vm1880, %v1857, 0
      %v1948 = vsel %vm1880, %v1858, 0
      %v1951 = vsel %vm1880, %v1859, 0
      %v1954 = vsel %vm1880, %v1860, 0
      %v1957 = vsel %vm1880, %v1861, 0
      %v1960 = vsel %vm1880, %v1862, 0
      %v1963 = vsel %vm1880, %v1863, 0
      %v1966 = vsel %vm1880, %v1864, 0
      %v1969 = vsel %vm1880, %v1865, 0
      %v1972 = vsel %vm1880, %v1866, 0
      %v1975 = vsel %vm1880, %v1867, 0
      %vm1977 = vcmask 1043456
      %v1979 = vsel %vm1977, %v1872, 0
      %1981 = vmatprep.subr.mxu0 0.0
      %1982 = vmatpush1.msra.mxu0 0.0
      %1983 = vmatprep.subr.mxu0 0.0
      %1984 = vmatpush1.msra.mxu0 0.0
      %1985 = vmatprep.subr.mxu0 0.0
      %1986 = vmatpush1.msra.mxu0 0.0
      %1987 = vmatprep.subr.mxu0 0.0
      %1988 = vmatpush1.msra.mxu0 0.0
      %1989 = vmatprep.subr.mxu0 0.0
      %1990 = vmatpush1.msra.mxu0 0.0
      %1991 = vmatprep.subr.mxu0 0.0
      %1992 = vmatpush1.msra.mxu0 0.0
      %1993 = vmatprep.subr.mxu0 0.0
      %1994 = vmatpush1.msra.mxu0 0.0
      %1995 = vmatprep.subr.mxu0 0.0
      %1996 = vmatpush1.msra.mxu0 0.0
      %1997 = vmatprep.subr.mxu0 0.0
      %1998 = vmatpush1.msra.mxu0 0.0
      %1999 = vmatprep.subr.mxu0 0.0
      %2000 = vmatpush1.msra.mxu0 0.0
      %2001 = vmatprep.subr.mxu0 0.0
      %2002 = vmatpush1.msra.mxu0 0.0
      %2003 = vmatprep.subr.mxu0 0.0
      %2004 = vmatpush1.msra.mxu0 %v1979
      %2005 = vmatprep.subr.mxu0 0.0
      %2006 = vmatpush1.msra.mxu0 %v1871
      %2007 = vmatprep.subr.mxu0 0.0
      %2008 = vmatpush1.msra.mxu0 %v1870
      %2009 = vmatprep.subr.mxu0 0.0
      %2010 = vmatpush1.msra.mxu0 %v1869
      %2011 = vmatprep.subr.mxu0 0.0
      %2012 = vmatpush1.msra.mxu0 %v1868
      %2013 = vmatprep.subr.mxu0 0.0
      %2014 = vmatpush2.msra.mxu0 0.0
      %2015 = vmatprep.subr.mxu0 0.0
      %2016 = vmatpush2.msra.mxu0 0.0
      %2017 = vmatprep.subr.mxu0 0.0
      %2018 = vmatpush2.msra.mxu0 0.0
      %2019 = vmatprep.subr.mxu0 0.0
      %2020 = vmatpush2.msra.mxu0 0.0
      %2021 = vmatprep.subr.mxu0 0.0
      %2022 = vmatpush2.msra.mxu0 0.0
      %2023 = vmatprep.subr.mxu0 0.0
      %2024 = vmatpush2.msra.mxu0 0.0
      %2025 = vmatprep.subr.mxu0 0.0
      %2026 = vmatpush2.msra.mxu0 0.0
      %2027 = vmatprep.subr.mxu0 0.0
      %2028 = vmatpush2.msra.mxu0 0.0
      %2029 = vmatprep.subr.mxu0 0.0
      %2030 = vmatpush2.msra.mxu0 0.0
      %2031 = vmatprep.subr.mxu0 0.0
      %2032 = vmatpush2.msra.mxu0 0.0
      %2033 = vmatprep.subr.mxu0 0.0
      %2034 = vmatpush2.msra.mxu0 0.0
      %2035 = vmatprep.subr.mxu0 0.0
      %2036 = vmatpush2.msra.mxu0 0.0
      %2037 = vmatprep.subr.mxu0 0.0
      %2038 = vmatpush2.msra.mxu0 0.0
      %2039 = vmatprep.subr.mxu0 0.0
      %2040 = vmatpush2.msra.mxu0 0.0
      %2041 = vmatprep.subr.mxu0 0.0
      %2042 = vmatpush2.msra.mxu0 0.0
      %2043 = vmatprep.subr.mxu0 0.0
      %2044 = vmatpush2.msra.mxu0 0.0
      %2045 = vmatprep.mubr.f32.mxu0 0.0
      %2046 = vmatmul.mubr.f32.gmra.mxu0 %v1882
      %v2047 = vpop.f32.mrf.mxu0
      %v2048 = vadd.f32 %v1878, %v2047
      %v2049 = vpop.f32.mrf.mxu0
      %2050 = vmatprep.mubr.f32.mxu0 0.0
      %2051 = vmatmul.mubr.f32.gmra.mxu0 %v1885
      %v2052 = vpop.f32.mrf.mxu0
      %v2053 = vadd.f32 %v1878, %v2052
      %v2054 = vpop.f32.mrf.mxu0
      %2055 = vmatprep.mubr.f32.mxu0 0.0
      %2056 = vmatmul.mubr.f32.gmra.mxu0 %v1888
      %v2057 = vpop.f32.mrf.mxu0
      %v2058 = vadd.f32 %v1878, %v2057
      %v2059 = vpop.f32.mrf.mxu0
      %2060 = vmatprep.mubr.f32.mxu0 0.0
      %2061 = vmatmul.mubr.f32.gmra.mxu0 %v1891
      %v2062 = vpop.f32.mrf.mxu0
      %v2063 = vadd.f32 %v1878, %v2062
      %v2064 = vpop.f32.mrf.mxu0
      %2065 = vmatprep.mubr.f32.mxu0 0.0
      %2066 = vmatmul.mubr.f32.gmra.mxu0 %v1894
      %v2067 = vpop.f32.mrf.mxu0
      %v2068 = vadd.f32 %v1878, %v2067
      %v2069 = vpop.f32.mrf.mxu0
      %2070 = vmatprep.mubr.f32.mxu0 0.0
      %2071 = vmatmul.mubr.f32.gmra.mxu0 %v1897
      %v2072 = vpop.f32.mrf.mxu0
      %v2073 = vadd.f32 %v1878, %v2072
      %v2074 = vpop.f32.mrf.mxu0
      %2075 = vmatprep.mubr.f32.mxu0 0.0
      %2076 = vmatmul.mubr.f32.gmra.mxu0 %v1900
      %v2077 = vpop.f32.mrf.mxu0
      %v2078 = vadd.f32 %v1878, %v2077
      %v2079 = vpop.f32.mrf.mxu0
      %2080 = vmatprep.mubr.f32.mxu0 0.0
      %2081 = vmatmul.mubr.f32.gmra.mxu0 %v1903
      %v2082 = vpop.f32.mrf.mxu0
      %v2083 = vadd.f32 %v1878, %v2082
      %v2084 = vpop.f32.mrf.mxu0
      %2085 = vmatprep.mubr.f32.mxu0 0.0
      %2086 = vmatmul.mubr.f32.gmra.mxu0 %v1906
      %v2087 = vpop.f32.mrf.mxu0
      %v2088 = vadd.f32 %v1878, %v2087
      %v2089 = vpop.f32.mrf.mxu0
      %2090 = vmatprep.mubr.f32.mxu0 0.0
      %2091 = vmatmul.mubr.f32.gmra.mxu0 %v1909
      %v2092 = vpop.f32.mrf.mxu0
      %v2093 = vadd.f32 %v1878, %v2092
      %v2094 = vpop.f32.mrf.mxu0
      %2095 = vmatprep.mubr.f32.mxu0 0.0
      %2096 = vmatmul.mubr.f32.gmra.mxu0 %v1912
      %v2097 = vpop.f32.mrf.mxu0
      %v2098 = vadd.f32 %v1878, %v2097
      %v2099 = vpop.f32.mrf.mxu0
      %2100 = vmatprep.mubr.f32.mxu0 0.0
      %2101 = vmatmul.mubr.f32.gmra.mxu0 %v1915
      %v2102 = vpop.f32.mrf.mxu0
      %v2103 = vadd.f32 %v1878, %v2102
      %v2104 = vpop.f32.mrf.mxu0
      %2105 = vmatprep.mubr.f32.mxu0 0.0
      %2106 = vmatmul.mubr.f32.gmra.mxu0 %v1918
      %v2107 = vpop.f32.mrf.mxu0
      %v2108 = vadd.f32 %v1878, %v2107
      %v2109 = vpop.f32.mrf.mxu0
      %2110 = vmatprep.mubr.f32.mxu0 0.0
      %2111 = vmatmul.mubr.f32.gmra.mxu0 %v1921
      %v2112 = vpop.f32.mrf.mxu0
      %v2113 = vadd.f32 %v1878, %v2112
      %v2114 = vpop.f32.mrf.mxu0
      %2115 = vmatprep.mubr.f32.mxu0 0.0
      %2116 = vmatmul.mubr.f32.gmra.mxu0 %v1924
      %v2117 = vpop.f32.mrf.mxu0
      %v2118 = vadd.f32 %v1878, %v2117
      %v2119 = vpop.f32.mrf.mxu0
      %2120 = vmatprep.mubr.f32.mxu0 0.0
      %2121 = vmatmul.mubr.f32.gmra.mxu0 %v1927
      %v2122 = vpop.f32.mrf.mxu0
      %v2123 = vadd.f32 %v1878, %v2122
      %v2124 = vpop.f32.mrf.mxu0
      %2125 = vmatprep.mubr.f32.mxu0 0.0
      %2126 = vmatmul.mubr.f32.gmra.mxu0 %v1930
      %v2127 = vpop.f32.mrf.mxu0
      %v2128 = vadd.f32 %v1878, %v2127
      %v2129 = vpop.f32.mrf.mxu0
      %2130 = vmatprep.mubr.f32.mxu0 0.0
      %2131 = vmatmul.mubr.f32.gmra.mxu0 %v1933
      %v2132 = vpop.f32.mrf.mxu0
      %v2133 = vadd.f32 %v1878, %v2132
      %v2134 = vpop.f32.mrf.mxu0
      %2135 = vmatprep.mubr.f32.mxu0 0.0
      %2136 = vmatmul.mubr.f32.gmra.mxu0 %v1936
      %v2137 = vpop.f32.mrf.mxu0
      %v2138 = vadd.f32 %v1878, %v2137
      %v2139 = vpop.f32.mrf.mxu0
      %2140 = vmatprep.mubr.f32.mxu0 0.0
      %2141 = vmatmul.mubr.f32.gmra.mxu0 %v1939
      %v2142 = vpop.f32.mrf.mxu0
      %v2143 = vadd.f32 %v1878, %v2142
      %v2144 = vpop.f32.mrf.mxu0
      %2145 = vmatprep.mubr.f32.mxu0 0.0
      %2146 = vmatmul.mubr.f32.gmra.mxu0 %v1942
      %v2147 = vpop.f32.mrf.mxu0
      %v2148 = vadd.f32 %v1878, %v2147
      %v2149 = vpop.f32.mrf.mxu0
      %2150 = vmatprep.mubr.f32.mxu0 0.0
      %2151 = vmatmul.mubr.f32.gmra.mxu0 %v1945
      %v2152 = vpop.f32.mrf.mxu0
      %v2153 = vadd.f32 %v1878, %v2152
      %v2154 = vpop.f32.mrf.mxu0
      %2155 = vmatprep.mubr.f32.mxu0 0.0
      %2156 = vmatmul.mubr.f32.gmra.mxu0 %v1948
      %v2157 = vpop.f32.mrf.mxu0
      %v2158 = vadd.f32 %v1878, %v2157
      %v2159 = vpop.f32.mrf.mxu0
      %2160 = vmatprep.mubr.f32.mxu0 0.0
      %2161 = vmatmul.mubr.f32.gmra.mxu0 %v1951
      %v2162 = vpop.f32.mrf.mxu0
      %v2163 = vadd.f32 %v1878, %v2162
      %v2164 = vpop.f32.mrf.mxu0
      %2165 = vmatprep.mubr.f32.mxu0 0.0
      %2166 = vmatmul.mubr.f32.gmra.mxu0 %v1954
      %v2167 = vpop.f32.mrf.mxu0
      %v2168 = vadd.f32 %v1878, %v2167
      %v2169 = vpop.f32.mrf.mxu0
      %2170 = vmatprep.mubr.f32.mxu0 0.0
      %2171 = vmatmul.mubr.f32.gmra.mxu0 %v1957
      %v2172 = vpop.f32.mrf.mxu0
      %v2173 = vadd.f32 %v1878, %v2172
      %v2174 = vpop.f32.mrf.mxu0
      %2175 = vmatprep.mubr.f32.mxu0 0.0
      %2176 = vmatmul.mubr.f32.gmra.mxu0 %v1960
      %v2177 = vpop.f32.mrf.mxu0
      %v2178 = vadd.f32 %v1878, %v2177
      %v2179 = vpop.f32.mrf.mxu0
      %2180 = vmatprep.mubr.f32.mxu0 0.0
      %2181 = vmatmul.mubr.f32.gmra.mxu0 %v1963
      %v2182 = vpop.f32.mrf.mxu0
      %v2183 = vadd.f32 %v1878, %v2182
      %v2184 = vpop.f32.mrf.mxu0
      %2185 = vmatprep.mubr.f32.mxu0 0.0
      %2186 = vmatmul.mubr.f32.gmra.mxu0 %v1966
      %v2187 = vpop.f32.mrf.mxu0
      %v2188 = vadd.f32 %v1878, %v2187
      %v2189 = vpop.f32.mrf.mxu0
      %2190 = vmatprep.mubr.f32.mxu0 0.0
      %2191 = vmatmul.mubr.f32.gmra.mxu0 %v1969
      %v2192 = vpop.f32.mrf.mxu0
      %v2193 = vadd.f32 %v1878, %v2192
      %v2194 = vpop.f32.mrf.mxu0
      %2195 = vmatprep.mubr.f32.mxu0 0.0
      %2196 = vmatmul.mubr.f32.gmra.mxu0 %v1972
      %v2197 = vpop.f32.mrf.mxu0
      %v2198 = vadd.f32 %v1878, %v2197
      %v2199 = vpop.f32.mrf.mxu0
      %2200 = vmatprep.mubr.f32.mxu0 0.0
      %2201 = vmatmul.mubr.f32.gmra.mxu0 %v1975
      %v2202 = vpop.f32.mrf.mxu0
      %v2203 = vadd.f32 %v1878, %v2202
      %v2204 = vpop.f32.mrf.mxu0
      %2205 = vdwg.mxu0
      %v2206 = vmul.f32 %v2048, %v2048
      %v2207 = vmul.f32 %v2053, %v2053
      %v2208 = vmul.f32 %v2058, %v2058
      %v2209 = vmul.f32 %v2063, %v2063
      %v2210 = vmul.f32 %v2068, %v2068
      %v2211 = vmul.f32 %v2073, %v2073
      %v2212 = vmul.f32 %v2078, %v2078
      %v2213 = vmul.f32 %v2083, %v2083
      %v2214 = vmul.f32 %v2088, %v2088
      %v2215 = vmul.f32 %v2093, %v2093
      %v2216 = vmul.f32 %v2098, %v2098
      %v2217 = vmul.f32 %v2103, %v2103
      %v2218 = vmul.f32 %v2108, %v2108
      %v2219 = vmul.f32 %v2113, %v2113
      %v2220 = vmul.f32 %v2118, %v2118
      %v2221 = vmul.f32 %v2123, %v2123
      %v2222 = vmul.f32 %v2128, %v2128
      %v2223 = vmul.f32 %v2133, %v2133
      %v2224 = vmul.f32 %v2138, %v2138
      %v2225 = vmul.f32 %v2143, %v2143
      %v2226 = vmul.f32 %v2148, %v2148
      %v2227 = vmul.f32 %v2153, %v2153
      %v2228 = vmul.f32 %v2158, %v2158
      %v2229 = vmul.f32 %v2163, %v2163
      %v2230 = vmul.f32 %v2168, %v2168
      %v2231 = vmul.f32 %v2173, %v2173
      %v2232 = vmul.f32 %v2178, %v2178
      %v2233 = vmul.f32 %v2183, %v2183
      %v2234 = vmul.f32 %v2188, %v2188
      %v2235 = vmul.f32 %v2193, %v2193
      %v2236 = vmul.f32 %v2198, %v2198
      %v2237 = vmul.f32 %v2203, %v2203
      %2238 = vadd.xlane.f32.xlu0 %v2206
      %v2239 = vpop.xlane.xlu0 %2238
      %2240 = vadd.xlane.f32.xlu0 %v2207
      %v2241 = vpop.xlane.xlu0 %2240
      %2242 = vadd.xlane.f32.xlu0 %v2208
      %v2243 = vpop.xlane.xlu0 %2242
      %2244 = vadd.xlane.f32.xlu0 %v2209
      %v2245 = vpop.xlane.xlu0 %2244
      %2246 = vadd.xlane.f32.xlu0 %v2210
      %v2247 = vpop.xlane.xlu0 %2246
      %2248 = vadd.xlane.f32.xlu0 %v2211
      %v2249 = vpop.xlane.xlu0 %2248
      %2250 = vadd.xlane.f32.xlu0 %v2212
      %v2251 = vpop.xlane.xlu0 %2250
      %2252 = vadd.xlane.f32.xlu0 %v2213
      %v2253 = vpop.xlane.xlu0 %2252
      %2254 = vadd.xlane.f32.xlu0 %v2214
      %v2255 = vpop.xlane.xlu0 %2254
      %2256 = vadd.xlane.f32.xlu0 %v2215
      %v2257 = vpop.xlane.xlu0 %2256
      %2258 = vadd.xlane.f32.xlu0 %v2216
      %v2259 = vpop.xlane.xlu0 %2258
      %2260 = vadd.xlane.f32.xlu0 %v2217
      %v2261 = vpop.xlane.xlu0 %2260
      %2262 = vadd.xlane.f32.xlu0 %v2218
      %v2263 = vpop.xlane.xlu0 %2262
      %2264 = vadd.xlane.f32.xlu0 %v2219
      %v2265 = vpop.xlane.xlu0 %2264
      %2266 = vadd.xlane.f32.xlu0 %v2220
      %v2267 = vpop.xlane.xlu0 %2266
      %2268 = vadd.xlane.f32.xlu0 %v2221
      %v2269 = vpop.xlane.xlu0 %2268
      %2270 = vadd.xlane.f32.xlu0 %v2222
      %v2271 = vpop.xlane.xlu0 %2270
      %2272 = vadd.xlane.f32.xlu0 %v2223
      %v2273 = vpop.xlane.xlu0 %2272
      %2274 = vadd.xlane.f32.xlu0 %v2224
      %v2275 = vpop.xlane.xlu0 %2274
      %2276 = vadd.xlane.f32.xlu0 %v2225
      %v2277 = vpop.xlane.xlu0 %2276
      %2278 = vadd.xlane.f32.xlu0 %v2226
      %v2279 = vpop.xlane.xlu0 %2278
      %2280 = vadd.xlane.f32.xlu0 %v2227
      %v2281 = vpop.xlane.xlu0 %2280
      %2282 = vadd.xlane.f32.xlu0 %v2228
      %v2283 = vpop.xlane.xlu0 %2282
      %2284 = vadd.xlane.f32.xlu0 %v2229
      %v2285 = vpop.xlane.xlu0 %2284
      %2286 = vadd.xlane.f32.xlu0 %v2230
      %v2287 = vpop.xlane.xlu0 %2286
      %2288 = vadd.xlane.f32.xlu0 %v2231
      %v2289 = vpop.xlane.xlu0 %2288
      %2290 = vadd.xlane.f32.xlu0 %v2232
      %v2291 = vpop.xlane.xlu0 %2290
      %2292 = vadd.xlane.f32.xlu0 %v2233
      %v2293 = vpop.xlane.xlu0 %2292
      %2294 = vadd.xlane.f32.xlu0 %v2234
      %v2295 = vpop.xlane.xlu0 %2294
      %2296 = vadd.xlane.f32.xlu0 %v2235
      %v2297 = vpop.xlane.xlu0 %2296
      %2298 = vadd.xlane.f32.xlu0 %v2236
      %v2299 = vpop.xlane.xlu0 %2298
      %2300 = vadd.xlane.f32.xlu0 %v2237
      %v2301 = vpop.xlane.xlu0 %2300
      %v2302 = vmul.f32 %v2239, 0.125
      %v2303 = vmul.f32 %v2241, 0.125
      %v2304 = vmul.f32 %v2243, 0.125
      %v2305 = vmul.f32 %v2245, 0.125
      %v2306 = vmul.f32 %v2247, 0.125
      %v2307 = vmul.f32 %v2249, 0.125
      %v2308 = vmul.f32 %v2251, 0.125
      %v2309 = vmul.f32 %v2253, 0.125
      %v2310 = vmul.f32 %v2255, 0.125
      %v2311 = vmul.f32 %v2257, 0.125
      %v2312 = vmul.f32 %v2259, 0.125
      %v2313 = vmul.f32 %v2261, 0.125
      %v2314 = vmul.f32 %v2263, 0.125
      %v2315 = vmul.f32 %v2265, 0.125
      %v2316 = vmul.f32 %v2267, 0.125
      %v2317 = vmul.f32 %v2269, 0.125
      %v2318 = vmul.f32 %v2271, 0.125
      %v2319 = vmul.f32 %v2273, 0.125
      %v2320 = vmul.f32 %v2275, 0.125
      %v2321 = vmul.f32 %v2277, 0.125
      %v2322 = vmul.f32 %v2279, 0.125
      %v2323 = vmul.f32 %v2281, 0.125
      %v2324 = vmul.f32 %v2283, 0.125
      %v2325 = vmul.f32 %v2285, 0.125
      %v2326 = vmul.f32 %v2287, 0.125
      %v2327 = vmul.f32 %v2289, 0.125
      %v2328 = vmul.f32 %v2291, 0.125
      %v2329 = vmul.f32 %v2293, 0.125
      %v2330 = vmul.f32 %v2295, 0.125
      %v2331 = vmul.f32 %v2297, 0.125
      %v2332 = vmul.f32 %v2299, 0.125
      %v2333 = vmul.f32 %v2301, 0.125
      %v2334 = vadd.f32 %v2302, 1e-08
      %v2335 = vadd.f32 %v2303, 1e-08
      %v2336 = vadd.f32 %v2304, 1e-08
      %v2337 = vadd.f32 %v2305, 1e-08
      %v2338 = vadd.f32 %v2306, 1e-08
      %v2339 = vadd.f32 %v2307, 1e-08
      %v2340 = vadd.f32 %v2308, 1e-08
      %v2341 = vadd.f32 %v2309, 1e-08
      %v2342 = vadd.f32 %v2310, 1e-08
      %v2343 = vadd.f32 %v2311, 1e-08
      %v2344 = vadd.f32 %v2312, 1e-08
      %v2345 = vadd.f32 %v2313, 1e-08
      %v2346 = vadd.f32 %v2314, 1e-08
      %v2347 = vadd.f32 %v2315, 1e-08
      %v2348 = vadd.f32 %v2316, 1e-08
      %v2349 = vadd.f32 %v2317, 1e-08
      %v2350 = vadd.f32 %v2318, 1e-08
      %v2351 = vadd.f32 %v2319, 1e-08
      %v2352 = vadd.f32 %v2320, 1e-08
      %v2353 = vadd.f32 %v2321, 1e-08
      %v2354 = vadd.f32 %v2322, 1e-08
      %v2355 = vadd.f32 %v2323, 1e-08
      %v2356 = vadd.f32 %v2324, 1e-08
      %v2357 = vadd.f32 %v2325, 1e-08
      %v2358 = vadd.f32 %v2326, 1e-08
      %v2359 = vadd.f32 %v2327, 1e-08
      %v2360 = vadd.f32 %v2328, 1e-08
      %v2361 = vadd.f32 %v2329, 1e-08
      %v2362 = vadd.f32 %v2330, 1e-08
      %v2363 = vadd.f32 %v2331, 1e-08
      %v2364 = vadd.f32 %v2332, 1e-08
      %v2365 = vadd.f32 %v2333, 1e-08
      %v2366 = vrsqrt.pop %v2334
      %v2367 = vrsqrt.pop %v2335
      %v2368 = vrsqrt.pop %v2336
      %v2369 = vrsqrt.pop %v2337
      %v2370 = vrsqrt.pop %v2338
      %v2371 = vrsqrt.pop %v2339
      %v2372 = vrsqrt.pop %v2340
      %v2373 = vrsqrt.pop %v2341
      %v2374 = vrsqrt.pop %v2342
      %v2375 = vrsqrt.pop %v2343
      %v2376 = vrsqrt.pop %v2344
      %v2377 = vrsqrt.pop %v2345
      %v2378 = vrsqrt.pop %v2346
      %v2379 = vrsqrt.pop %v2347
      %v2380 = vrsqrt.pop %v2348
      %v2381 = vrsqrt.pop %v2349
      %v2382 = vrsqrt.pop %v2350
      %v2383 = vrsqrt.pop %v2351
      %v2384 = vrsqrt.pop %v2352
      %v2385 = vrsqrt.pop %v2353
      %v2386 = vrsqrt.pop %v2354
      %v2387 = vrsqrt.pop %v2355
      %v2388 = vrsqrt.pop %v2356
      %v2389 = vrsqrt.pop %v2357
      %v2390 = vrsqrt.pop %v2358
      %v2391 = vrsqrt.pop %v2359
      %v2392 = vrsqrt.pop %v2360
      %v2393 = vrsqrt.pop %v2361
      %v2394 = vrsqrt.pop %v2362
      %v2395 = vrsqrt.pop %v2363
      %v2396 = vrsqrt.pop %v2364
      %v2397 = vrsqrt.pop %v2365
      %v2398 = vmul.f32 %v2048, %v2366
      %v2399 = vmul.f32 %v2053, %v2367
      %v2400 = vmul.f32 %v2058, %v2368
      %v2401 = vmul.f32 %v2063, %v2369
      %v2402 = vmul.f32 %v2068, %v2370
      %v2403 = vmul.f32 %v2073, %v2371
      %v2404 = vmul.f32 %v2078, %v2372
      %v2405 = vmul.f32 %v2083, %v2373
      %v2406 = vmul.f32 %v2088, %v2374
      %v2407 = vmul.f32 %v2093, %v2375
      %v2408 = vmul.f32 %v2098, %v2376
      %v2409 = vmul.f32 %v2103, %v2377
      %v2410 = vmul.f32 %v2108, %v2378
      %v2411 = vmul.f32 %v2113, %v2379
      %v2412 = vmul.f32 %v2118, %v2380
      %v2413 = vmul.f32 %v2123, %v2381
      %v2414 = vmul.f32 %v2128, %v2382
      %v2415 = vmul.f32 %v2133, %v2383
      %v2416 = vmul.f32 %v2138, %v2384
      %v2417 = vmul.f32 %v2143, %v2385
      %v2418 = vmul.f32 %v2148, %v2386
      %v2419 = vmul.f32 %v2153, %v2387
      %v2420 = vmul.f32 %v2158, %v2388
      %v2421 = vmul.f32 %v2163, %v2389
      %v2422 = vmul.f32 %v2168, %v2390
      %v2423 = vmul.f32 %v2173, %v2391
      %v2424 = vmul.f32 %v2178, %v2392
      %v2425 = vmul.f32 %v2183, %v2393
      %v2426 = vmul.f32 %v2188, %v2394
      %v2427 = vmul.f32 %v2193, %v2395
      %v2428 = vmul.f32 %v2198, %v2396
      %v2429 = vmul.f32 %v2203, %v2397
      %vm2430 = vcmp.gt.f32.partialorder %v2398, 0.0
      %vm2431 = vcmp.gt.f32.partialorder %v2399, 0.0
      %vm2432 = vcmp.gt.f32.partialorder %v2400, 0.0
      %vm2433 = vcmp.gt.f32.partialorder %v2401, 0.0
      %vm2434 = vcmp.gt.f32.partialorder %v2402, 0.0
      %vm2435 = vcmp.gt.f32.partialorder %v2403, 0.0
      %vm2436 = vcmp.gt.f32.partialorder %v2404, 0.0
      %vm2437 = vcmp.gt.f32.partialorder %v2405, 0.0
      %vm2438 = vcmp.gt.f32.partialorder %v2406, 0.0
      %vm2439 = vcmp.gt.f32.partialorder %v2407, 0.0
      %vm2440 = vcmp.gt.f32.partialorder %v2408, 0.0
      %vm2441 = vcmp.gt.f32.partialorder %v2409, 0.0
      %vm2442 = vcmp.gt.f32.partialorder %v2410, 0.0
      %vm2443 = vcmp.gt.f32.partialorder %v2411, 0.0
      %vm2444 = vcmp.gt.f32.partialorder %v2412, 0.0
      %vm2445 = vcmp.gt.f32.partialorder %v2413, 0.0
      %vm2446 = vcmp.gt.f32.partialorder %v2414, 0.0
      %vm2447 = vcmp.gt.f32.partialorder %v2415, 0.0
      %vm2448 = vcmp.gt.f32.partialorder %v2416, 0.0
      %vm2449 = vcmp.gt.f32.partialorder %v2417, 0.0
      %vm2450 = vcmp.gt.f32.partialorder %v2418, 0.0
      %vm2451 = vcmp.gt.f32.partialorder %v2419, 0.0
      %vm2452 = vcmp.gt.f32.partialorder %v2420, 0.0
      %vm2453 = vcmp.gt.f32.partialorder %v2421, 0.0
      %vm2454 = vcmp.gt.f32.partialorder %v2422, 0.0
      %vm2455 = vcmp.gt.f32.partialorder %v2423, 0.0
      %vm2456 = vcmp.gt.f32.partialorder %v2424, 0.0
      %vm2457 = vcmp.gt.f32.partialorder %v2425, 0.0
      %vm2458 = vcmp.gt.f32.partialorder %v2426, 0.0
      %vm2459 = vcmp.gt.f32.partialorder %v2427, 0.0
      %vm2460 = vcmp.gt.f32.partialorder %v2428, 0.0
      %vm2461 = vcmp.gt.f32.partialorder %v2429, 0.0
      %v2462 = vmul.f32 %v2398, 0.1
      %v2463 = vmul.f32 %v2399, 0.1
      %v2464 = vmul.f32 %v2400, 0.1
      %v2465 = vmul.f32 %v2401, 0.1
      %v2466 = vmul.f32 %v2402, 0.1
      %v2467 = vmul.f32 %v2403, 0.1
      %v2468 = vmul.f32 %v2404, 0.1
      %v2469 = vmul.f32 %v2405, 0.1
      %v2470 = vmul.f32 %v2406, 0.1
      %v2471 = vmul.f32 %v2407, 0.1
      %v2472 = vmul.f32 %v2408, 0.1
      %v2473 = vmul.f32 %v2409, 0.1
      %v2474 = vmul.f32 %v2410, 0.1
      %v2475 = vmul.f32 %v2411, 0.1
      %v2476 = vmul.f32 %v2412, 0.1
      %v2477 = vmul.f32 %v2413, 0.1
      %v2478 = vmul.f32 %v2414, 0.1
      %v2479 = vmul.f32 %v2415, 0.1
      %v2480 = vmul.f32 %v2416, 0.1
      %v2481 = vmul.f32 %v2417, 0.1
      %v2482 = vmul.f32 %v2418, 0.1
      %v2483 = vmul.f32 %v2419, 0.1
      %v2484 = vmul.f32 %v2420, 0.1
      %v2485 = vmul.f32 %v2421, 0.1
      %v2486 = vmul.f32 %v2422, 0.1
      %v2487 = vmul.f32 %v2423, 0.1
      %v2488 = vmul.f32 %v2424, 0.1
      %v2489 = vmul.f32 %v2425, 0.1
      %v2490 = vmul.f32 %v2426, 0.1
      %v2491 = vmul.f32 %v2427, 0.1
      %v2492 = vmul.f32 %v2428, 0.1
      %v2493 = vmul.f32 %v2429, 0.1
      %v2494 = vsel %vm2430, %v2398, %v2462
      %v2495 = vsel %vm2431, %v2399, %v2463
      %v2496 = vsel %vm2432, %v2400, %v2464
      %v2497 = vsel %vm2433, %v2401, %v2465
      %v2498 = vsel %vm2434, %v2402, %v2466
      %v2499 = vsel %vm2435, %v2403, %v2467
      %v2500 = vsel %vm2436, %v2404, %v2468
      %v2501 = vsel %vm2437, %v2405, %v2469
      %v2502 = vsel %vm2438, %v2406, %v2470
      %v2503 = vsel %vm2439, %v2407, %v2471
      %v2504 = vsel %vm2440, %v2408, %v2472
      %v2505 = vsel %vm2441, %v2409, %v2473
      %v2506 = vsel %vm2442, %v2410, %v2474
      %v2507 = vsel %vm2443, %v2411, %v2475
      %v2508 = vsel %vm2444, %v2412, %v2476
      %v2509 = vsel %vm2445, %v2413, %v2477
      %v2510 = vsel %vm2446, %v2414, %v2478
      %v2511 = vsel %vm2447, %v2415, %v2479
      %v2512 = vsel %vm2448, %v2416, %v2480
      %v2513 = vsel %vm2449, %v2417, %v2481
      %v2514 = vsel %vm2450, %v2418, %v2482
      %v2515 = vsel %vm2451, %v2419, %v2483
      %v2516 = vsel %vm2452, %v2420, %v2484
      %v2517 = vsel %vm2453, %v2421, %v2485
      %v2518 = vsel %vm2454, %v2422, %v2486
      %v2519 = vsel %vm2455, %v2423, %v2487
      %v2520 = vsel %vm2456, %v2424, %v2488
      %v2521 = vsel %vm2457, %v2425, %v2489
      %v2522 = vsel %vm2458, %v2426, %v2490
      %v2523 = vsel %vm2459, %v2427, %v2491
      %v2524 = vsel %vm2460, %v2428, %v2492
      %v2525 = vsel %vm2461, %v2429, %v2493
      %2526 = vst [vmem:[#allocation3] sm:$0xff] 0.0
      %2527 = vst [vmem:[#allocation3 + $0x8] sm:$0xff] 0.0
      %2528 = vst [vmem:[#allocation3 + $0x10] sm:$0x3] 0.0
      %2529 = vst [vmem:[#allocation3 + $0x18] sm:$0xff] 0.0
      %2530 = vst [vmem:[#allocation3 + $0x20] sm:$0xff] 0.0
      %2531 = vst [vmem:[#allocation3 + $0x28] sm:$0x3] 0.0
      %2532 = vst [vmem:[#allocation3 + $0x30] sm:$0xff] 0.0
      %2533 = vst [vmem:[#allocation3 + $0x38] sm:$0xff] 0.0
      %2534 = vst [vmem:[#allocation3 + $0x40] sm:$0x3] 0.0
      %2535 = vst [vmem:[#allocation3 + $0x48] sm:$0xff] 0.0
      %2536 = vst [vmem:[#allocation3 + $0x50] sm:$0xff] 0.0
      %2537 = vst [vmem:[#allocation3 + $0x58] sm:$0x3] 0.0
      %2538 = vst [vmem:[#allocation3 + $0x60] sm:$0xff] 0.0
      %2539 = vst [vmem:[#allocation3 + $0x68] sm:$0xff] 0.0
      %2540 = vst [vmem:[#allocation3 + $0x70] sm:$0x3] 0.0
      %2541 = vst [vmem:[#allocation3 + $0x78] sm:$0xff] 0.0
      %2542 = vst [vmem:[#allocation3 + $0x80] sm:$0xff] 0.0
      %2543 = vst [vmem:[#allocation3 + $0x88] sm:$0x3] 0.0
      %2544 = vst [vmem:[#allocation3 + $0x90] sm:$0xff] 0.0
      %2545 = vst [vmem:[#allocation3 + $0x98] sm:$0xff] 0.0
      %2546 = vst [vmem:[#allocation3 + $0xa0] sm:$0x3] 0.0
      %2547 = vst [vmem:[#allocation3 + $0xa8] sm:$0xff] 0.0
      %2548 = vst [vmem:[#allocation3 + $0xb0] sm:$0xff] 0.0
      %2549 = vst [vmem:[#allocation3 + $0xb8] sm:$0x3] 0.0
      %2550 = vst [vmem:[#allocation3 + $0xc0] sm:$0xff] 0.0
      %2551 = vst [vmem:[#allocation3 + $0xc8] sm:$0xff] 0.0
      %2552 = vst [vmem:[#allocation3 + $0xd0] sm:$0x3] 0.0
      %2553 = vst [vmem:[#allocation3 + $0xd8] sm:$0xff] 0.0
      %2554 = vst [vmem:[#allocation3 + $0xe0] sm:$0xff] 0.0
      %2555 = vst [vmem:[#allocation3 + $0xe8] sm:$0x3] 0.0
      %2556 = vst [vmem:[#allocation3 + $0xf0] sm:$0xff] 0.0
      %2557 = vst [vmem:[#allocation3 + $0xf8] sm:$0xff] 0.0
      %2558 = vst [vmem:[#allocation3 + $0x100] sm:$0x3] 0.0
      %2559 = vst [vmem:[#allocation3 + $0x108] sm:$0xff] 0.0
      %2560 = vst [vmem:[#allocation3 + $0x110] sm:$0xff] 0.0
      %2561 = vst [vmem:[#allocation3 + $0x118] sm:$0x3] 0.0
      %2562 = vst [vmem:[#allocation3 + $0x120] sm:$0xff] 0.0
      %2563 = vst [vmem:[#allocation3 + $0x128] sm:$0xff] 0.0
      %2564 = vst [vmem:[#allocation3 + $0x130] sm:$0x3] 0.0
      %2565 = vst [vmem:[#allocation3 + $0x138] sm:$0xff] 0.0
      %2566 = vst [vmem:[#allocation3 + $0x140] sm:$0xff] 0.0
      %2567 = vst [vmem:[#allocation3 + $0x148] sm:$0x3] 0.0
      %2568 = vst [vmem:[#allocation3 + $0x150] sm:$0xff] 0.0
      %2569 = vst [vmem:[#allocation3 + $0x158] sm:$0xff] 0.0
      %2570 = vst [vmem:[#allocation3 + $0x160] sm:$0x3] 0.0
      %2571 = vst [vmem:[#allocation3 + $0x168] sm:$0xff] 0.0
      %2572 = vst [vmem:[#allocation3 + $0x170] sm:$0xff] 0.0
      %2573 = vst [vmem:[#allocation3 + $0x178] sm:$0x3] 0.0
      %2574 = vst [vmem:[#allocation3 + $0x180] sm:$0xff] 0.0
      %2575 = vst [vmem:[#allocation3 + $0x188] sm:$0xff] 0.0
      %2576 = vst [vmem:[#allocation3 + $0x190] sm:$0x3] 0.0
      %2577 = vst [vmem:[#allocation3 + $0x198] sm:$0xff] 0.0
      %2578 = vst [vmem:[#allocation3 + $0x1a0] sm:$0xff] 0.0
      %2579 = vst [vmem:[#allocation3 + $0x1a8] sm:$0x3] 0.0
      %s2580 = scalar_lea.vmem [#allocation3], 24
      %2581 = vst [vmem:[%s2580 + $0x1] sm:$0xff] %v2494
      %2582 = vst [vmem:[%s2580 + $0x9] sm:$0xff] %v2495
      %2583 = vst [vmem:[%s2580 + $0x19] sm:$0xff] %v2496
      %2584 = vst [vmem:[%s2580 + $0x21] sm:$0xff] %v2497
      %2585 = vst [vmem:[%s2580 + $0x31] sm:$0xff] %v2498
      %2586 = vst [vmem:[%s2580 + $0x39] sm:$0xff] %v2499
      %2587 = vst [vmem:[%s2580 + $0x49] sm:$0xff] %v2500
      %2588 = vst [vmem:[%s2580 + $0x51] sm:$0xff] %v2501
      %2589 = vst [vmem:[%s2580 + $0x61] sm:$0xff] %v2502
      %2590 = vst [vmem:[%s2580 + $0x69] sm:$0xff] %v2503
      %2591 = vst [vmem:[%s2580 + $0x79] sm:$0xff] %v2504
      %2592 = vst [vmem:[%s2580 + $0x81] sm:$0xff] %v2505
      %2593 = vst [vmem:[%s2580 + $0x91] sm:$0xff] %v2506
      %2594 = vst [vmem:[%s2580 + $0x99] sm:$0xff] %v2507
      %2595 = vst [vmem:[%s2580 + $0xa9] sm:$0xff] %v2508
      %2596 = vst [vmem:[%s2580 + $0xb1] sm:$0xff] %v2509
      %2597 = vst [vmem:[%s2580 + $0xc1] sm:$0xff] %v2510
      %2598 = vst [vmem:[%s2580 + $0xc9] sm:$0xff] %v2511
      %2599 = vst [vmem:[%s2580 + $0xd9] sm:$0xff] %v2512
      %2600 = vst [vmem:[%s2580 + $0xe1] sm:$0xff] %v2513
      %2601 = vst [vmem:[%s2580 + $0xf1] sm:$0xff] %v2514
      %2602 = vst [vmem:[%s2580 + $0xf9] sm:$0xff] %v2515
      %2603 = vst [vmem:[%s2580 + $0x109] sm:$0xff] %v2516
      %2604 = vst [vmem:[%s2580 + $0x111] sm:$0xff] %v2517
      %2605 = vst [vmem:[%s2580 + $0x121] sm:$0xff] %v2518
      %2606 = vst [vmem:[%s2580 + $0x129] sm:$0xff] %v2519
      %2607 = vst [vmem:[%s2580 + $0x139] sm:$0xff] %v2520
      %2608 = vst [vmem:[%s2580 + $0x141] sm:$0xff] %v2521
      %2609 = vst [vmem:[%s2580 + $0x151] sm:$0xff] %v2522
      %2610 = vst [vmem:[%s2580 + $0x159] sm:$0xff] %v2523
      %2611 = vst [vmem:[%s2580 + $0x169] sm:$0xff] %v2524
      %2612 = vst [vmem:[%s2580 + $0x171] sm:$0xff] %v2525
      %v2613 = vld [vmem:[#allocation3] sm:$0xff]
      %v2614 = vld [vmem:[#allocation3 + $0x8] sm:$0xff]
      %v2615 = vld [vmem:[#allocation3 + $0x18] sm:$0xff]
      %v2616 = vld [vmem:[#allocation3 + $0x20] sm:$0xff]
      %v2617 = vld [vmem:[#allocation3 + $0x30] sm:$0xff]
      %v2618 = vld [vmem:[#allocation3 + $0x38] sm:$0xff]
      %v2619 = vld [vmem:[#allocation3 + $0x48] sm:$0xff]
      %v2620 = vld [vmem:[#allocation3 + $0x50] sm:$0xff]
      %v2621 = vld [vmem:[#allocation3 + $0x60] sm:$0xff]
      %v2622 = vld [vmem:[#allocation3 + $0x68] sm:$0xff]
      %v2623 = vld [vmem:[#allocation3 + $0x78] sm:$0xff]
      %v2624 = vld [vmem:[#allocation3 + $0x80] sm:$0xff]
      %v2625 = vld [vmem:[#allocation3 + $0x90] sm:$0xff]
      %v2626 = vld [vmem:[#allocation3 + $0x98] sm:$0xff]
      %v2627 = vld [vmem:[#allocation3 + $0xa8] sm:$0xff]
      %v2628 = vld [vmem:[#allocation3 + $0xb0] sm:$0xff]
      %v2629 = vld [vmem:[#allocation3 + $0xc0] sm:$0xff]
      %v2630 = vld [vmem:[#allocation3 + $0xc8] sm:$0xff]
      %v2631 = vld [vmem:[#allocation3 + $0xd8] sm:$0xff]
      %v2632 = vld [vmem:[#allocation3 + $0xe0] sm:$0xff]
      %v2633 = vld [vmem:[#allocation3 + $0xf0] sm:$0xff]
      %v2634 = vld [vmem:[#allocation3 + $0xf8] sm:$0xff]
      %v2635 = vld [vmem:[#allocation3 + $0x108] sm:$0xff]
      %v2636 = vld [vmem:[#allocation3 + $0x110] sm:$0xff]
      %v2637 = vld [vmem:[#allocation3 + $0x120] sm:$0xff]
      %v2638 = vld [vmem:[#allocation3 + $0x128] sm:$0xff]
      %v2639 = vld [vmem:[#allocation3 + $0x138] sm:$0xff]
      %v2640 = vld [vmem:[#allocation3 + $0x140] sm:$0xff]
      %v2641 = vld [vmem:[#allocation3 + $0x150] sm:$0xff]
      %v2642 = vld [vmem:[#allocation3 + $0x158] sm:$0xff]
      %v2643 = vld [vmem:[#allocation3 + $0x168] sm:$0xff]
      %v2644 = vld [vmem:[#allocation3 + $0x170] sm:$0xff]
      %2645 = vst [vmem:[#allocation4] sm:$0xff] %v2613
      %2646 = vst [vmem:[#allocation4 + $0x48] sm:$0xff] %v2614
      %2647 = vst [vmem:[#allocation4 + $0x90] sm:$0xff] %v2615
      %2648 = vst [vmem:[#allocation4 + $0xd8] sm:$0xff] %v2616
      %2649 = vst [vmem:[#allocation4 + $0x120] sm:$0xff] %v2617
      %2650 = vst [vmem:[#allocation4 + $0x168] sm:$0xff] %v2618
      %2651 = vst [vmem:[#allocation4 + $0x1b0] sm:$0xff] %v2619
      %2652 = vst [vmem:[#allocation4 + $0x1f8] sm:$0xff] %v2620
      %2653 = vst [vmem:[#allocation4 + $0x240] sm:$0xff] %v2621
      %2654 = vst [vmem:[#allocation4 + $0x288] sm:$0xff] %v2622
      %2655 = vst [vmem:[#allocation4 + $0x2d0] sm:$0xff] %v2623
      %2656 = vst [vmem:[#allocation4 + $0x318] sm:$0xff] %v2624
      %2657 = vst [vmem:[#allocation4 + $0x360] sm:$0xff] %v2625
      %2658 = vst [vmem:[#allocation4 + $0x3a8] sm:$0xff] %v2626
      %2659 = vst [vmem:[#allocation4 + $0x3f0] sm:$0xff] %v2627
      %2660 = vst [vmem:[#allocation4 + $0x438] sm:$0xff] %v2628
      %2661 = vst [vmem:[#allocation4 + $0x480] sm:$0xff] %v2629
      %2662 = vst [vmem:[#allocation4 + $0x4c8] sm:$0xff] %v2630
      %2663 = vst [vmem:[#allocation4 + $0x510] sm:$0xff] %v2631
      %2664 = vst [vmem:[#allocation4 + $0x558] sm:$0xff] %v2632
      %2665 = vst [vmem:[#allocation4 + $0x5a0] sm:$0xff] %v2633
      %2666 = vst [vmem:[#allocation4 + $0x5e8] sm:$0xff] %v2634
      %2667 = vst [vmem:[#allocation4 + $0x630] sm:$0xff] %v2635
      %2668 = vst [vmem:[#allocation4 + $0x678] sm:$0xff] %v2636
      %2669 = vst [vmem:[#allocation4 + $0x6c0] sm:$0xff] %v2637
      %2670 = vst [vmem:[#allocation4 + $0x708] sm:$0xff] %v2638
      %2671 = vst [vmem:[#allocation4 + $0x750] sm:$0xff] %v2639
      %2672 = vst [vmem:[#allocation4 + $0x798] sm:$0xff] %v2640
      %2673 = vst [vmem:[#allocation4 + $0x7e0] sm:$0xff] %v2641
      %2674 = vst [vmem:[#allocation4 + $0x828] sm:$0xff] %v2642
      %2675 = vst [vmem:[#allocation4 + $0x870] sm:$0xff] %v2643
      %2676 = vst [vmem:[#allocation4 + $0x8b8] sm:$0xff] %v2644
      %v2677 = vld [vmem:[#allocation3 + $0x1] sm:$0xff]
      %v2678 = vld [vmem:[#allocation3 + $0x9] sm:$0xff]
      %v2679 = vld [vmem:[#allocation3 + $0x19] sm:$0xff]
      %v2680 = vld [vmem:[#allocation3 + $0x21] sm:$0xff]
      %v2681 = vld [vmem:[#allocation3 + $0x31] sm:$0xff]
      %v2682 = vld [vmem:[#allocation3 + $0x39] sm:$0xff]
      %v2683 = vld [vmem:[#allocation3 + $0x49] sm:$0xff]
      %v2684 = vld [vmem:[#allocation3 + $0x51] sm:$0xff]
      %v2685 = vld [vmem:[#allocation3 + $0x61] sm:$0xff]
      %v2686 = vld [vmem:[#allocation3 + $0x69] sm:$0xff]
      %v2687 = vld [vmem:[#allocation3 + $0x79] sm:$0xff]
      %v2688 = vld [vmem:[#allocation3 + $0x81] sm:$0xff]
      %v2689 = vld [vmem:[#allocation3 + $0x91] sm:$0xff]
      %v2690 = vld [vmem:[#allocation3 + $0x99] sm:$0xff]
      %v2691 = vld [vmem:[#allocation3 + $0xa9] sm:$0xff]
      %v2692 = vld [vmem:[#allocation3 + $0xb1] sm:$0xff]
      %v2693 = vld [vmem:[#allocation3 + $0xc1] sm:$0xff]
      %v2694 = vld [vmem:[#allocation3 + $0xc9] sm:$0xff]
      %v2695 = vld [vmem:[#allocation3 + $0xd9] sm:$0xff]
      %v2696 = vld [vmem:[#allocation3 + $0xe1] sm:$0xff]
      %v2697 = vld [vmem:[#allocation3 + $0xf1] sm:$0xff]
      %v2698 = vld [vmem:[#allocation3 + $0xf9] sm:$0xff]
      %v2699 = vld [vmem:[#allocation3 + $0x109] sm:$0xff]
      %v2700 = vld [vmem:[#allocation3 + $0x111] sm:$0xff]
      %v2701 = vld [vmem:[#allocation3 + $0x121] sm:$0xff]
      %v2702 = vld [vmem:[#allocation3 + $0x129] sm:$0xff]
      %v2703 = vld [vmem:[#allocation3 + $0x139] sm:$0xff]
      %v2704 = vld [vmem:[#allocation3 + $0x141] sm:$0xff]
      %v2705 = vld [vmem:[#allocation3 + $0x151] sm:$0xff]
      %v2706 = vld [vmem:[#allocation3 + $0x159] sm:$0xff]
      %v2707 = vld [vmem:[#allocation3 + $0x169] sm:$0xff]
      %v2708 = vld [vmem:[#allocation3 + $0x171] sm:$0xff]
      %2709 = vst [vmem:[#allocation4 + $0x8] sm:$0xff] %v2677
      %2710 = vst [vmem:[#allocation4 + $0x50] sm:$0xff] %v2678
      %2711 = vst [vmem:[#allocation4 + $0x98] sm:$0xff] %v2679
      %2712 = vst [vmem:[#allocation4 + $0xe0] sm:$0xff] %v2680
      %2713 = vst [vmem:[#allocation4 + $0x128] sm:$0xff] %v2681
      %2714 = vst [vmem:[#allocation4 + $0x170] sm:$0xff] %v2682
      %2715 = vst [vmem:[#allocation4 + $0x1b8] sm:$0xff] %v2683
      %2716 = vst [vmem:[#allocation4 + $0x200] sm:$0xff] %v2684
      %2717 = vst [vmem:[#allocation4 + $0x248] sm:$0xff] %v2685
      %2718 = vst [vmem:[#allocation4 + $0x290] sm:$0xff] %v2686
      %2719 = vst [vmem:[#allocation4 + $0x2d8] sm:$0xff] %v2687
      %2720 = vst [vmem:[#allocation4 + $0x320] sm:$0xff] %v2688
      %2721 = vst [vmem:[#allocation4 + $0x368] sm:$0xff] %v2689
      %2722 = vst [vmem:[#allocation4 + $0x3b0] sm:$0xff] %v2690
      %2723 = vst [vmem:[#allocation4 + $0x3f8] sm:$0xff] %v2691
      %2724 = vst [vmem:[#allocation4 + $0x440] sm:$0xff] %v2692
      %2725 = vst [vmem:[#allocation4 + $0x488] sm:$0xff] %v2693
      %2726 = vst [vmem:[#allocation4 + $0x4d0] sm:$0xff] %v2694
      %2727 = vst [vmem:[#allocation4 + $0x518] sm:$0xff] %v2695
      %2728 = vst [vmem:[#allocation4 + $0x560] sm:$0xff] %v2696
      %2729 = vst [vmem:[#allocation4 + $0x5a8] sm:$0xff] %v2697
      %2730 = vst [vmem:[#allocation4 + $0x5f0] sm:$0xff] %v2698
      %2731 = vst [vmem:[#allocation4 + $0x638] sm:$0xff] %v2699
      %2732 = vst [vmem:[#allocation4 + $0x680] sm:$0xff] %v2700
      %2733 = vst [vmem:[#allocation4 + $0x6c8] sm:$0xff] %v2701
      %2734 = vst [vmem:[#allocation4 + $0x710] sm:$0xff] %v2702
      %2735 = vst [vmem:[#allocation4 + $0x758] sm:$0xff] %v2703
      %2736 = vst [vmem:[#allocation4 + $0x7a0] sm:$0xff] %v2704
      %2737 = vst [vmem:[#allocation4 + $0x7e8] sm:$0xff] %v2705
      %2738 = vst [vmem:[#allocation4 + $0x830] sm:$0xff] %v2706
      %2739 = vst [vmem:[#allocation4 + $0x878] sm:$0xff] %v2707
      %2740 = vst [vmem:[#allocation4 + $0x8c0] sm:$0xff] %v2708
      %v2741 = vld [vmem:[#allocation3 + $0x2] sm:$0xff]
      %v2742 = vld [vmem:[#allocation3 + $0xa] sm:$0xff]
      %v2743 = vld [vmem:[#allocation3 + $0x1a] sm:$0xff]
      %v2744 = vld [vmem:[#allocation3 + $0x22] sm:$0xff]
      %v2745 = vld [vmem:[#allocation3 + $0x32] sm:$0xff]
      %v2746 = vld [vmem:[#allocation3 + $0x3a] sm:$0xff]
      %v2747 = vld [vmem:[#allocation3 + $0x4a] sm:$0xff]
      %v2748 = vld [vmem:[#allocation3 + $0x52] sm:$0xff]
      %v2749 = vld [vmem:[#allocation3 + $0x62] sm:$0xff]
      %v2750 = vld [vmem:[#allocation3 + $0x6a] sm:$0xff]
      %v2751 = vld [vmem:[#allocation3 + $0x7a] sm:$0xff]
      %v2752 = vld [vmem:[#allocation3 + $0x82] sm:$0xff]
      %v2753 = vld [vmem:[#allocation3 + $0x92] sm:$0xff]
      %v2754 = vld [vmem:[#allocation3 + $0x9a] sm:$0xff]
      %v2755 = vld [vmem:[#allocation3 + $0xaa] sm:$0xff]
      %v2756 = vld [vmem:[#allocation3 + $0xb2] sm:$0xff]
      %v2757 = vld [vmem:[#allocation3 + $0xc2] sm:$0xff]
      %v2758 = vld [vmem:[#allocation3 + $0xca] sm:$0xff]
      %v2759 = vld [vmem:[#allocation3 + $0xda] sm:$0xff]
      %v2760 = vld [vmem:[#allocation3 + $0xe2] sm:$0xff]
      %v2761 = vld [vmem:[#allocation3 + $0xf2] sm:$0xff]
      %v2762 = vld [vmem:[#allocation3 + $0xfa] sm:$0xff]
      %v2763 = vld [vmem:[#allocation3 + $0x10a] sm:$0xff]
      %v2764 = vld [vmem:[#allocation3 + $0x112] sm:$0xff]
      %v2765 = vld [vmem:[#allocation3 + $0x122] sm:$0xff]
      %v2766 = vld [vmem:[#allocation3 + $0x12a] sm:$0xff]
      %v2767 = vld [vmem:[#allocation3 + $0x13a] sm:$0xff]
      %v2768 = vld [vmem:[#allocation3 + $0x142] sm:$0xff]
      %v2769 = vld [vmem:[#allocation3 + $0x152] sm:$0xff]
      %v2770 = vld [vmem:[#allocation3 + $0x15a] sm:$0xff]
      %v2771 = vld [vmem:[#allocation3 + $0x16a] sm:$0xff]
      %v2772 = vld [vmem:[#allocation3 + $0x172] sm:$0xff]
      %2773 = vst [vmem:[#allocation4 + $0x10] sm:$0xff] %v2741
      %2774 = vst [vmem:[#allocation4 + $0x58] sm:$0xff] %v2742
      %2775 = vst [vmem:[#allocation4 + $0xa0] sm:$0xff] %v2743
      %2776 = vst [vmem:[#allocation4 + $0xe8] sm:$0xff] %v2744
      %2777 = vst [vmem:[#allocation4 + $0x130] sm:$0xff] %v2745
      %2778 = vst [vmem:[#allocation4 + $0x178] sm:$0xff] %v2746
      %2779 = vst [vmem:[#allocation4 + $0x1c0] sm:$0xff] %v2747
      %2780 = vst [vmem:[#allocation4 + $0x208] sm:$0xff] %v2748
      %2781 = vst [vmem:[#allocation4 + $0x250] sm:$0xff] %v2749
      %2782 = vst [vmem:[#allocation4 + $0x298] sm:$0xff] %v2750
      %2783 = vst [vmem:[#allocation4 + $0x2e0] sm:$0xff] %v2751
      %2784 = vst [vmem:[#allocation4 + $0x328] sm:$0xff] %v2752
      %2785 = vst [vmem:[#allocation4 + $0x370] sm:$0xff] %v2753
      %2786 = vst [vmem:[#allocation4 + $0x3b8] sm:$0xff] %v2754
      %2787 = vst [vmem:[#allocation4 + $0x400] sm:$0xff] %v2755
      %2788 = vst [vmem:[#allocation4 + $0x448] sm:$0xff] %v2756
      %2789 = vst [vmem:[#allocation4 + $0x490] sm:$0xff] %v2757
      %2790 = vst [vmem:[#allocation4 + $0x4d8] sm:$0xff] %v2758
      %2791 = vst [vmem:[#allocation4 + $0x520] sm:$0xff] %v2759
      %2792 = vst [vmem:[#allocation4 + $0x568] sm:$0xff] %v2760
      %2793 = vst [vmem:[#allocation4 + $0x5b0] sm:$0xff] %v2761
      %2794 = vst [vmem:[#allocation4 + $0x5f8] sm:$0xff] %v2762
      %2795 = vst [vmem:[#allocation4 + $0x640] sm:$0xff] %v2763
      %2796 = vst [vmem:[#allocation4 + $0x688] sm:$0xff] %v2764
      %2797 = vst [vmem:[#allocation4 + $0x6d0] sm:$0xff] %v2765
      %2798 = vst [vmem:[#allocation4 + $0x718] sm:$0xff] %v2766
      %2799 = vst [vmem:[#allocation4 + $0x760] sm:$0xff] %v2767
      %2800 = vst [vmem:[#allocation4 + $0x7a8] sm:$0xff] %v2768
      %2801 = vst [vmem:[#allocation4 + $0x7f0] sm:$0xff] %v2769
      %2802 = vst [vmem:[#allocation4 + $0x838] sm:$0xff] %v2770
      %2803 = vst [vmem:[#allocation4 + $0x880] sm:$0xff] %v2771
      %2804 = vst [vmem:[#allocation4 + $0x8c8] sm:$0xff] %v2772
      %v2805 = vld [vmem:[%s2580] sm:$0xff]
      %v2806 = vld [vmem:[%s2580 + $0x8] sm:$0xff]
      %v2807 = vld [vmem:[%s2580 + $0x18] sm:$0xff]
      %v2808 = vld [vmem:[%s2580 + $0x20] sm:$0xff]
      %v2809 = vld [vmem:[%s2580 + $0x30] sm:$0xff]
      %v2810 = vld [vmem:[%s2580 + $0x38] sm:$0xff]
      %v2811 = vld [vmem:[%s2580 + $0x48] sm:$0xff]
      %v2812 = vld [vmem:[%s2580 + $0x50] sm:$0xff]
      %v2813 = vld [vmem:[%s2580 + $0x60] sm:$0xff]
      %v2814 = vld [vmem:[%s2580 + $0x68] sm:$0xff]
      %v2815 = vld [vmem:[%s2580 + $0x78] sm:$0xff]
      %v2816 = vld [vmem:[%s2580 + $0x80] sm:$0xff]
      %v2817 = vld [vmem:[%s2580 + $0x90] sm:$0xff]
      %v2818 = vld [vmem:[%s2580 + $0x98] sm:$0xff]
      %v2819 = vld [vmem:[%s2580 + $0xa8] sm:$0xff]
      %v2820 = vld [vmem:[%s2580 + $0xb0] sm:$0xff]
      %v2821 = vld [vmem:[%s2580 + $0xc0] sm:$0xff]
      %v2822 = vld [vmem:[%s2580 + $0xc8] sm:$0xff]
      %v2823 = vld [vmem:[%s2580 + $0xd8] sm:$0xff]
      %v2824 = vld [vmem:[%s2580 + $0xe0] sm:$0xff]
      %v2825 = vld [vmem:[%s2580 + $0xf0] sm:$0xff]
      %v2826 = vld [vmem:[%s2580 + $0xf8] sm:$0xff]
      %v2827 = vld [vmem:[%s2580 + $0x108] sm:$0xff]
      %v2828 = vld [vmem:[%s2580 + $0x110] sm:$0xff]
      %v2829 = vld [vmem:[%s2580 + $0x120] sm:$0xff]
      %v2830 = vld [vmem:[%s2580 + $0x128] sm:$0xff]
      %v2831 = vld [vmem:[%s2580 + $0x138] sm:$0xff]
      %v2832 = vld [vmem:[%s2580 + $0x140] sm:$0xff]
      %v2833 = vld [vmem:[%s2580 + $0x150] sm:$0xff]
      %v2834 = vld [vmem:[%s2580 + $0x158] sm:$0xff]
      %v2835 = vld [vmem:[%s2580 + $0x168] sm:$0xff]
      %v2836 = vld [vmem:[%s2580 + $0x170] sm:$0xff]
      %2837 = vst [vmem:[#allocation4 + $0x18] sm:$0xff] %v2805
      %2838 = vst [vmem:[#allocation4 + $0x60] sm:$0xff] %v2806
      %2839 = vst [vmem:[#allocation4 + $0xa8] sm:$0xff] %v2807
      %2840 = vst [vmem:[#allocation4 + $0xf0] sm:$0xff] %v2808
      %2841 = vst [vmem:[#allocation4 + $0x138] sm:$0xff] %v2809
      %2842 = vst [vmem:[#allocation4 + $0x180] sm:$0xff] %v2810
      %2843 = vst [vmem:[#allocation4 + $0x1c8] sm:$0xff] %v2811
      %2844 = vst [vmem:[#allocation4 + $0x210] sm:$0xff] %v2812
      %2845 = vst [vmem:[#allocation4 + $0x258] sm:$0xff] %v2813
      %2846 = vst [vmem:[#allocation4 + $0x2a0] sm:$0xff] %v2814
      %2847 = vst [vmem:[#allocation4 + $0x2e8] sm:$0xff] %v2815
      %2848 = vst [vmem:[#allocation4 + $0x330] sm:$0xff] %v2816
      %2849 = vst [vmem:[#allocation4 + $0x378] sm:$0xff] %v2817
      %2850 = vst [vmem:[#allocation4 + $0x3c0] sm:$0xff] %v2818
      %2851 = vst [vmem:[#allocation4 + $0x408] sm:$0xff] %v2819
      %2852 = vst [vmem:[#allocation4 + $0x450] sm:$0xff] %v2820
      %2853 = vst [vmem:[#allocation4 + $0x498] sm:$0xff] %v2821
      %2854 = vst [vmem:[#allocation4 + $0x4e0] sm:$0xff] %v2822
      %2855 = vst [vmem:[#allocation4 + $0x528] sm:$0xff] %v2823
      %2856 = vst [vmem:[#allocation4 + $0x570] sm:$0xff] %v2824
      %2857 = vst [vmem:[#allocation4 + $0x5b8] sm:$0xff] %v2825
      %2858 = vst [vmem:[#allocation4 + $0x600] sm:$0xff] %v2826
      %2859 = vst [vmem:[#allocation4 + $0x648] sm:$0xff] %v2827
      %2860 = vst [vmem:[#allocation4 + $0x690] sm:$0xff] %v2828
      %2861 = vst [vmem:[#allocation4 + $0x6d8] sm:$0xff] %v2829
      %2862 = vst [vmem:[#allocation4 + $0x720] sm:$0xff] %v2830
      %2863 = vst [vmem:[#allocation4 + $0x768] sm:$0xff] %v2831
      %2864 = vst [vmem:[#allocation4 + $0x7b0] sm:$0xff] %v2832
      %2865 = vst [vmem:[#allocation4 + $0x7f8] sm:$0xff] %v2833
      %2866 = vst [vmem:[#allocation4 + $0x840] sm:$0xff] %v2834
      %2867 = vst [vmem:[#allocation4 + $0x888] sm:$0xff] %v2835
      %2868 = vst [vmem:[#allocation4 + $0x8d0] sm:$0xff] %v2836
      %v2869 = vld [vmem:[%s2580 + $0x1] sm:$0xff]
      %v2870 = vld [vmem:[%s2580 + $0x9] sm:$0xff]
      %v2871 = vld [vmem:[%s2580 + $0x19] sm:$0xff]
      %v2872 = vld [vmem:[%s2580 + $0x21] sm:$0xff]
      %v2873 = vld [vmem:[%s2580 + $0x31] sm:$0xff]
      %v2874 = vld [vmem:[%s2580 + $0x39] sm:$0xff]
      %v2875 = vld [vmem:[%s2580 + $0x49] sm:$0xff]
      %v2876 = vld [vmem:[%s2580 + $0x51] sm:$0xff]
      %v2877 = vld [vmem:[%s2580 + $0x61] sm:$0xff]
      %v2878 = vld [vmem:[%s2580 + $0x69] sm:$0xff]
      %v2879 = vld [vmem:[%s2580 + $0x79] sm:$0xff]
      %v2880 = vld [vmem:[%s2580 + $0x81] sm:$0xff]
      %v2881 = vld [vmem:[%s2580 + $0x91] sm:$0xff]
      %v2882 = vld [vmem:[%s2580 + $0x99] sm:$0xff]
      %v2883 = vld [vmem:[%s2580 + $0xa9] sm:$0xff]
      %v2884 = vld [vmem:[%s2580 + $0xb1] sm:$0xff]
      %v2885 = vld [vmem:[%s2580 + $0xc1] sm:$0xff]
      %v2886 = vld [vmem:[%s2580 + $0xc9] sm:$0xff]
      %v2887 = vld [vmem:[%s2580 + $0xd9] sm:$0xff]
      %v2888 = vld [vmem:[%s2580 + $0xe1] sm:$0xff]
      %v2889 = vld [vmem:[%s2580 + $0xf1] sm:$0xff]
      %v2890 = vld [vmem:[%s2580 + $0xf9] sm:$0xff]
      %v2891 = vld [vmem:[%s2580 + $0x109] sm:$0xff]
      %v2892 = vld [vmem:[%s2580 + $0x111] sm:$0xff]
      %v2893 = vld [vmem:[%s2580 + $0x121] sm:$0xff]
      %v2894 = vld [vmem:[%s2580 + $0x129] sm:$0xff]
      %v2895 = vld [vmem:[%s2580 + $0x139] sm:$0xff]
      %v2896 = vld [vmem:[%s2580 + $0x141] sm:$0xff]
      %v2897 = vld [vmem:[%s2580 + $0x151] sm:$0xff]
      %v2898 = vld [vmem:[%s2580 + $0x159] sm:$0xff]
      %v2899 = vld [vmem:[%s2580 + $0x169] sm:$0xff]
      %v2900 = vld [vmem:[%s2580 + $0x171] sm:$0xff]
      %2901 = vst [vmem:[#allocation4 + $0x20] sm:$0xff] %v2869
      %2902 = vst [vmem:[#allocation4 + $0x68] sm:$0xff] %v2870
      %2903 = vst [vmem:[#allocation4 + $0xb0] sm:$0xff] %v2871
      %2904 = vst [vmem:[#allocation4 + $0xf8] sm:$0xff] %v2872
      %2905 = vst [vmem:[#allocation4 + $0x140] sm:$0xff] %v2873
      %2906 = vst [vmem:[#allocation4 + $0x188] sm:$0xff] %v2874
      %2907 = vst [vmem:[#allocation4 + $0x1d0] sm:$0xff] %v2875
      %2908 = vst [vmem:[#allocation4 + $0x218] sm:$0xff] %v2876
      %2909 = vst [vmem:[#allocation4 + $0x260] sm:$0xff] %v2877
      %2910 = vst [vmem:[#allocation4 + $0x2a8] sm:$0xff] %v2878
      %2911 = vst [vmem:[#allocation4 + $0x2f0] sm:$0xff] %v2879
      %2912 = vst [vmem:[#allocation4 + $0x338] sm:$0xff] %v2880
      %2913 = vst [vmem:[#allocation4 + $0x380] sm:$0xff] %v2881
      %2914 = vst [vmem:[#allocation4 + $0x3c8] sm:$0xff] %v2882
      %2915 = vst [vmem:[#allocation4 + $0x410] sm:$0xff] %v2883
      %2916 = vst [vmem:[#allocation4 + $0x458] sm:$0xff] %v2884
      %2917 = vst [vmem:[#allocation4 + $0x4a0] sm:$0xff] %v2885
      %2918 = vst [vmem:[#allocation4 + $0x4e8] sm:$0xff] %v2886
      %2919 = vst [vmem:[#allocation4 + $0x530] sm:$0xff] %v2887
      %2920 = vst [vmem:[#allocation4 + $0x578] sm:$0xff] %v2888
      %2921 = vst [vmem:[#allocation4 + $0x5c0] sm:$0xff] %v2889
      %2922 = vst [vmem:[#allocation4 + $0x608] sm:$0xff] %v2890
      %2923 = vst [vmem:[#allocation4 + $0x650] sm:$0xff] %v2891
      %2924 = vst [vmem:[#allocation4 + $0x698] sm:$0xff] %v2892
      %2925 = vst [vmem:[#allocation4 + $0x6e0] sm:$0xff] %v2893
      %2926 = vst [vmem:[#allocation4 + $0x728] sm:$0xff] %v2894
      %2927 = vst [vmem:[#allocation4 + $0x770] sm:$0xff] %v2895
      %2928 = vst [vmem:[#allocation4 + $0x7b8] sm:$0xff] %v2896
      %2929 = vst [vmem:[#allocation4 + $0x800] sm:$0xff] %v2897
      %2930 = vst [vmem:[#allocation4 + $0x848] sm:$0xff] %v2898
      %2931 = vst [vmem:[#allocation4 + $0x890] sm:$0xff] %v2899
      %2932 = vst [vmem:[#allocation4 + $0x8d8] sm:$0xff] %v2900
      %v2933 = vld [vmem:[%s2580 + $0x2] sm:$0xff]
      %v2934 = vld [vmem:[%s2580 + $0xa] sm:$0xff]
      %v2935 = vld [vmem:[%s2580 + $0x1a] sm:$0xff]
      %v2936 = vld [vmem:[%s2580 + $0x22] sm:$0xff]
      %v2937 = vld [vmem:[%s2580 + $0x32] sm:$0xff]
      %v2938 = vld [vmem:[%s2580 + $0x3a] sm:$0xff]
      %v2939 = vld [vmem:[%s2580 + $0x4a] sm:$0xff]
      %v2940 = vld [vmem:[%s2580 + $0x52] sm:$0xff]
      %v2941 = vld [vmem:[%s2580 + $0x62] sm:$0xff]
      %v2942 = vld [vmem:[%s2580 + $0x6a] sm:$0xff]
      %v2943 = vld [vmem:[%s2580 + $0x7a] sm:$0xff]
      %v2944 = vld [vmem:[%s2580 + $0x82] sm:$0xff]
      %v2945 = vld [vmem:[%s2580 + $0x92] sm:$0xff]
      %v2946 = vld [vmem:[%s2580 + $0x9a] sm:$0xff]
      %v2947 = vld [vmem:[%s2580 + $0xaa] sm:$0xff]
      %v2948 = vld [vmem:[%s2580 + $0xb2] sm:$0xff]
      %v2949 = vld [vmem:[%s2580 + $0xc2] sm:$0xff]
      %v2950 = vld [vmem:[%s2580 + $0xca] sm:$0xff]
      %v2951 = vld [vmem:[%s2580 + $0xda] sm:$0xff]
      %v2952 = vld [vmem:[%s2580 + $0xe2] sm:$0xff]
      %v2953 = vld [vmem:[%s2580 + $0xf2] sm:$0xff]
      %v2954 = vld [vmem:[%s2580 + $0xfa] sm:$0xff]
      %v2955 = vld [vmem:[%s2580 + $0x10a] sm:$0xff]
      %v2956 = vld [vmem:[%s2580 + $0x112] sm:$0xff]
      %v2957 = vld [vmem:[%s2580 + $0x122] sm:$0xff]
      %v2958 = vld [vmem:[%s2580 + $0x12a] sm:$0xff]
      %v2959 = vld [vmem:[%s2580 + $0x13a] sm:$0xff]
      %v2960 = vld [vmem:[%s2580 + $0x142] sm:$0xff]
      %v2961 = vld [vmem:[%s2580 + $0x152] sm:$0xff]
      %v2962 = vld [vmem:[%s2580 + $0x15a] sm:$0xff]
      %v2963 = vld [vmem:[%s2580 + $0x16a] sm:$0xff]
      %v2964 = vld [vmem:[%s2580 + $0x172] sm:$0xff]
      %2965 = vst [vmem:[#allocation4 + $0x28] sm:$0xff] %v2933
      %2966 = vst [vmem:[#allocation4 + $0x70] sm:$0xff] %v2934
      %2967 = vst [vmem:[#allocation4 + $0xb8] sm:$0xff] %v2935
      %2968 = vst [vmem:[#allocation4 + $0x100] sm:$0xff] %v2936
      %2969 = vst [vmem:[#allocation4 + $0x148] sm:$0xff] %v2937
      %2970 = vst [vmem:[#allocation4 + $0x190] sm:$0xff] %v2938
      %2971 = vst [vmem:[#allocation4 + $0x1d8] sm:$0xff] %v2939
      %2972 = vst [vmem:[#allocation4 + $0x220] sm:$0xff] %v2940
      %2973 = vst [vmem:[#allocation4 + $0x268] sm:$0xff] %v2941
      %2974 = vst [vmem:[#allocation4 + $0x2b0] sm:$0xff] %v2942
      %2975 = vst [vmem:[#allocation4 + $0x2f8] sm:$0xff] %v2943
      %2976 = vst [vmem:[#allocation4 + $0x340] sm:$0xff] %v2944
      %2977 = vst [vmem:[#allocation4 + $0x388] sm:$0xff] %v2945
      %2978 = vst [vmem:[#allocation4 + $0x3d0] sm:$0xff] %v2946
      %2979 = vst [vmem:[#allocation4 + $0x418] sm:$0xff] %v2947
      %2980 = vst [vmem:[#allocation4 + $0x460] sm:$0xff] %v2948
      %2981 = vst [vmem:[#allocation4 + $0x4a8] sm:$0xff] %v2949
      %2982 = vst [vmem:[#allocation4 + $0x4f0] sm:$0xff] %v2950
      %2983 = vst [vmem:[#allocation4 + $0x538] sm:$0xff] %v2951
      %2984 = vst [vmem:[#allocation4 + $0x580] sm:$0xff] %v2952
      %2985 = vst [vmem:[#allocation4 + $0x5c8] sm:$0xff] %v2953
      %2986 = vst [vmem:[#allocation4 + $0x610] sm:$0xff] %v2954
      %2987 = vst [vmem:[#allocation4 + $0x658] sm:$0xff] %v2955
      %2988 = vst [vmem:[#allocation4 + $0x6a0] sm:$0xff] %v2956
      %2989 = vst [vmem:[#allocation4 + $0x6e8] sm:$0xff] %v2957
      %2990 = vst [vmem:[#allocation4 + $0x730] sm:$0xff] %v2958
      %2991 = vst [vmem:[#allocation4 + $0x778] sm:$0xff] %v2959
      %2992 = vst [vmem:[#allocation4 + $0x7c0] sm:$0xff] %v2960
      %2993 = vst [vmem:[#allocation4 + $0x808] sm:$0xff] %v2961
      %2994 = vst [vmem:[#allocation4 + $0x850] sm:$0xff] %v2962
      %2995 = vst [vmem:[#allocation4 + $0x898] sm:$0xff] %v2963
      %2996 = vst [vmem:[#allocation4 + $0x8e0] sm:$0xff] %v2964
      %s2997 = scalar_lea.vmem [#allocation3], 48
      %v2998 = vld [vmem:[%s2997] sm:$0xff]
      %v2999 = vld [vmem:[%s2997 + $0x8] sm:$0xff]
      %v3000 = vld [vmem:[%s2997 + $0x18] sm:$0xff]
      %v3001 = vld [vmem:[%s2997 + $0x20] sm:$0xff]
      %v3002 = vld [vmem:[%s2997 + $0x30] sm:$0xff]
      %v3003 = vld [vmem:[%s2997 + $0x38] sm:$0xff]
      %v3004 = vld [vmem:[%s2997 + $0x48] sm:$0xff]
      %v3005 = vld [vmem:[%s2997 + $0x50] sm:$0xff]
      %v3006 = vld [vmem:[%s2997 + $0x60] sm:$0xff]
      %v3007 = vld [vmem:[%s2997 + $0x68] sm:$0xff]
      %v3008 = vld [vmem:[%s2997 + $0x78] sm:$0xff]
      %v3009 = vld [vmem:[%s2997 + $0x80] sm:$0xff]
      %v3010 = vld [vmem:[%s2997 + $0x90] sm:$0xff]
      %v3011 = vld [vmem:[%s2997 + $0x98] sm:$0xff]
      %v3012 = vld [vmem:[%s2997 + $0xa8] sm:$0xff]
      %v3013 = vld [vmem:[%s2997 + $0xb0] sm:$0xff]
      %v3014 = vld [vmem:[%s2997 + $0xc0] sm:$0xff]
      %v3015 = vld [vmem:[%s2997 + $0xc8] sm:$0xff]
      %v3016 = vld [vmem:[%s2997 + $0xd8] sm:$0xff]
      %v3017 = vld [vmem:[%s2997 + $0xe0] sm:$0xff]
      %v3018 = vld [vmem:[%s2997 + $0xf0] sm:$0xff]
      %v3019 = vld [vmem:[%s2997 + $0xf8] sm:$0xff]
      %v3020 = vld [vmem:[%s2997 + $0x108] sm:$0xff]
      %v3021 = vld [vmem:[%s2997 + $0x110] sm:$0xff]
      %v3022 = vld [vmem:[%s2997 + $0x120] sm:$0xff]
      %v3023 = vld [vmem:[%s2997 + $0x128] sm:$0xff]
      %v3024 = vld [vmem:[%s2997 + $0x138] sm:$0xff]
      %v3025 = vld [vmem:[%s2997 + $0x140] sm:$0xff]
      %v3026 = vld [vmem:[%s2997 + $0x150] sm:$0xff]
      %v3027 = vld [vmem:[%s2997 + $0x158] sm:$0xff]
      %v3028 = vld [vmem:[%s2997 + $0x168] sm:$0xff]
      %v3029 = vld [vmem:[%s2997 + $0x170] sm:$0xff]
      %3030 = vst [vmem:[#allocation4 + $0x30] sm:$0xff] %v2998
      %3031 = vst [vmem:[#allocation4 + $0x78] sm:$0xff] %v2999
      %3032 = vst [vmem:[#allocation4 + $0xc0] sm:$0xff] %v3000
      %3033 = vst [vmem:[#allocation4 + $0x108] sm:$0xff] %v3001
      %3034 = vst [vmem:[#allocation4 + $0x150] sm:$0xff] %v3002
      %3035 = vst [vmem:[#allocation4 + $0x198] sm:$0xff] %v3003
      %3036 = vst [vmem:[#allocation4 + $0x1e0] sm:$0xff] %v3004
      %3037 = vst [vmem:[#allocation4 + $0x228] sm:$0xff] %v3005
      %3038 = vst [vmem:[#allocation4 + $0x270] sm:$0xff] %v3006
      %3039 = vst [vmem:[#allocation4 + $0x2b8] sm:$0xff] %v3007
      %3040 = vst [vmem:[#allocation4 + $0x300] sm:$0xff] %v3008
      %3041 = vst [vmem:[#allocation4 + $0x348] sm:$0xff] %v3009
      %3042 = vst [vmem:[#allocation4 + $0x390] sm:$0xff] %v3010
      %3043 = vst [vmem:[#allocation4 + $0x3d8] sm:$0xff] %v3011
      %3044 = vst [vmem:[#allocation4 + $0x420] sm:$0xff] %v3012
      %3045 = vst [vmem:[#allocation4 + $0x468] sm:$0xff] %v3013
      %3046 = vst [vmem:[#allocation4 + $0x4b0] sm:$0xff] %v3014
      %3047 = vst [vmem:[#allocation4 + $0x4f8] sm:$0xff] %v3015
      %3048 = vst [vmem:[#allocation4 + $0x540] sm:$0xff] %v3016
      %3049 = vst [vmem:[#allocation4 + $0x588] sm:$0xff] %v3017
      %3050 = vst [vmem:[#allocation4 + $0x5d0] sm:$0xff] %v3018
      %3051 = vst [vmem:[#allocation4 + $0x618] sm:$0xff] %v3019
      %3052 = vst [vmem:[#allocation4 + $0x660] sm:$0xff] %v3020
      %3053 = vst [vmem:[#allocation4 + $0x6a8] sm:$0xff] %v3021
      %3054 = vst [vmem:[#allocation4 + $0x6f0] sm:$0xff] %v3022
      %3055 = vst [vmem:[#allocation4 + $0x738] sm:$0xff] %v3023
      %3056 = vst [vmem:[#allocation4 + $0x780] sm:$0xff] %v3024
      %3057 = vst [vmem:[#allocation4 + $0x7c8] sm:$0xff] %v3025
      %3058 = vst [vmem:[#allocation4 + $0x810] sm:$0xff] %v3026
      %3059 = vst [vmem:[#allocation4 + $0x858] sm:$0xff] %v3027
      %3060 = vst [vmem:[#allocation4 + $0x8a0] sm:$0xff] %v3028
      %3061 = vst [vmem:[#allocation4 + $0x8e8] sm:$0xff] %v3029
      %v3062 = vld [vmem:[%s2997 + $0x1] sm:$0xff]
      %v3063 = vld [vmem:[%s2997 + $0x9] sm:$0xff]
      %v3064 = vld [vmem:[%s2997 + $0x19] sm:$0xff]
      %v3065 = vld [vmem:[%s2997 + $0x21] sm:$0xff]
      %v3066 = vld [vmem:[%s2997 + $0x31] sm:$0xff]
      %v3067 = vld [vmem:[%s2997 + $0x39] sm:$0xff]
      %v3068 = vld [vmem:[%s2997 + $0x49] sm:$0xff]
      %v3069 = vld [vmem:[%s2997 + $0x51] sm:$0xff]
      %v3070 = vld [vmem:[%s2997 + $0x61] sm:$0xff]
      %v3071 = vld [vmem:[%s2997 + $0x69] sm:$0xff]
      %v3072 = vld [vmem:[%s2997 + $0x79] sm:$0xff]
      %v3073 = vld [vmem:[%s2997 + $0x81] sm:$0xff]
      %v3074 = vld [vmem:[%s2997 + $0x91] sm:$0xff]
      %v3075 = vld [vmem:[%s2997 + $0x99] sm:$0xff]
      %v3076 = vld [vmem:[%s2997 + $0xa9] sm:$0xff]
      %v3077 = vld [vmem:[%s2997 + $0xb1] sm:$0xff]
      %v3078 = vld [vmem:[%s2997 + $0xc1] sm:$0xff]
      %v3079 = vld [vmem:[%s2997 + $0xc9] sm:$0xff]
      %v3080 = vld [vmem:[%s2997 + $0xd9] sm:$0xff]
      %v3081 = vld [vmem:[%s2997 + $0xe1] sm:$0xff]
      %v3082 = vld [vmem:[%s2997 + $0xf1] sm:$0xff]
      %v3083 = vld [vmem:[%s2997 + $0xf9] sm:$0xff]
      %v3084 = vld [vmem:[%s2997 + $0x109] sm:$0xff]
      %v3085 = vld [vmem:[%s2997 + $0x111] sm:$0xff]
      %v3086 = vld [vmem:[%s2997 + $0x121] sm:$0xff]
      %v3087 = vld [vmem:[%s2997 + $0x129] sm:$0xff]
      %v3088 = vld [vmem:[%s2997 + $0x139] sm:$0xff]
      %v3089 = vld [vmem:[%s2997 + $0x141] sm:$0xff]
      %v3090 = vld [vmem:[%s2997 + $0x151] sm:$0xff]
      %v3091 = vld [vmem:[%s2997 + $0x159] sm:$0xff]
      %v3092 = vld [vmem:[%s2997 + $0x169] sm:$0xff]
      %v3093 = vld [vmem:[%s2997 + $0x171] sm:$0xff]
      %3094 = vst [vmem:[#allocation4 + $0x38] sm:$0xff] %v3062
      %3095 = vst [vmem:[#allocation4 + $0x80] sm:$0xff] %v3063
      %3096 = vst [vmem:[#allocation4 + $0xc8] sm:$0xff] %v3064
      %3097 = vst [vmem:[#allocation4 + $0x110] sm:$0xff] %v3065
      %3098 = vst [vmem:[#allocation4 + $0x158] sm:$0xff] %v3066
      %3099 = vst [vmem:[#allocation4 + $0x1a0] sm:$0xff] %v3067
      %3100 = vst [vmem:[#allocation4 + $0x1e8] sm:$0xff] %v3068
      %3101 = vst [vmem:[#allocation4 + $0x230] sm:$0xff] %v3069
      %3102 = vst [vmem:[#allocation4 + $0x278] sm:$0xff] %v3070
      %3103 = vst [vmem:[#allocation4 + $0x2c0] sm:$0xff] %v3071
      %3104 = vst [vmem:[#allocation4 + $0x308] sm:$0xff] %v3072
      %3105 = vst [vmem:[#allocation4 + $0x350] sm:$0xff] %v3073
      %3106 = vst [vmem:[#allocation4 + $0x398] sm:$0xff] %v3074
      %3107 = vst [vmem:[#allocation4 + $0x3e0] sm:$0xff] %v3075
      %3108 = vst [vmem:[#allocation4 + $0x428] sm:$0xff] %v3076
      %3109 = vst [vmem:[#allocation4 + $0x470] sm:$0xff] %v3077
      %3110 = vst [vmem:[#allocation4 + $0x4b8] sm:$0xff] %v3078
      %3111 = vst [vmem:[#allocation4 + $0x500] sm:$0xff] %v3079
      %3112 = vst [vmem:[#allocation4 + $0x548] sm:$0xff] %v3080
      %3113 = vst [vmem:[#allocation4 + $0x590] sm:$0xff] %v3081
      %3114 = vst [vmem:[#allocation4 + $0x5d8] sm:$0xff] %v3082
      %3115 = vst [vmem:[#allocation4 + $0x620] sm:$0xff] %v3083
      %3116 = vst [vmem:[#allocation4 + $0x668] sm:$0xff] %v3084
      %3117 = vst [vmem:[#allocation4 + $0x6b0] sm:$0xff] %v3085
      %3118 = vst [vmem:[#allocation4 + $0x6f8] sm:$0xff] %v3086
      %3119 = vst [vmem:[#allocation4 + $0x740] sm:$0xff] %v3087
      %3120 = vst [vmem:[#allocation4 + $0x788] sm:$0xff] %v3088
      %3121 = vst [vmem:[#allocation4 + $0x7d0] sm:$0xff] %v3089
      %3122 = vst [vmem:[#allocation4 + $0x818] sm:$0xff] %v3090
      %3123 = vst [vmem:[#allocation4 + $0x860] sm:$0xff] %v3091
      %3124 = vst [vmem:[#allocation4 + $0x8a8] sm:$0xff] %v3092
      %3125 = vst [vmem:[#allocation4 + $0x8f0] sm:$0xff] %v3093
      %v3126 = vld [vmem:[%s2997 + $0x2] sm:$0xff]
      %v3127 = vld [vmem:[%s2997 + $0xa] sm:$0xff]
      %v3128 = vld [vmem:[%s2997 + $0x1a] sm:$0xff]
      %v3129 = vld [vmem:[%s2997 + $0x22] sm:$0xff]
      %v3130 = vld [vmem:[%s2997 + $0x32] sm:$0xff]
      %v3131 = vld [vmem:[%s2997 + $0x3a] sm:$0xff]
      %v3132 = vld [vmem:[%s2997 + $0x4a] sm:$0xff]
      %v3133 = vld [vmem:[%s2997 + $0x52] sm:$0xff]
      %v3134 = vld [vmem:[%s2997 + $0x62] sm:$0xff]
      %v3135 = vld [vmem:[%s2997 + $0x6a] sm:$0xff]
      %v3136 = vld [vmem:[%s2997 + $0x7a] sm:$0xff]
      %v3137 = vld [vmem:[%s2997 + $0x82] sm:$0xff]
      %v3138 = vld [vmem:[%s2997 + $0x92] sm:$0xff]
      %v3139 = vld [vmem:[%s2997 + $0x9a] sm:$0xff]
      %v3140 = vld [vmem:[%s2997 + $0xaa] sm:$0xff]
      %v3141 = vld [vmem:[%s2997 + $0xb2] sm:$0xff]
      %v3142 = vld [vmem:[%s2997 + $0xc2] sm:$0xff]
      %v3143 = vld [vmem:[%s2997 + $0xca] sm:$0xff]
      %v3144 = vld [vmem:[%s2997 + $0xda] sm:$0xff]
      %v3145 = vld [vmem:[%s2997 + $0xe2] sm:$0xff]
      %v3146 = vld [vmem:[%s2997 + $0xf2] sm:$0xff]
      %v3147 = vld [vmem:[%s2997 + $0xfa] sm:$0xff]
      %v3148 = vld [vmem:[%s2997 + $0x10a] sm:$0xff]
      %v3149 = vld [vmem:[%s2997 + $0x112] sm:$0xff]
      %v3150 = vld [vmem:[%s2997 + $0x122] sm:$0xff]
      %v3151 = vld [vmem:[%s2997 + $0x12a] sm:$0xff]
      %v3152 = vld [vmem:[%s2997 + $0x13a] sm:$0xff]
      %v3153 = vld [vmem:[%s2997 + $0x142] sm:$0xff]
      %v3154 = vld [vmem:[%s2997 + $0x152] sm:$0xff]
      %v3155 = vld [vmem:[%s2997 + $0x15a] sm:$0xff]
      %v3156 = vld [vmem:[%s2997 + $0x16a] sm:$0xff]
      %v3157 = vld [vmem:[%s2997 + $0x172] sm:$0xff]
      %3158 = vst [vmem:[#allocation4 + $0x40] sm:$0xff] %v3126
      %3159 = vst [vmem:[#allocation4 + $0x88] sm:$0xff] %v3127
      %3160 = vst [vmem:[#allocation4 + $0xd0] sm:$0xff] %v3128
      %3161 = vst [vmem:[#allocation4 + $0x118] sm:$0xff] %v3129
      %3162 = vst [vmem:[#allocation4 + $0x160] sm:$0xff] %v3130
      %3163 = vst [vmem:[#allocation4 + $0x1a8] sm:$0xff] %v3131
      %3164 = vst [vmem:[#allocation4 + $0x1f0] sm:$0xff] %v3132
      %3165 = vst [vmem:[#allocation4 + $0x238] sm:$0xff] %v3133
      %3166 = vst [vmem:[#allocation4 + $0x280] sm:$0xff] %v3134
      %3167 = vst [vmem:[#allocation4 + $0x2c8] sm:$0xff] %v3135
      %3168 = vst [vmem:[#allocation4 + $0x310] sm:$0xff] %v3136
      %3169 = vst [vmem:[#allocation4 + $0x358] sm:$0xff] %v3137
      %3170 = vst [vmem:[#allocation4 + $0x3a0] sm:$0xff] %v3138
      %3171 = vst [vmem:[#allocation4 + $0x3e8] sm:$0xff] %v3139
      %3172 = vst [vmem:[#allocation4 + $0x430] sm:$0xff] %v3140
      %3173 = vst [vmem:[#allocation4 + $0x478] sm:$0xff] %v3141
      %3174 = vst [vmem:[#allocation4 + $0x4c0] sm:$0xff] %v3142
      %3175 = vst [vmem:[#allocation4 + $0x508] sm:$0xff] %v3143
      %3176 = vst [vmem:[#allocation4 + $0x550] sm:$0xff] %v3144
      %3177 = vst [vmem:[#allocation4 + $0x598] sm:$0xff] %v3145
      %3178 = vst [vmem:[#allocation4 + $0x5e0] sm:$0xff] %v3146
      %3179 = vst [vmem:[#allocation4 + $0x628] sm:$0xff] %v3147
      %3180 = vst [vmem:[#allocation4 + $0x670] sm:$0xff] %v3148
      %3181 = vst [vmem:[#allocation4 + $0x6b8] sm:$0xff] %v3149
      %3182 = vst [vmem:[#allocation4 + $0x700] sm:$0xff] %v3150
      %3183 = vst [vmem:[#allocation4 + $0x748] sm:$0xff] %v3151
      %3184 = vst [vmem:[#allocation4 + $0x790] sm:$0xff] %v3152
      %3185 = vst [vmem:[#allocation4 + $0x7d8] sm:$0xff] %v3153
      %3186 = vst [vmem:[#allocation4 + $0x820] sm:$0xff] %v3154
      %3187 = vst [vmem:[#allocation4 + $0x868] sm:$0xff] %v3155
      %3188 = vst [vmem:[#allocation4 + $0x8b0] sm:$0xff] %v3156
      %3189 = vst [vmem:[#allocation4 + $0x8f8] sm:$0xff] %v3157
      %v3190 = vld [vmem:[#allocation4] sm:$0xff]
      %v3191 = vld [vmem:[#allocation4 + $0x8] sm:$0xff]
      %v3192 = vld [vmem:[#allocation4 + $0x10] sm:$0xff]
      %v3193 = vld [vmem:[#allocation4 + $0x18] sm:$0xff]
      %v3194 = vld [vmem:[#allocation4 + $0x20] sm:$0xff]
      %v3195 = vld [vmem:[#allocation4 + $0x28] sm:$0xff]
      %v3196 = vld [vmem:[#allocation4 + $0x30] sm:$0xff]
      %v3197 = vld [vmem:[#allocation4 + $0x38] sm:$0xff]
      %v3198 = vld [vmem:[#allocation4 + $0x40] sm:$0xff]
      %v3199 = vld [vmem:[#allocation4 + $0x48] sm:$0xff]
      %v3200 = vld [vmem:[#allocation4 + $0x50] sm:$0xff]
      %v3201 = vld [vmem:[#allocation4 + $0x58] sm:$0xff]
      %v3202 = vld [vmem:[#allocation4 + $0x60] sm:$0xff]
      %v3203 = vld [vmem:[#allocation4 + $0x68] sm:$0xff]
      %v3204 = vld [vmem:[#allocation4 + $0x70] sm:$0xff]
      %v3205 = vld [vmem:[#allocation4 + $0x78] sm:$0xff]
      %v3206 = vld [vmem:[#allocation4 + $0x80] sm:$0xff]
      %v3207 = vld [vmem:[#allocation4 + $0x88] sm:$0xff]
      %v3208 = vld [vmem:[#allocation4 + $0x90] sm:$0xff]
      %v3209 = vld [vmem:[#allocation4 + $0x98] sm:$0xff]
      %v3210 = vld [vmem:[#allocation4 + $0xa0] sm:$0xff]
      %v3211 = vld [vmem:[#allocation4 + $0xa8] sm:$0xff]
      %v3212 = vld [vmem:[#allocation4 + $0xb0] sm:$0xff]
      %v3213 = vld [vmem:[#allocation4 + $0xb8] sm:$0xff]
      %v3214 = vld [vmem:[#allocation4 + $0xc0] sm:$0xff]
      %v3215 = vld [vmem:[#allocation4 + $0xc8] sm:$0xff]
      %v3216 = vld [vmem:[#allocation4 + $0xd0] sm:$0xff]
      %v3217 = vld [vmem:[#allocation4 + $0xd8] sm:$0xff]
      %v3218 = vld [vmem:[#allocation4 + $0xe0] sm:$0xff]
      %v3219 = vld [vmem:[#allocation4 + $0xe8] sm:$0xff]
      %v3220 = vld [vmem:[#allocation4 + $0xf0] sm:$0xff]
      %v3221 = vld [vmem:[#allocation4 + $0xf8] sm:$0xff]
      %v3222 = vld [vmem:[#allocation4 + $0x100] sm:$0xff]
      %v3223 = vld [vmem:[#allocation4 + $0x108] sm:$0xff]
      %v3224 = vld [vmem:[#allocation4 + $0x110] sm:$0xff]
      %v3225 = vld [vmem:[#allocation4 + $0x118] sm:$0xff]
      %v3226 = vld [vmem:[#allocation4 + $0x120] sm:$0xff]
      %v3227 = vld [vmem:[#allocation4 + $0x128] sm:$0xff]
      %v3228 = vld [vmem:[#allocation4 + $0x130] sm:$0xff]
      %v3229 = vld [vmem:[#allocation4 + $0x138] sm:$0xff]
      %v3230 = vld [vmem:[#allocation4 + $0x140] sm:$0xff]
      %v3231 = vld [vmem:[#allocation4 + $0x148] sm:$0xff]
      %v3232 = vld [vmem:[#allocation4 + $0x150] sm:$0xff]
      %v3233 = vld [vmem:[#allocation4 + $0x158] sm:$0xff]
      %v3234 = vld [vmem:[#allocation4 + $0x160] sm:$0xff]
      %v3235 = vld [vmem:[#allocation4 + $0x168] sm:$0xff]
      %v3236 = vld [vmem:[#allocation4 + $0x170] sm:$0xff]
      %v3237 = vld [vmem:[#allocation4 + $0x178] sm:$0xff]
      %v3238 = vld [vmem:[#allocation4 + $0x180] sm:$0xff]
      %v3239 = vld [vmem:[#allocation4 + $0x188] sm:$0xff]
      %v3240 = vld [vmem:[#allocation4 + $0x190] sm:$0xff]
      %v3241 = vld [vmem:[#allocation4 + $0x198] sm:$0xff]
      %v3242 = vld [vmem:[#allocation4 + $0x1a0] sm:$0xff]
      %v3243 = vld [vmem:[#allocation4 + $0x1a8] sm:$0xff]
      %v3244 = vld [vmem:[#allocation4 + $0x1b0] sm:$0xff]
      %v3245 = vld [vmem:[#allocation4 + $0x1b8] sm:$0xff]
      %v3246 = vld [vmem:[#allocation4 + $0x1c0] sm:$0xff]
      %v3247 = vld [vmem:[#allocation4 + $0x1c8] sm:$0xff]
      %v3248 = vld [vmem:[#allocation4 + $0x1d0] sm:$0xff]
      %v3249 = vld [vmem:[#allocation4 + $0x1d8] sm:$0xff]
      %v3250 = vld [vmem:[#allocation4 + $0x1e0] sm:$0xff]
      %v3251 = vld [vmem:[#allocation4 + $0x1e8] sm:$0xff]
      %v3252 = vld [vmem:[#allocation4 + $0x1f0] sm:$0xff]
      %v3253 = vld [vmem:[#allocation4 + $0x1f8] sm:$0xff]
      %v3254 = vld [vmem:[#allocation4 + $0x200] sm:$0xff]
      %v3255 = vld [vmem:[#allocation4 + $0x208] sm:$0xff]
      %v3256 = vld [vmem:[#allocation4 + $0x210] sm:$0xff]
      %v3257 = vld [vmem:[#allocation4 + $0x218] sm:$0xff]
      %v3258 = vld [vmem:[#allocation4 + $0x220] sm:$0xff]
      %v3259 = vld [vmem:[#allocation4 + $0x228] sm:$0xff]
      %v3260 = vld [vmem:[#allocation4 + $0x230] sm:$0xff]
      %v3261 = vld [vmem:[#allocation4 + $0x238] sm:$0xff]
      %v3262 = vld [vmem:[#allocation4 + $0x240] sm:$0xff]
      %v3263 = vld [vmem:[#allocation4 + $0x248] sm:$0xff]
      %v3264 = vld [vmem:[#allocation4 + $0x250] sm:$0xff]
      %v3265 = vld [vmem:[#allocation4 + $0x258] sm:$0xff]
      %v3266 = vld [vmem:[#allocation4 + $0x260] sm:$0xff]
      %v3267 = vld [vmem:[#allocation4 + $0x268] sm:$0xff]
      %v3268 = vld [vmem:[#allocation4 + $0x270] sm:$0xff]
      %v3269 = vld [vmem:[#allocation4 + $0x278] sm:$0xff]
      %v3270 = vld [vmem:[#allocation4 + $0x280] sm:$0xff]
      %v3271 = vld [vmem:[#allocation4 + $0x288] sm:$0xff]
      %v3272 = vld [vmem:[#allocation4 + $0x290] sm:$0xff]
      %v3273 = vld [vmem:[#allocation4 + $0x298] sm:$0xff]
      %v3274 = vld [vmem:[#allocation4 + $0x2a0] sm:$0xff]
      %v3275 = vld [vmem:[#allocation4 + $0x2a8] sm:$0xff]
      %v3276 = vld [vmem:[#allocation4 + $0x2b0] sm:$0xff]
      %v3277 = vld [vmem:[#allocation4 + $0x2b8] sm:$0xff]
      %v3278 = vld [vmem:[#allocation4 + $0x2c0] sm:$0xff]
      %v3279 = vld [vmem:[#allocation4 + $0x2c8] sm:$0xff]
      %v3280 = vld [vmem:[#allocation4 + $0x2d0] sm:$0xff]
      %v3281 = vld [vmem:[#allocation4 + $0x2d8] sm:$0xff]
      %v3282 = vld [vmem:[#allocation4 + $0x2e0] sm:$0xff]
      %v3283 = vld [vmem:[#allocation4 + $0x2e8] sm:$0xff]
      %v3284 = vld [vmem:[#allocation4 + $0x2f0] sm:$0xff]
      %v3285 = vld [vmem:[#allocation4 + $0x2f8] sm:$0xff]
      %v3286 = vld [vmem:[#allocation4 + $0x300] sm:$0xff]
      %v3287 = vld [vmem:[#allocation4 + $0x308] sm:$0xff]
      %v3288 = vld [vmem:[#allocation4 + $0x310] sm:$0xff]
      %v3289 = vld [vmem:[#allocation4 + $0x318] sm:$0xff]
      %v3290 = vld [vmem:[#allocation4 + $0x320] sm:$0xff]
      %v3291 = vld [vmem:[#allocation4 + $0x328] sm:$0xff]
      %v3292 = vld [vmem:[#allocation4 + $0x330] sm:$0xff]
      %v3293 = vld [vmem:[#allocation4 + $0x338] sm:$0xff]
      %v3294 = vld [vmem:[#allocation4 + $0x340] sm:$0xff]
      %v3295 = vld [vmem:[#allocation4 + $0x348] sm:$0xff]
      %v3296 = vld [vmem:[#allocation4 + $0x350] sm:$0xff]
      %v3297 = vld [vmem:[#allocation4 + $0x358] sm:$0xff]
      %v3298 = vld [vmem:[#allocation4 + $0x360] sm:$0xff]
      %v3299 = vld [vmem:[#allocation4 + $0x368] sm:$0xff]
      %v3300 = vld [vmem:[#allocation4 + $0x370] sm:$0xff]
      %v3301 = vld [vmem:[#allocation4 + $0x378] sm:$0xff]
      %v3302 = vld [vmem:[#allocation4 + $0x380] sm:$0xff]
      %v3303 = vld [vmem:[#allocation4 + $0x388] sm:$0xff]
      %v3304 = vld [vmem:[#allocation4 + $0x390] sm:$0xff]
      %v3305 = vld [vmem:[#allocation4 + $0x398] sm:$0xff]
      %v3306 = vld [vmem:[#allocation4 + $0x3a0] sm:$0xff]
      %v3307 = vld [vmem:[#allocation4 + $0x3a8] sm:$0xff]
      %v3308 = vld [vmem:[#allocation4 + $0x3b0] sm:$0xff]
      %v3309 = vld [vmem:[#allocation4 + $0x3b8] sm:$0xff]
      %v3310 = vld [vmem:[#allocation4 + $0x3c0] sm:$0xff]
      %v3311 = vld [vmem:[#allocation4 + $0x3c8] sm:$0xff]
      %v3312 = vld [vmem:[#allocation4 + $0x3d0] sm:$0xff]
      %v3313 = vld [vmem:[#allocation4 + $0x3d8] sm:$0xff]
      %v3314 = vld [vmem:[#allocation4 + $0x3e0] sm:$0xff]
      %v3315 = vld [vmem:[#allocation4 + $0x3e8] sm:$0xff]
      %v3316 = vld [vmem:[#allocation4 + $0x3f0] sm:$0xff]
      %v3317 = vld [vmem:[#allocation4 + $0x3f8] sm:$0xff]
      %v3318 = vld [vmem:[#allocation4 + $0x400] sm:$0xff]
      %v3319 = vld [vmem:[#allocation4 + $0x408] sm:$0xff]
      %v3320 = vld [vmem:[#allocation4 + $0x410] sm:$0xff]
      %v3321 = vld [vmem:[#allocation4 + $0x418] sm:$0xff]
      %v3322 = vld [vmem:[#allocation4 + $0x420] sm:$0xff]
      %v3323 = vld [vmem:[#allocation4 + $0x428] sm:$0xff]
      %v3324 = vld [vmem:[#allocation4 + $0x430] sm:$0xff]
      %v3325 = vld [vmem:[#allocation4 + $0x438] sm:$0xff]
      %v3326 = vld [vmem:[#allocation4 + $0x440] sm:$0xff]
      %v3327 = vld [vmem:[#allocation4 + $0x448] sm:$0xff]
      %v3328 = vld [vmem:[#allocation4 + $0x450] sm:$0xff]
      %v3329 = vld [vmem:[#allocation4 + $0x458] sm:$0xff]
      %v3330 = vld [vmem:[#allocation4 + $0x460] sm:$0xff]
      %v3331 = vld [vmem:[#allocation4 + $0x468] sm:$0xff]
      %v3332 = vld [vmem:[#allocation4 + $0x470] sm:$0xff]
      %v3333 = vld [vmem:[#allocation4 + $0x478] sm:$0xff]
      %v3334 = vld [vmem:[#allocation4 + $0x480] sm:$0xff]
      %v3335 = vld [vmem:[#allocation4 + $0x488] sm:$0xff]
      %v3336 = vld [vmem:[#allocation4 + $0x490] sm:$0xff]
      %v3337 = vld [vmem:[#allocation4 + $0x498] sm:$0xff]
      %v3338 = vld [vmem:[#allocation4 + $0x4a0] sm:$0xff]
      %v3339 = vld [vmem:[#allocation4 + $0x4a8] sm:$0xff]
      %v3340 = vld [vmem:[#allocation4 + $0x4b0] sm:$0xff]
      %v3341 = vld [vmem:[#allocation4 + $0x4b8] sm:$0xff]
      %v3342 = vld [vmem:[#allocation4 + $0x4c0] sm:$0xff]
      %v3343 = vld [vmem:[#allocation4 + $0x4c8] sm:$0xff]
      %v3344 = vld [vmem:[#allocation4 + $0x4d0] sm:$0xff]
      %v3345 = vld [vmem:[#allocation4 + $0x4d8] sm:$0xff]
      %v3346 = vld [vmem:[#allocation4 + $0x4e0] sm:$0xff]
      %v3347 = vld [vmem:[#allocation4 + $0x4e8] sm:$0xff]
      %v3348 = vld [vmem:[#allocation4 + $0x4f0] sm:$0xff]
      %v3349 = vld [vmem:[#allocation4 + $0x4f8] sm:$0xff]
      %v3350 = vld [vmem:[#allocation4 + $0x500] sm:$0xff]
      %v3351 = vld [vmem:[#allocation4 + $0x508] sm:$0xff]
      %v3352 = vld [vmem:[#allocation4 + $0x510] sm:$0xff]
      %v3353 = vld [vmem:[#allocation4 + $0x518] sm:$0xff]
      %v3354 = vld [vmem:[#allocation4 + $0x520] sm:$0xff]
      %v3355 = vld [vmem:[#allocation4 + $0x528] sm:$0xff]
      %v3356 = vld [vmem:[#allocation4 + $0x530] sm:$0xff]
      %v3357 = vld [vmem:[#allocation4 + $0x538] sm:$0xff]
      %v3358 = vld [vmem:[#allocation4 + $0x540] sm:$0xff]
      %v3359 = vld [vmem:[#allocation4 + $0x548] sm:$0xff]
      %v3360 = vld [vmem:[#allocation4 + $0x550] sm:$0xff]
      %v3361 = vld [vmem:[#allocation4 + $0x558] sm:$0xff]
      %v3362 = vld [vmem:[#allocation4 + $0x560] sm:$0xff]
      %v3363 = vld [vmem:[#allocation4 + $0x568] sm:$0xff]
      %v3364 = vld [vmem:[#allocation4 + $0x570] sm:$0xff]
      %v3365 = vld [vmem:[#allocation4 + $0x578] sm:$0xff]
      %v3366 = vld [vmem:[#allocation4 + $0x580] sm:$0xff]
      %v3367 = vld [vmem:[#allocation4 + $0x588] sm:$0xff]
      %v3368 = vld [vmem:[#allocation4 + $0x590] sm:$0xff]
      %v3369 = vld [vmem:[#allocation4 + $0x598] sm:$0xff]
      %v3370 = vld [vmem:[#allocation4 + $0x5a0] sm:$0xff]
      %v3371 = vld [vmem:[#allocation4 + $0x5a8] sm:$0xff]
      %v3372 = vld [vmem:[#allocation4 + $0x5b0] sm:$0xff]
      %v3373 = vld [vmem:[#allocation4 + $0x5b8] sm:$0xff]
      %v3374 = vld [vmem:[#allocation4 + $0x5c0] sm:$0xff]
      %v3375 = vld [vmem:[#allocation4 + $0x5c8] sm:$0xff]
      %v3376 = vld [vmem:[#allocation4 + $0x5d0] sm:$0xff]
      %v3377 = vld [vmem:[#allocation4 + $0x5d8] sm:$0xff]
      %v3378 = vld [vmem:[#allocation4 + $0x5e0] sm:$0xff]
      %v3379 = vld [vmem:[#allocation4 + $0x5e8] sm:$0xff]
      %v3380 = vld [vmem:[#allocation4 + $0x5f0] sm:$0xff]
      %v3381 = vld [vmem:[#allocation4 + $0x5f8] sm:$0xff]
      %v3382 = vld [vmem:[#allocation4 + $0x600] sm:$0xff]
      %v3383 = vld [vmem:[#allocation4 + $0x608] sm:$0xff]
      %v3384 = vld [vmem:[#allocation4 + $0x610] sm:$0xff]
      %v3385 = vld [vmem:[#allocation4 + $0x618] sm:$0xff]
      %v3386 = vld [vmem:[#allocation4 + $0x620] sm:$0xff]
      %v3387 = vld [vmem:[#allocation4 + $0x628] sm:$0xff]
      %v3388 = vld [vmem:[#allocation4 + $0x630] sm:$0xff]
      %v3389 = vld [vmem:[#allocation4 + $0x638] sm:$0xff]
      %v3390 = vld [vmem:[#allocation4 + $0x640] sm:$0xff]
      %v3391 = vld [vmem:[#allocation4 + $0x648] sm:$0xff]
      %v3392 = vld [vmem:[#allocation4 + $0x650] sm:$0xff]
      %v3393 = vld [vmem:[#allocation4 + $0x658] sm:$0xff]
      %v3394 = vld [vmem:[#allocation4 + $0x660] sm:$0xff]
      %v3395 = vld [vmem:[#allocation4 + $0x668] sm:$0xff]
      %v3396 = vld [vmem:[#allocation4 + $0x670] sm:$0xff]
      %v3397 = vld [vmem:[#allocation4 + $0x678] sm:$0xff]
      %v3398 = vld [vmem:[#allocation4 + $0x680] sm:$0xff]
      %v3399 = vld [vmem:[#allocation4 + $0x688] sm:$0xff]
      %v3400 = vld [vmem:[#allocation4 + $0x690] sm:$0xff]
      %v3401 = vld [vmem:[#allocation4 + $0x698] sm:$0xff]
      %v3402 = vld [vmem:[#allocation4 + $0x6a0] sm:$0xff]
      %v3403 = vld [vmem:[#allocation4 + $0x6a8] sm:$0xff]
      %v3404 = vld [vmem:[#allocation4 + $0x6b0] sm:$0xff]
      %v3405 = vld [vmem:[#allocation4 + $0x6b8] sm:$0xff]
      %v3406 = vld [vmem:[#allocation4 + $0x6c0] sm:$0xff]
      %v3407 = vld [vmem:[#allocation4 + $0x6c8] sm:$0xff]
      %v3408 = vld [vmem:[#allocation4 + $0x6d0] sm:$0xff]
      %v3409 = vld [vmem:[#allocation4 + $0x6d8] sm:$0xff]
      %v3410 = vld [vmem:[#allocation4 + $0x6e0] sm:$0xff]
      %v3411 = vld [vmem:[#allocation4 + $0x6e8] sm:$0xff]
      %v3412 = vld [vmem:[#allocation4 + $0x6f0] sm:$0xff]
      %v3413 = vld [vmem:[#allocation4 + $0x6f8] sm:$0xff]
      %v3414 = vld [vmem:[#allocation4 + $0x700] sm:$0xff]
      %v3415 = vld [vmem:[#allocation4 + $0x708] sm:$0xff]
      %v3416 = vld [vmem:[#allocation4 + $0x710] sm:$0xff]
      %v3417 = vld [vmem:[#allocation4 + $0x718] sm:$0xff]
      %v3418 = vld [vmem:[#allocation4 + $0x720] sm:$0xff]
      %v3419 = vld [vmem:[#allocation4 + $0x728] sm:$0xff]
      %v3420 = vld [vmem:[#allocation4 + $0x730] sm:$0xff]
      %v3421 = vld [vmem:[#allocation4 + $0x738] sm:$0xff]
      %v3422 = vld [vmem:[#allocation4 + $0x740] sm:$0xff]
      %v3423 = vld [vmem:[#allocation4 + $0x748] sm:$0xff]
      %v3424 = vld [vmem:[#allocation4 + $0x750] sm:$0xff]
      %v3425 = vld [vmem:[#allocation4 + $0x758] sm:$0xff]
      %v3426 = vld [vmem:[#allocation4 + $0x760] sm:$0xff]
      %v3427 = vld [vmem:[#allocation4 + $0x768] sm:$0xff]
      %v3428 = vld [vmem:[#allocation4 + $0x770] sm:$0xff]
      %v3429 = vld [vmem:[#allocation4 + $0x778] sm:$0xff]
      %v3430 = vld [vmem:[#allocation4 + $0x780] sm:$0xff]
      %v3431 = vld [vmem:[#allocation4 + $0x788] sm:$0xff]
      %v3432 = vld [vmem:[#allocation4 + $0x790] sm:$0xff]
      %v3433 = vld [vmem:[#allocation4 + $0x798] sm:$0xff]
      %v3434 = vld [vmem:[#allocation4 + $0x7a0] sm:$0xff]
      %v3435 = vld [vmem:[#allocation4 + $0x7a8] sm:$0xff]
      %v3436 = vld [vmem:[#allocation4 + $0x7b0] sm:$0xff]
      %v3437 = vld [vmem:[#allocation4 + $0x7b8] sm:$0xff]
      %v3438 = vld [vmem:[#allocation4 + $0x7c0] sm:$0xff]
      %v3439 = vld [vmem:[#allocation4 + $0x7c8] sm:$0xff]
      %v3440 = vld [vmem:[#allocation4 + $0x7d0] sm:$0xff]
      %v3441 = vld [vmem:[#allocation4 + $0x7d8] sm:$0xff]
      %v3442 = vld [vmem:[#allocation4 + $0x7e0] sm:$0xff]
      %v3443 = vld [vmem:[#allocation4 + $0x7e8] sm:$0xff]
      %v3444 = vld [vmem:[#allocation4 + $0x7f0] sm:$0xff]
      %v3445 = vld [vmem:[#allocation4 + $0x7f8] sm:$0xff]
      %v3446 = vld [vmem:[#allocation4 + $0x800] sm:$0xff]
      %v3447 = vld [vmem:[#allocation4 + $0x808] sm:$0xff]
      %v3448 = vld [vmem:[#allocation4 + $0x810] sm:$0xff]
      %v3449 = vld [vmem:[#allocation4 + $0x818] sm:$0xff]
      %v3450 = vld [vmem:[#allocation4 + $0x820] sm:$0xff]
      %v3451 = vld [vmem:[#allocation4 + $0x828] sm:$0xff]
      %v3452 = vld [vmem:[#allocation4 + $0x830] sm:$0xff]
      %v3453 = vld [vmem:[#allocation4 + $0x838] sm:$0xff]
      %v3454 = vld [vmem:[#allocation4 + $0x840] sm:$0xff]
      %v3455 = vld [vmem:[#allocation4 + $0x848] sm:$0xff]
      %v3456 = vld [vmem:[#allocation4 + $0x850] sm:$0xff]
      %v3457 = vld [vmem:[#allocation4 + $0x858] sm:$0xff]
      %v3458 = vld [vmem:[#allocation4 + $0x860] sm:$0xff]
      %v3459 = vld [vmem:[#allocation4 + $0x868] sm:$0xff]
      %v3460 = vld [vmem:[#allocation4 + $0x870] sm:$0xff]
      %v3461 = vld [vmem:[#allocation4 + $0x878] sm:$0xff]
      %v3462 = vld [vmem:[#allocation4 + $0x880] sm:$0xff]
      %v3463 = vld [vmem:[#allocation4 + $0x888] sm:$0xff]
      %v3464 = vld [vmem:[#allocation4 + $0x890] sm:$0xff]
      %v3465 = vld [vmem:[#allocation4 + $0x898] sm:$0xff]
      %v3466 = vld [vmem:[#allocation4 + $0x8a0] sm:$0xff]
      %v3467 = vld [vmem:[#allocation4 + $0x8a8] sm:$0xff]
      %v3468 = vld [vmem:[#allocation4 + $0x8b0] sm:$0xff]
      %v3469 = vld [vmem:[#allocation4 + $0x8b8] sm:$0xff]
      %v3470 = vld [vmem:[#allocation4 + $0x8c0] sm:$0xff]
      %v3471 = vld [vmem:[#allocation4 + $0x8c8] sm:$0xff]
      %v3472 = vld [vmem:[#allocation4 + $0x8d0] sm:$0xff]
      %v3473 = vld [vmem:[#allocation4 + $0x8d8] sm:$0xff]
      %v3474 = vld [vmem:[#allocation4 + $0x8e0] sm:$0xff]
      %v3475 = vld [vmem:[#allocation4 + $0x8e8] sm:$0xff]
      %v3476 = vld [vmem:[#allocation4 + $0x8f0] sm:$0xff]
      %v3477 = vld [vmem:[#allocation4 + $0x8f8] sm:$0xff]
      %v3478 = vld [vmem:[%s3] sm:$0xff]
      %v3479 = vld [vmem:[%s3 + $0x8] sm:$0xff]
      %v3480 = vld [vmem:[%s3 + $0x10] sm:$0xff]
      %v3481 = vld [vmem:[%s3 + $0x18] sm:$0xff]
      %v3482 = vld [vmem:[%s3 + $0x20] sm:$0xff]
      %v3483 = vld [vmem:[%s3 + $0x28] sm:$0xff]
      %v3484 = vld [vmem:[%s3 + $0x30] sm:$0xff]
      %v3485 = vld [vmem:[%s3 + $0x38] sm:$0xff]
      %v3486 = vld [vmem:[%s3 + $0x40] sm:$0xff]
      %v3487 = vld [vmem:[%s3 + $0x48] sm:$0xff]
      %v3488 = vld [vmem:[%s3 + $0x50] sm:$0xff]
      %v3489 = vld [vmem:[%s3 + $0x58] sm:$0xff]
      %v3490 = vld [vmem:[%s3 + $0x60] sm:$0xff]
      %v3491 = vld [vmem:[%s3 + $0x68] sm:$0xff]
      %v3492 = vld [vmem:[%s3 + $0x70] sm:$0xff]
      %v3493 = vld [vmem:[%s3 + $0x78] sm:$0xff]
      %v3494 = vld [vmem:[%s3 + $0x80] sm:$0xff]
      %v3495 = vld [vmem:[%s3 + $0x88] sm:$0xff]
      %v3496 = vld [vmem:[%s3 + $0x90] sm:$0xff]
      %v3497 = vld [vmem:[%s3 + $0x98] sm:$0xff]
      %v3498 = vld [vmem:[%s3 + $0xa0] sm:$0xff]
      %v3499 = vld [vmem:[%s3 + $0xa8] sm:$0xff]
      %v3500 = vld [vmem:[%s3 + $0xb0] sm:$0xff]
      %v3501 = vld [vmem:[%s3 + $0xb8] sm:$0xff]
      %v3502 = vld [vmem:[%s3 + $0xc0] sm:$0xff]
      %v3503 = vld [vmem:[%s3 + $0xc8] sm:$0xff]
      %v3504 = vld [vmem:[%s3 + $0xd0] sm:$0xff]
      %v3505 = vld [vmem:[%s3 + $0xd8] sm:$0xff]
      %v3506 = vld [vmem:[%s3 + $0xe0] sm:$0xff]
      %v3507 = vld [vmem:[%s3 + $0xe8] sm:$0xff]
      %v3508 = vld [vmem:[%s3 + $0xf0] sm:$0xff]
      %v3509 = vld [vmem:[%s3 + $0xf8] sm:$0xff]
      %v3510 = vld [vmem:[%s3 + $0x100] sm:$0xff]
      %v3511 = vld [vmem:[%s3 + $0x108] sm:$0xff]
      %v3512 = vld [vmem:[%s3 + $0x110] sm:$0xff]
      %v3513 = vld [vmem:[%s3 + $0x118] sm:$0xff]
      %v3514 = vld [vmem:[%s3 + $0x120] sm:$0xff]
      %v3515 = vld [vmem:[%s3 + $0x128] sm:$0xff]
      %v3516 = vld [vmem:[%s3 + $0x130] sm:$0xff]
      %v3517 = vld [vmem:[%s3 + $0x138] sm:$0xff]
      %v3518 = vld [vmem:[%s3 + $0x140] sm:$0xff]
      %v3519 = vld [vmem:[%s3 + $0x148] sm:$0xff]
      %v3520 = vld [vmem:[%s3 + $0x150] sm:$0xff]
      %v3521 = vld [vmem:[%s3 + $0x158] sm:$0xff]
      %v3522 = vld [vmem:[%s3 + $0x160] sm:$0xff]
      %v3523 = vld [vmem:[%s3 + $0x168] sm:$0xff]
      %v3524 = vld [vmem:[%s3 + $0x170] sm:$0xff]
      %v3525 = vld [vmem:[%s3 + $0x178] sm:$0xff]
      %v3526 = vld [vmem:[%s3 + $0x180] sm:$0xff]
      %v3527 = vld [vmem:[%s3 + $0x188] sm:$0xff]
      %v3528 = vld [vmem:[%s3 + $0x190] sm:$0xff]
      %v3529 = vld [vmem:[%s3 + $0x198] sm:$0xff]
      %v3530 = vld [vmem:[%s3 + $0x1a0] sm:$0xff]
      %v3531 = vld [vmem:[%s3 + $0x1a8] sm:$0xff]
      %v3532 = vld [vmem:[%s3 + $0x1b0] sm:$0xff]
      %v3533 = vld [vmem:[%s3 + $0x1b8] sm:$0xff]
      %v3534 = vld [vmem:[%s3 + $0x1c0] sm:$0xff]
      %v3535 = vld [vmem:[%s3 + $0x1c8] sm:$0xff]
      %v3536 = vld [vmem:[%s3 + $0x1d0] sm:$0xff]
      %v3537 = vld [vmem:[%s3 + $0x1d8] sm:$0xff]
      %v3538 = vld [vmem:[%s3 + $0x1e0] sm:$0xff]
      %v3539 = vld [vmem:[%s3 + $0x1e8] sm:$0xff]
      %v3540 = vld [vmem:[%s3 + $0x1f0] sm:$0xff]
      %v3541 = vld [vmem:[%s3 + $0x1f8] sm:$0xff]
      %v3542 = vld [vmem:[%s3 + $0x200] sm:$0xff]
      %v3543 = vld [vmem:[%s3 + $0x208] sm:$0xff]
      %v3544 = vld [vmem:[%s3 + $0x210] sm:$0xff]
      %v3545 = vld [vmem:[%s3 + $0x218] sm:$0xff]
      %v3546 = vld [vmem:[%s3 + $0x220] sm:$0xff]
      %v3547 = vld [vmem:[%s3 + $0x228] sm:$0xff]
      %v3548 = vld [vmem:[%s3 + $0x230] sm:$0xff]
      %v3549 = vld [vmem:[%s3 + $0x238] sm:$0xff]
      %v3550 = vld [vmem:[%s3 + $0x240] sm:$0xff]
      %v3551 = vld [vmem:[%s3 + $0x248] sm:$0xff]
      %v3552 = vld [vmem:[%s3 + $0x250] sm:$0xff]
      %v3553 = vld [vmem:[%s3 + $0x258] sm:$0xff]
      %v3554 = vld [vmem:[%s3 + $0x260] sm:$0xff]
      %v3555 = vld [vmem:[%s3 + $0x268] sm:$0xff]
      %v3556 = vld [vmem:[%s3 + $0x270] sm:$0xff]
      %v3557 = vld [vmem:[%s3 + $0x278] sm:$0xff]
      %v3558 = vld [vmem:[%s3 + $0x280] sm:$0xff]
      %v3559 = vld [vmem:[%s3 + $0x288] sm:$0xff]
      %v3560 = vld [vmem:[%s3 + $0x290] sm:$0xff]
      %v3561 = vld [vmem:[%s3 + $0x298] sm:$0xff]
      %v3562 = vld [vmem:[%s3 + $0x2a0] sm:$0xff]
      %v3563 = vld [vmem:[%s3 + $0x2a8] sm:$0xff]
      %v3564 = vld [vmem:[%s3 + $0x2b0] sm:$0xff]
      %v3565 = vld [vmem:[%s3 + $0x2b8] sm:$0xff]
      %v3566 = vld [vmem:[%s3 + $0x2c0] sm:$0xff]
      %v3567 = vld [vmem:[%s3 + $0x2c8] sm:$0xff]
      %v3568 = vld [vmem:[%s3 + $0x2d0] sm:$0xff]
      %v3569 = vld [vmem:[%s3 + $0x2d8] sm:$0xff]
      %v3570 = vld [vmem:[%s3 + $0x2e0] sm:$0xff]
      %v3571 = vld [vmem:[%s3 + $0x2e8] sm:$0xff]
      %v3572 = vld [vmem:[%s3 + $0x2f0] sm:$0xff]
      %v3573 = vld [vmem:[%s3 + $0x2f8] sm:$0xff]
      %v3574 = vld [vmem:[%s3 + $0x300] sm:$0xff]
      %v3575 = vld [vmem:[%s3 + $0x308] sm:$0xff]
      %v3576 = vld [vmem:[%s3 + $0x310] sm:$0xff]
      %v3577 = vld [vmem:[%s3 + $0x318] sm:$0xff]
      %v3578 = vld [vmem:[%s3 + $0x320] sm:$0xff]
      %v3579 = vld [vmem:[%s3 + $0x328] sm:$0xff]
      %v3580 = vld [vmem:[%s3 + $0x330] sm:$0xff]
      %v3581 = vld [vmem:[%s3 + $0x338] sm:$0xff]
      %v3582 = vld [vmem:[%s3 + $0x340] sm:$0xff]
      %v3583 = vld [vmem:[%s3 + $0x348] sm:$0xff]
      %v3584 = vld [vmem:[%s3 + $0x350] sm:$0xff]
      %v3585 = vld [vmem:[%s3 + $0x358] sm:$0xff]
      %v3586 = vld [vmem:[%s3 + $0x360] sm:$0xff]
      %v3587 = vld [vmem:[%s3 + $0x368] sm:$0xff]
      %v3588 = vld [vmem:[%s3 + $0x370] sm:$0xff]
      %v3589 = vld [vmem:[%s3 + $0x378] sm:$0xff]
      %v3590 = vld [vmem:[%s3 + $0x380] sm:$0xff]
      %v3591 = vld [vmem:[%s3 + $0x388] sm:$0xff]
      %v3592 = vld [vmem:[%s3 + $0x390] sm:$0xff]
      %v3593 = vld [vmem:[%s3 + $0x398] sm:$0xff]
      %v3594 = vld [vmem:[%s3 + $0x3a0] sm:$0xff]
      %v3595 = vld [vmem:[%s3 + $0x3a8] sm:$0xff]
      %v3596 = vld [vmem:[%s3 + $0x3b0] sm:$0xff]
      %v3597 = vld [vmem:[%s3 + $0x3b8] sm:$0xff]
      %v3598 = vld [vmem:[%s3 + $0x3c0] sm:$0xff]
      %v3599 = vld [vmem:[%s3 + $0x3c8] sm:$0xff]
      %v3600 = vld [vmem:[%s3 + $0x3d0] sm:$0xff]
      %v3601 = vld [vmem:[%s3 + $0x3d8] sm:$0xff]
      %v3602 = vld [vmem:[%s3 + $0x3e0] sm:$0xff]
      %v3603 = vld [vmem:[%s3 + $0x3e8] sm:$0xff]
      %v3604 = vld [vmem:[%s3 + $0x3f0] sm:$0xff]
      %v3605 = vld [vmem:[%s3 + $0x3f8] sm:$0xff]
      %v3606 = vld [vmem:[%s3 + $0x400] sm:$0xff]
      %v3607 = vld [vmem:[%s3 + $0x408] sm:$0xff]
      %v3608 = vld [vmem:[%s3 + $0x410] sm:$0xff]
      %v3609 = vld [vmem:[%s3 + $0x418] sm:$0xff]
      %v3610 = vld [vmem:[%s3 + $0x420] sm:$0xff]
      %v3611 = vld [vmem:[%s3 + $0x428] sm:$0xff]
      %v3612 = vld [vmem:[%s3 + $0x430] sm:$0xff]
      %v3613 = vld [vmem:[%s3 + $0x438] sm:$0xff]
      %v3614 = vld [vmem:[%s3 + $0x440] sm:$0xff]
      %v3615 = vld [vmem:[%s3 + $0x448] sm:$0xff]
      %v3616 = vld [vmem:[%s3 + $0x450] sm:$0xff]
      %v3617 = vld [vmem:[%s3 + $0x458] sm:$0xff]
      %v3618 = vld [vmem:[%s3 + $0x460] sm:$0xff]
      %v3619 = vld [vmem:[%s3 + $0x468] sm:$0xff]
      %v3620 = vld [vmem:[%s3 + $0x470] sm:$0xff]
      %v3621 = vld [vmem:[%s3 + $0x478] sm:$0xff]
      %v3622 = vld [vmem:[%s4] sm:$0x1]
      %v3624 = vlaneseq
      %v3625 = vshrl.u32 %v3624, 7
      %v3626 = vsub.s32 0, %v3625
      %v3627 = vrot.slane %v3622, %v3626
      %3629 = vmatprep.subr.mxu0 0.0
      %3630 = vmatpush1.msra.mxu0 %v3493
      %3631 = vmatprep.subr.mxu0 0.0
      %3632 = vmatpush1.msra.mxu0 %v3492
      %3633 = vmatprep.subr.mxu0 0.0
      %3634 = vmatpush1.msra.mxu0 %v3491
      %3635 = vmatprep.subr.mxu0 0.0
      %3636 = vmatpush1.msra.mxu0 %v3490
      %3637 = vmatprep.subr.mxu0 0.0
      %3638 = vmatpush1.msra.mxu0 %v3489
      %3639 = vmatprep.subr.mxu0 0.0
      %3640 = vmatpush1.msra.mxu0 %v3488
      %3641 = vmatprep.subr.mxu0 0.0
      %3642 = vmatpush1.msra.mxu0 %v3487
      %3643 = vmatprep.subr.mxu0 0.0
      %3644 = vmatpush1.msra.mxu0 %v3486
      %3645 = vmatprep.subr.mxu0 0.0
      %3646 = vmatpush1.msra.mxu0 %v3485
      %3647 = vmatprep.subr.mxu0 0.0
      %3648 = vmatpush1.msra.mxu0 %v3484
      %3649 = vmatprep.subr.mxu0 0.0
      %3650 = vmatpush1.msra.mxu0 %v3483
      %3651 = vmatprep.subr.mxu0 0.0
      %3652 = vmatpush1.msra.mxu0 %v3482
      %3653 = vmatprep.subr.mxu0 0.0
      %3654 = vmatpush1.msra.mxu0 %v3481
      %3655 = vmatprep.subr.mxu0 0.0
      %3656 = vmatpush1.msra.mxu0 %v3480
      %3657 = vmatprep.subr.mxu0 0.0
      %3658 = vmatpush1.msra.mxu0 %v3479
      %3659 = vmatprep.subr.mxu0 0.0
      %3660 = vmatpush1.msra.mxu0 %v3478
      %3661 = vmatprep.subr.mxu0 0.0
      %3662 = vmatpush2.msra.mxu0 %v3509
      %3663 = vmatprep.subr.mxu0 0.0
      %3664 = vmatpush2.msra.mxu0 %v3508
      %3665 = vmatprep.subr.mxu0 0.0
      %3666 = vmatpush2.msra.mxu0 %v3507
      %3667 = vmatprep.subr.mxu0 0.0
      %3668 = vmatpush2.msra.mxu0 %v3506
      %3669 = vmatprep.subr.mxu0 0.0
      %3670 = vmatpush2.msra.mxu0 %v3505
      %3671 = vmatprep.subr.mxu0 0.0
      %3672 = vmatpush2.msra.mxu0 %v3504
      %3673 = vmatprep.subr.mxu0 0.0
      %3674 = vmatpush2.msra.mxu0 %v3503
      %3675 = vmatprep.subr.mxu0 0.0
      %3676 = vmatpush2.msra.mxu0 %v3502
      %3677 = vmatprep.subr.mxu0 0.0
      %3678 = vmatpush2.msra.mxu0 %v3501
      %3679 = vmatprep.subr.mxu0 0.0
      %3680 = vmatpush2.msra.mxu0 %v3500
      %3681 = vmatprep.subr.mxu0 0.0
      %3682 = vmatpush2.msra.mxu0 %v3499
      %3683 = vmatprep.subr.mxu0 0.0
      %3684 = vmatpush2.msra.mxu0 %v3498
      %3685 = vmatprep.subr.mxu0 0.0
      %3686 = vmatpush2.msra.mxu0 %v3497
      %3687 = vmatprep.subr.mxu0 0.0
      %3688 = vmatpush2.msra.mxu0 %v3496
      %3689 = vmatprep.subr.mxu0 0.0
      %3690 = vmatpush2.msra.mxu0 %v3495
      %3691 = vmatprep.subr.mxu0 0.0
      %3692 = vmatpush2.msra.mxu0 %v3494
      %3693 = vmatprep.mubr.f32.mxu0 %v3191
      %3694 = vmatmul.mubr.f32.gmra.mxu0 %v3190
      %v3695 = vpop.f32.mrf.mxu0
      %v3696 = vadd.f32 %v3627, %v3695
      %v3697 = vpop.f32.mrf.mxu0
      %3698 = vmatprep.mubr.f32.mxu0 %v3200
      %3699 = vmatmul.mubr.f32.gmra.mxu0 %v3199
      %v3700 = vpop.f32.mrf.mxu0
      %v3701 = vadd.f32 %v3627, %v3700
      %v3702 = vpop.f32.mrf.mxu0
      %3703 = vmatprep.mubr.f32.mxu0 %v3209
      %3704 = vmatmul.mubr.f32.gmra.mxu0 %v3208
      %v3705 = vpop.f32.mrf.mxu0
      %v3706 = vadd.f32 %v3627, %v3705
      %v3707 = vpop.f32.mrf.mxu0
      %3708 = vmatprep.mubr.f32.mxu0 %v3218
      %3709 = vmatmul.mubr.f32.gmra.mxu0 %v3217
      %v3710 = vpop.f32.mrf.mxu0
      %v3711 = vadd.f32 %v3627, %v3710
      %v3712 = vpop.f32.mrf.mxu0
      %3713 = vmatprep.mubr.f32.mxu0 %v3227
      %3714 = vmatmul.mubr.f32.gmra.mxu0 %v3226
      %v3715 = vpop.f32.mrf.mxu0
      %v3716 = vadd.f32 %v3627, %v3715
      %v3717 = vpop.f32.mrf.mxu0
      %3718 = vmatprep.mubr.f32.mxu0 %v3236
      %3719 = vmatmul.mubr.f32.gmra.mxu0 %v3235
      %v3720 = vpop.f32.mrf.mxu0
      %v3721 = vadd.f32 %v3627, %v3720
      %v3722 = vpop.f32.mrf.mxu0
      %3723 = vmatprep.mubr.f32.mxu0 %v3245
      %3724 = vmatmul.mubr.f32.gmra.mxu0 %v3244
      %v3725 = vpop.f32.mrf.mxu0
      %v3726 = vadd.f32 %v3627, %v3725
      %v3727 = vpop.f32.mrf.mxu0
      %3728 = vmatprep.mubr.f32.mxu0 %v3254
      %3729 = vmatmul.mubr.f32.gmra.mxu0 %v3253
      %v3730 = vpop.f32.mrf.mxu0
      %v3731 = vadd.f32 %v3627, %v3730
      %v3732 = vpop.f32.mrf.mxu0
      %3733 = vmatprep.mubr.f32.mxu0 %v3263
      %3734 = vmatmul.mubr.f32.gmra.mxu0 %v3262
      %v3735 = vpop.f32.mrf.mxu0
      %v3736 = vadd.f32 %v3627, %v3735
      %v3737 = vpop.f32.mrf.mxu0
      %3738 = vmatprep.mubr.f32.mxu0 %v3272
      %3739 = vmatmul.mubr.f32.gmra.mxu0 %v3271
      %v3740 = vpop.f32.mrf.mxu0
      %v3741 = vadd.f32 %v3627, %v3740
      %v3742 = vpop.f32.mrf.mxu0
      %3743 = vmatprep.mubr.f32.mxu0 %v3281
      %3744 = vmatmul.mubr.f32.gmra.mxu0 %v3280
      %v3745 = vpop.f32.mrf.mxu0
      %v3746 = vadd.f32 %v3627, %v3745
      %v3747 = vpop.f32.mrf.mxu0
      %3748 = vmatprep.mubr.f32.mxu0 %v3290
      %3749 = vmatmul.mubr.f32.gmra.mxu0 %v3289
      %v3750 = vpop.f32.mrf.mxu0
      %v3751 = vadd.f32 %v3627, %v3750
      %v3752 = vpop.f32.mrf.mxu0
      %3753 = vmatprep.mubr.f32.mxu0 %v3299
      %3754 = vmatmul.mubr.f32.gmra.mxu0 %v3298
      %v3755 = vpop.f32.mrf.mxu0
      %v3756 = vadd.f32 %v3627, %v3755
      %v3757 = vpop.f32.mrf.mxu0
      %3758 = vmatprep.mubr.f32.mxu0 %v3308
      %3759 = vmatmul.mubr.f32.gmra.mxu0 %v3307
      %v3760 = vpop.f32.mrf.mxu0
      %v3761 = vadd.f32 %v3627, %v3760
      %v3762 = vpop.f32.mrf.mxu0
      %3763 = vmatprep.mubr.f32.mxu0 %v3317
      %3764 = vmatmul.mubr.f32.gmra.mxu0 %v3316
      %v3765 = vpop.f32.mrf.mxu0
      %v3766 = vadd.f32 %v3627, %v3765
      %v3767 = vpop.f32.mrf.mxu0
      %3768 = vmatprep.mubr.f32.mxu0 %v3326
      %3769 = vmatmul.mubr.f32.gmra.mxu0 %v3325
      %v3770 = vpop.f32.mrf.mxu0
      %v3771 = vadd.f32 %v3627, %v3770
      %v3772 = vpop.f32.mrf.mxu0
      %3773 = vmatprep.mubr.f32.mxu0 %v3335
      %3774 = vmatmul.mubr.f32.gmra.mxu0 %v3334
      %v3775 = vpop.f32.mrf.mxu0
      %v3776 = vadd.f32 %v3627, %v3775
      %v3777 = vpop.f32.mrf.mxu0
      %3778 = vmatprep.mubr.f32.mxu0 %v3344
      %3779 = vmatmul.mubr.f32.gmra.mxu0 %v3343
      %v3780 = vpop.f32.mrf.mxu0
      %v3781 = vadd.f32 %v3627, %v3780
      %v3782 = vpop.f32.mrf.mxu0
      %3783 = vmatprep.mubr.f32.mxu0 %v3353
      %3784 = vmatmul.mubr.f32.gmra.mxu0 %v3352
      %v3785 = vpop.f32.mrf.mxu0
      %v3786 = vadd.f32 %v3627, %v3785
      %v3787 = vpop.f32.mrf.mxu0
      %3788 = vmatprep.mubr.f32.mxu0 %v3362
      %3789 = vmatmul.mubr.f32.gmra.mxu0 %v3361
      %v3790 = vpop.f32.mrf.mxu0
      %v3791 = vadd.f32 %v3627, %v3790
      %v3792 = vpop.f32.mrf.mxu0
      %3793 = vmatprep.mubr.f32.mxu0 %v3371
      %3794 = vmatmul.mubr.f32.gmra.mxu0 %v3370
      %v3795 = vpop.f32.mrf.mxu0
      %v3796 = vadd.f32 %v3627, %v3795
      %v3797 = vpop.f32.mrf.mxu0
      %3798 = vmatprep.mubr.f32.mxu0 %v3380
      %3799 = vmatmul.mubr.f32.gmra.mxu0 %v3379
      %v3800 = vpop.f32.mrf.mxu0
      %v3801 = vadd.f32 %v3627, %v3800
      %v3802 = vpop.f32.mrf.mxu0
      %3803 = vmatprep.mubr.f32.mxu0 %v3389
      %3804 = vmatmul.mubr.f32.gmra.mxu0 %v3388
      %v3805 = vpop.f32.mrf.mxu0
      %v3806 = vadd.f32 %v3627, %v3805
      %v3807 = vpop.f32.mrf.mxu0
      %3808 = vmatprep.mubr.f32.mxu0 %v3398
      %3809 = vmatmul.mubr.f32.gmra.mxu0 %v3397
      %v3810 = vpop.f32.mrf.mxu0
      %v3811 = vadd.f32 %v3627, %v3810
      %v3812 = vpop.f32.mrf.mxu0
      %3813 = vmatprep.mubr.f32.mxu0 %v3407
      %3814 = vmatmul.mubr.f32.gmra.mxu0 %v3406
      %v3815 = vpop.f32.mrf.mxu0
      %v3816 = vadd.f32 %v3627, %v3815
      %v3817 = vpop.f32.mrf.mxu0
      %3818 = vmatprep.mubr.f32.mxu0 %v3416
      %3819 = vmatmul.mubr.f32.gmra.mxu0 %v3415
      %v3820 = vpop.f32.mrf.mxu0
      %v3821 = vadd.f32 %v3627, %v3820
      %v3822 = vpop.f32.mrf.mxu0
      %3823 = vmatprep.mubr.f32.mxu0 %v3425
      %3824 = vmatmul.mubr.f32.gmra.mxu0 %v3424
      %v3825 = vpop.f32.mrf.mxu0
      %v3826 = vadd.f32 %v3627, %v3825
      %v3827 = vpop.f32.mrf.mxu0
      %3828 = vmatprep.mubr.f32.mxu0 %v3434
      %3829 = vmatmul.mubr.f32.gmra.mxu0 %v3433
      %v3830 = vpop.f32.mrf.mxu0
      %v3831 = vadd.f32 %v3627, %v3830
      %v3832 = vpop.f32.mrf.mxu0
      %3833 = vmatprep.mubr.f32.mxu0 %v3443
      %3834 = vmatmul.mubr.f32.gmra.mxu0 %v3442
      %v3835 = vpop.f32.mrf.mxu0
      %v3836 = vadd.f32 %v3627, %v3835
      %v3837 = vpop.f32.mrf.mxu0
      %3838 = vmatprep.mubr.f32.mxu0 %v3452
      %3839 = vmatmul.mubr.f32.gmra.mxu0 %v3451
      %v3840 = vpop.f32.mrf.mxu0
      %v3841 = vadd.f32 %v3627, %v3840
      %v3842 = vpop.f32.mrf.mxu0
      %3843 = vmatprep.mubr.f32.mxu0 %v3461
      %3844 = vmatmul.mubr.f32.gmra.mxu0 %v3460
      %v3845 = vpop.f32.mrf.mxu0
      %v3846 = vadd.f32 %v3627, %v3845
      %v3847 = vpop.f32.mrf.mxu0
      %3848 = vmatprep.mubr.f32.mxu0 %v3470
      %3849 = vmatmul.mubr.f32.gmra.mxu0 %v3469
      %v3850 = vpop.f32.mrf.mxu0
      %v3851 = vadd.f32 %v3627, %v3850
      %v3852 = vpop.f32.mrf.mxu0
      %3853 = vdwg.mxu0
      %3854 = vmatprep.subr.mxu0 0.0
      %3855 = vmatpush1.msra.mxu0 %v3525
      %3856 = vmatprep.subr.mxu0 0.0
      %3857 = vmatpush1.msra.mxu0 %v3524
      %3858 = vmatprep.subr.mxu0 0.0
      %3859 = vmatpush1.msra.mxu0 %v3523
      %3860 = vmatprep.subr.mxu0 0.0
      %3861 = vmatpush1.msra.mxu0 %v3522
      %3862 = vmatprep.subr.mxu0 0.0
      %3863 = vmatpush1.msra.mxu0 %v3521
      %3864 = vmatprep.subr.mxu0 0.0
      %3865 = vmatpush1.msra.mxu0 %v3520
      %3866 = vmatprep.subr.mxu0 0.0
      %3867 = vmatpush1.msra.mxu0 %v3519
      %3868 = vmatprep.subr.mxu0 0.0
      %3869 = vmatpush1.msra.mxu0 %v3518
      %3870 = vmatprep.subr.mxu0 0.0
      %3871 = vmatpush1.msra.mxu0 %v3517
      %3872 = vmatprep.subr.mxu0 0.0
      %3873 = vmatpush1.msra.mxu0 %v3516
      %3874 = vmatprep.subr.mxu0 0.0
      %3875 = vmatpush1.msra.mxu0 %v3515
      %3876 = vmatprep.subr.mxu0 0.0
      %3877 = vmatpush1.msra.mxu0 %v3514
      %3878 = vmatprep.subr.mxu0 0.0
      %3879 = vmatpush1.msra.mxu0 %v3513
      %3880 = vmatprep.subr.mxu0 0.0
      %3881 = vmatpush1.msra.mxu0 %v3512
      %3882 = vmatprep.subr.mxu0 0.0
      %3883 = vmatpush1.msra.mxu0 %v3511
      %3884 = vmatprep.subr.mxu0 0.0
      %3885 = vmatpush1.msra.mxu0 %v3510
      %3886 = vmatprep.subr.mxu0 0.0
      %3887 = vmatpush2.msra.mxu0 %v3541
      %3888 = vmatprep.subr.mxu0 0.0
      %3889 = vmatpush2.msra.mxu0 %v3540
      %3890 = vmatprep.subr.mxu0 0.0
      %3891 = vmatpush2.msra.mxu0 %v3539
      %3892 = vmatprep.subr.mxu0 0.0
      %3893 = vmatpush2.msra.mxu0 %v3538
      %3894 = vmatprep.subr.mxu0 0.0
      %3895 = vmatpush2.msra.mxu0 %v3537
      %3896 = vmatprep.subr.mxu0 0.0
      %3897 = vmatpush2.msra.mxu0 %v3536
      %3898 = vmatprep.subr.mxu0 0.0
      %3899 = vmatpush2.msra.mxu0 %v3535
      %3900 = vmatprep.subr.mxu0 0.0
      %3901 = vmatpush2.msra.mxu0 %v3534
      %3902 = vmatprep.subr.mxu0 0.0
      %3903 = vmatpush2.msra.mxu0 %v3533
      %3904 = vmatprep.subr.mxu0 0.0
      %3905 = vmatpush2.msra.mxu0 %v3532
      %3906 = vmatprep.subr.mxu0 0.0
      %3907 = vmatpush2.msra.mxu0 %v3531
      %3908 = vmatprep.subr.mxu0 0.0
      %3909 = vmatpush2.msra.mxu0 %v3530
      %3910 = vmatprep.subr.mxu0 0.0
      %3911 = vmatpush2.msra.mxu0 %v3529
      %3912 = vmatprep.subr.mxu0 0.0
      %3913 = vmatpush2.msra.mxu0 %v3528
      %3914 = vmatprep.subr.mxu0 0.0
      %3915 = vmatpush2.msra.mxu0 %v3527
      %3916 = vmatprep.subr.mxu0 0.0
      %3917 = vmatpush2.msra.mxu0 %v3526
      %3918 = vmatprep.mubr.f32.mxu0 %v3193
      %3919 = vmatmul.mubr.f32.gmra.mxu0 %v3192
      %v3920 = vpop.f32.mrf.mxu0
      %v3921 = vadd.f32 %v3696, %v3920
      %v3922 = vpop.f32.mrf.mxu0
      %3923 = vmatprep.mubr.f32.mxu0 %v3202
      %3924 = vmatmul.mubr.f32.gmra.mxu0 %v3201
      %v3925 = vpop.f32.mrf.mxu0
      %v3926 = vadd.f32 %v3701, %v3925
      %v3927 = vpop.f32.mrf.mxu0
      %3928 = vmatprep.mubr.f32.mxu0 %v3211
      %3929 = vmatmul.mubr.f32.gmra.mxu0 %v3210
      %v3930 = vpop.f32.mrf.mxu0
      %v3931 = vadd.f32 %v3706, %v3930
      %v3932 = vpop.f32.mrf.mxu0
      %3933 = vmatprep.mubr.f32.mxu0 %v3220
      %3934 = vmatmul.mubr.f32.gmra.mxu0 %v3219
      %v3935 = vpop.f32.mrf.mxu0
      %v3936 = vadd.f32 %v3711, %v3935
      %v3937 = vpop.f32.mrf.mxu0
      %3938 = vmatprep.mubr.f32.mxu0 %v3229
      %3939 = vmatmul.mubr.f32.gmra.mxu0 %v3228
      %v3940 = vpop.f32.mrf.mxu0
      %v3941 = vadd.f32 %v3716, %v3940
      %v3942 = vpop.f32.mrf.mxu0
      %3943 = vmatprep.mubr.f32.mxu0 %v3238
      %3944 = vmatmul.mubr.f32.gmra.mxu0 %v3237
      %v3945 = vpop.f32.mrf.mxu0
      %v3946 = vadd.f32 %v3721, %v3945
      %v3947 = vpop.f32.mrf.mxu0
      %3948 = vmatprep.mubr.f32.mxu0 %v3247
      %3949 = vmatmul.mubr.f32.gmra.mxu0 %v3246
      %v3950 = vpop.f32.mrf.mxu0
      %v3951 = vadd.f32 %v3726, %v3950
      %v3952 = vpop.f32.mrf.mxu0
      %3953 = vmatprep.mubr.f32.mxu0 %v3256
      %3954 = vmatmul.mubr.f32.gmra.mxu0 %v3255
      %v3955 = vpop.f32.mrf.mxu0
      %v3956 = vadd.f32 %v3731, %v3955
      %v3957 = vpop.f32.mrf.mxu0
      %3958 = vmatprep.mubr.f32.mxu0 %v3265
      %3959 = vmatmul.mubr.f32.gmra.mxu0 %v3264
      %v3960 = vpop.f32.mrf.mxu0
      %v3961 = vadd.f32 %v3736, %v3960
      %v3962 = vpop.f32.mrf.mxu0
      %3963 = vmatprep.mubr.f32.mxu0 %v3274
      %3964 = vmatmul.mubr.f32.gmra.mxu0 %v3273
      %v3965 = vpop.f32.mrf.mxu0
      %v3966 = vadd.f32 %v3741, %v3965
      %v3967 = vpop.f32.mrf.mxu0
      %3968 = vmatprep.mubr.f32.mxu0 %v3283
      %3969 = vmatmul.mubr.f32.gmra.mxu0 %v3282
      %v3970 = vpop.f32.mrf.mxu0
      %v3971 = vadd.f32 %v3746, %v3970
      %v3972 = vpop.f32.mrf.mxu0
      %3973 = vmatprep.mubr.f32.mxu0 %v3292
      %3974 = vmatmul.mubr.f32.gmra.mxu0 %v3291
      %v3975 = vpop.f32.mrf.mxu0
      %v3976 = vadd.f32 %v3751, %v3975
      %v3977 = vpop.f32.mrf.mxu0
      %3978 = vmatprep.mubr.f32.mxu0 %v3301
      %3979 = vmatmul.mubr.f32.gmra.mxu0 %v3300
      %v3980 = vpop.f32.mrf.mxu0
      %v3981 = vadd.f32 %v3756, %v3980
      %v3982 = vpop.f32.mrf.mxu0
      %3983 = vmatprep.mubr.f32.mxu0 %v3310
      %3984 = vmatmul.mubr.f32.gmra.mxu0 %v3309
      %v3985 = vpop.f32.mrf.mxu0
      %v3986 = vadd.f32 %v3761, %v3985
      %v3987 = vpop.f32.mrf.mxu0
      %3988 = vmatprep.mubr.f32.mxu0 %v3319
      %3989 = vmatmul.mubr.f32.gmra.mxu0 %v3318
      %v3990 = vpop.f32.mrf.mxu0
      %v3991 = vadd.f32 %v3766, %v3990
      %v3992 = vpop.f32.mrf.mxu0
      %3993 = vmatprep.mubr.f32.mxu0 %v3328
      %3994 = vmatmul.mubr.f32.gmra.mxu0 %v3327
      %v3995 = vpop.f32.mrf.mxu0
      %v3996 = vadd.f32 %v3771, %v3995
      %v3997 = vpop.f32.mrf.mxu0
      %3998 = vmatprep.mubr.f32.mxu0 %v3337
      %3999 = vmatmul.mubr.f32.gmra.mxu0 %v3336
      %v4000 = vpop.f32.mrf.mxu0
      %v4001 = vadd.f32 %v3776, %v4000
      %v4002 = vpop.f32.mrf.mxu0
      %4003 = vmatprep.mubr.f32.mxu0 %v3346
      %4004 = vmatmul.mubr.f32.gmra.mxu0 %v3345
      %v4005 = vpop.f32.mrf.mxu0
      %v4006 = vadd.f32 %v3781, %v4005
      %v4007 = vpop.f32.mrf.mxu0
      %4008 = vmatprep.mubr.f32.mxu0 %v3355
      %4009 = vmatmul.mubr.f32.gmra.mxu0 %v3354
      %v4010 = vpop.f32.mrf.mxu0
      %v4011 = vadd.f32 %v3786, %v4010
      %v4012 = vpop.f32.mrf.mxu0
      %4013 = vmatprep.mubr.f32.mxu0 %v3364
      %4014 = vmatmul.mubr.f32.gmra.mxu0 %v3363
      %v4015 = vpop.f32.mrf.mxu0
      %v4016 = vadd.f32 %v3791, %v4015
      %v4017 = vpop.f32.mrf.mxu0
      %4018 = vmatprep.mubr.f32.mxu0 %v3373
      %4019 = vmatmul.mubr.f32.gmra.mxu0 %v3372
      %v4020 = vpop.f32.mrf.mxu0
      %v4021 = vadd.f32 %v3796, %v4020
      %v4022 = vpop.f32.mrf.mxu0
      %4023 = vmatprep.mubr.f32.mxu0 %v3382
      %4024 = vmatmul.mubr.f32.gmra.mxu0 %v3381
      %v4025 = vpop.f32.mrf.mxu0
      %v4026 = vadd.f32 %v3801, %v4025
      %v4027 = vpop.f32.mrf.mxu0
      %4028 = vmatprep.mubr.f32.mxu0 %v3391
      %4029 = vmatmul.mubr.f32.gmra.mxu0 %v3390
      %v4030 = vpop.f32.mrf.mxu0
      %v4031 = vadd.f32 %v3806, %v4030
      %v4032 = vpop.f32.mrf.mxu0
      %4033 = vmatprep.mubr.f32.mxu0 %v3400
      %4034 = vmatmul.mubr.f32.gmra.mxu0 %v3399
      %v4035 = vpop.f32.mrf.mxu0
      %v4036 = vadd.f32 %v3811, %v4035
      %v4037 = vpop.f32.mrf.mxu0
      %4038 = vmatprep.mubr.f32.mxu0 %v3409
      %4039 = vmatmul.mubr.f32.gmra.mxu0 %v3408
      %v4040 = vpop.f32.mrf.mxu0
      %v4041 = vadd.f32 %v3816, %v4040
      %v4042 = vpop.f32.mrf.mxu0
      %4043 = vmatprep.mubr.f32.mxu0 %v3418
      %4044 = vmatmul.mubr.f32.gmra.mxu0 %v3417
      %v4045 = vpop.f32.mrf.mxu0
      %v4046 = vadd.f32 %v3821, %v4045
      %v4047 = vpop.f32.mrf.mxu0
      %4048 = vmatprep.mubr.f32.mxu0 %v3427
      %4049 = vmatmul.mubr.f32.gmra.mxu0 %v3426
      %v4050 = vpop.f32.mrf.mxu0
      %v4051 = vadd.f32 %v3826, %v4050
      %v4052 = vpop.f32.mrf.mxu0
      %4053 = vmatprep.mubr.f32.mxu0 %v3436
      %4054 = vmatmul.mubr.f32.gmra.mxu0 %v3435
      %v4055 = vpop.f32.mrf.mxu0
      %v4056 = vadd.f32 %v3831, %v4055
      %v4057 = vpop.f32.mrf.mxu0
      %4058 = vmatprep.mubr.f32.mxu0 %v3445
      %4059 = vmatmul.mubr.f32.gmra.mxu0 %v3444
      %v4060 = vpop.f32.mrf.mxu0
      %v4061 = vadd.f32 %v3836, %v4060
      %v4062 = vpop.f32.mrf.mxu0
      %4063 = vmatprep.mubr.f32.mxu0 %v3454
      %4064 = vmatmul.mubr.f32.gmra.mxu0 %v3453
      %v4065 = vpop.f32.mrf.mxu0
      %v4066 = vadd.f32 %v3841, %v4065
      %v4067 = vpop.f32.mrf.mxu0
      %4068 = vmatprep.mubr.f32.mxu0 %v3463
      %4069 = vmatmul.mubr.f32.gmra.mxu0 %v3462
      %v4070 = vpop.f32.mrf.mxu0
      %v4071 = vadd.f32 %v3846, %v4070
      %v4072 = vpop.f32.mrf.mxu0
      %4073 = vmatprep.mubr.f32.mxu0 %v3472
      %4074 = vmatmul.mubr.f32.gmra.mxu0 %v3471
      %v4075 = vpop.f32.mrf.mxu0
      %v4076 = vadd.f32 %v3851, %v4075
      %v4077 = vpop.f32.mrf.mxu0
      %4078 = vdwg.mxu0
      %4079 = vmatprep.subr.mxu0 0.0
      %4080 = vmatpush1.msra.mxu0 %v3557
      %4081 = vmatprep.subr.mxu0 0.0
      %4082 = vmatpush1.msra.mxu0 %v3556
      %4083 = vmatprep.subr.mxu0 0.0
      %4084 = vmatpush1.msra.mxu0 %v3555
      %4085 = vmatprep.subr.mxu0 0.0
      %4086 = vmatpush1.msra.mxu0 %v3554
      %4087 = vmatprep.subr.mxu0 0.0
      %4088 = vmatpush1.msra.mxu0 %v3553
      %4089 = vmatprep.subr.mxu0 0.0
      %4090 = vmatpush1.msra.mxu0 %v3552
      %4091 = vmatprep.subr.mxu0 0.0
      %4092 = vmatpush1.msra.mxu0 %v3551
      %4093 = vmatprep.subr.mxu0 0.0
      %4094 = vmatpush1.msra.mxu0 %v3550
      %4095 = vmatprep.subr.mxu0 0.0
      %4096 = vmatpush1.msra.mxu0 %v3549
      %4097 = vmatprep.subr.mxu0 0.0
      %4098 = vmatpush1.msra.mxu0 %v3548
      %4099 = vmatprep.subr.mxu0 0.0
      %4100 = vmatpush1.msra.mxu0 %v3547
      %4101 = vmatprep.subr.mxu0 0.0
      %4102 = vmatpush1.msra.mxu0 %v3546
      %4103 = vmatprep.subr.mxu0 0.0
      %4104 = vmatpush1.msra.mxu0 %v3545
      %4105 = vmatprep.subr.mxu0 0.0
      %4106 = vmatpush1.msra.mxu0 %v3544
      %4107 = vmatprep.subr.mxu0 0.0
      %4108 = vmatpush1.msra.mxu0 %v3543
      %4109 = vmatprep.subr.mxu0 0.0
      %4110 = vmatpush1.msra.mxu0 %v3542
      %4111 = vmatprep.subr.mxu0 0.0
      %4112 = vmatpush2.msra.mxu0 %v3573
      %4113 = vmatprep.subr.mxu0 0.0
      %4114 = vmatpush2.msra.mxu0 %v3572
      %4115 = vmatprep.subr.mxu0 0.0
      %4116 = vmatpush2.msra.mxu0 %v3571
      %4117 = vmatprep.subr.mxu0 0.0
      %4118 = vmatpush2.msra.mxu0 %v3570
      %4119 = vmatprep.subr.mxu0 0.0
      %4120 = vmatpush2.msra.mxu0 %v3569
      %4121 = vmatprep.subr.mxu0 0.0
      %4122 = vmatpush2.msra.mxu0 %v3568
      %4123 = vmatprep.subr.mxu0 0.0
      %4124 = vmatpush2.msra.mxu0 %v3567
      %4125 = vmatprep.subr.mxu0 0.0
      %4126 = vmatpush2.msra.mxu0 %v3566
      %4127 = vmatprep.subr.mxu0 0.0
      %4128 = vmatpush2.msra.mxu0 %v3565
      %4129 = vmatprep.subr.mxu0 0.0
      %4130 = vmatpush2.msra.mxu0 %v3564
      %4131 = vmatprep.subr.mxu0 0.0
      %4132 = vmatpush2.msra.mxu0 %v3563
      %4133 = vmatprep.subr.mxu0 0.0
      %4134 = vmatpush2.msra.mxu0 %v3562
      %4135 = vmatprep.subr.mxu0 0.0
      %4136 = vmatpush2.msra.mxu0 %v3561
      %4137 = vmatprep.subr.mxu0 0.0
      %4138 = vmatpush2.msra.mxu0 %v3560
      %4139 = vmatprep.subr.mxu0 0.0
      %4140 = vmatpush2.msra.mxu0 %v3559
      %4141 = vmatprep.subr.mxu0 0.0
      %4142 = vmatpush2.msra.mxu0 %v3558
      %4143 = vmatprep.mubr.f32.mxu0 %v3195
      %4144 = vmatmul.mubr.f32.gmra.mxu0 %v3194
      %v4145 = vpop.f32.mrf.mxu0
      %v4146 = vadd.f32 %v3921, %v4145
      %v4147 = vpop.f32.mrf.mxu0
      %4148 = vmatprep.mubr.f32.mxu0 %v3204
      %4149 = vmatmul.mubr.f32.gmra.mxu0 %v3203
      %v4150 = vpop.f32.mrf.mxu0
      %v4151 = vadd.f32 %v3926, %v4150
      %v4152 = vpop.f32.mrf.mxu0
      %4153 = vmatprep.mubr.f32.mxu0 %v3213
      %4154 = vmatmul.mubr.f32.gmra.mxu0 %v3212
      %v4155 = vpop.f32.mrf.mxu0
      %v4156 = vadd.f32 %v3931, %v4155
      %v4157 = vpop.f32.mrf.mxu0
      %4158 = vmatprep.mubr.f32.mxu0 %v3222
      %4159 = vmatmul.mubr.f32.gmra.mxu0 %v3221
      %v4160 = vpop.f32.mrf.mxu0
      %v4161 = vadd.f32 %v3936, %v4160
      %v4162 = vpop.f32.mrf.mxu0
      %4163 = vmatprep.mubr.f32.mxu0 %v3231
      %4164 = vmatmul.mubr.f32.gmra.mxu0 %v3230
      %v4165 = vpop.f32.mrf.mxu0
      %v4166 = vadd.f32 %v3941, %v4165
      %v4167 = vpop.f32.mrf.mxu0
      %4168 = vmatprep.mubr.f32.mxu0 %v3240
      %4169 = vmatmul.mubr.f32.gmra.mxu0 %v3239
      %v4170 = vpop.f32.mrf.mxu0
      %v4171 = vadd.f32 %v3946, %v4170
      %v4172 = vpop.f32.mrf.mxu0
      %4173 = vmatprep.mubr.f32.mxu0 %v3249
      %4174 = vmatmul.mubr.f32.gmra.mxu0 %v3248
      %v4175 = vpop.f32.mrf.mxu0
      %v4176 = vadd.f32 %v3951, %v4175
      %v4177 = vpop.f32.mrf.mxu0
      %4178 = vmatprep.mubr.f32.mxu0 %v3258
      %4179 = vmatmul.mubr.f32.gmra.mxu0 %v3257
      %v4180 = vpop.f32.mrf.mxu0
      %v4181 = vadd.f32 %v3956, %v4180
      %v4182 = vpop.f32.mrf.mxu0
      %4183 = vmatprep.mubr.f32.mxu0 %v3267
      %4184 = vmatmul.mubr.f32.gmra.mxu0 %v3266
      %v4185 = vpop.f32.mrf.mxu0
      %v4186 = vadd.f32 %v3961, %v4185
      %v4187 = vpop.f32.mrf.mxu0
      %4188 = vmatprep.mubr.f32.mxu0 %v3276
      %4189 = vmatmul.mubr.f32.gmra.mxu0 %v3275
      %v4190 = vpop.f32.mrf.mxu0
      %v4191 = vadd.f32 %v3966, %v4190
      %v4192 = vpop.f32.mrf.mxu0
      %4193 = vmatprep.mubr.f32.mxu0 %v3285
      %4194 = vmatmul.mubr.f32.gmra.mxu0 %v3284
      %v4195 = vpop.f32.mrf.mxu0
      %v4196 = vadd.f32 %v3971, %v4195
      %v4197 = vpop.f32.mrf.mxu0
      %4198 = vmatprep.mubr.f32.mxu0 %v3294
      %4199 = vmatmul.mubr.f32.gmra.mxu0 %v3293
      %v4200 = vpop.f32.mrf.mxu0
      %v4201 = vadd.f32 %v3976, %v4200
      %v4202 = vpop.f32.mrf.mxu0
      %4203 = vmatprep.mubr.f32.mxu0 %v3303
      %4204 = vmatmul.mubr.f32.gmra.mxu0 %v3302
      %v4205 = vpop.f32.mrf.mxu0
      %v4206 = vadd.f32 %v3981, %v4205
      %v4207 = vpop.f32.mrf.mxu0
      %4208 = vmatprep.mubr.f32.mxu0 %v3312
      %4209 = vmatmul.mubr.f32.gmra.mxu0 %v3311
      %v4210 = vpop.f32.mrf.mxu0
      %v4211 = vadd.f32 %v3986, %v4210
      %v4212 = vpop.f32.mrf.mxu0
      %4213 = vmatprep.mubr.f32.mxu0 %v3321
      %4214 = vmatmul.mubr.f32.gmra.mxu0 %v3320
      %v4215 = vpop.f32.mrf.mxu0
      %v4216 = vadd.f32 %v3991, %v4215
      %v4217 = vpop.f32.mrf.mxu0
      %4218 = vmatprep.mubr.f32.mxu0 %v3330
      %4219 = vmatmul.mubr.f32.gmra.mxu0 %v3329
      %v4220 = vpop.f32.mrf.mxu0
      %v4221 = vadd.f32 %v3996, %v4220
      %v4222 = vpop.f32.mrf.mxu0
      %4223 = vmatprep.mubr.f32.mxu0 %v3339
      %4224 = vmatmul.mubr.f32.gmra.mxu0 %v3338
      %v4225 = vpop.f32.mrf.mxu0
      %v4226 = vadd.f32 %v4001, %v4225
      %v4227 = vpop.f32.mrf.mxu0
      %4228 = vmatprep.mubr.f32.mxu0 %v3348
      %4229 = vmatmul.mubr.f32.gmra.mxu0 %v3347
      %v4230 = vpop.f32.mrf.mxu0
      %v4231 = vadd.f32 %v4006, %v4230
      %v4232 = vpop.f32.mrf.mxu0
      %4233 = vmatprep.mubr.f32.mxu0 %v3357
      %4234 = vmatmul.mubr.f32.gmra.mxu0 %v3356
      %v4235 = vpop.f32.mrf.mxu0
      %v4236 = vadd.f32 %v4011, %v4235
      %v4237 = vpop.f32.mrf.mxu0
      %4238 = vmatprep.mubr.f32.mxu0 %v3366
      %4239 = vmatmul.mubr.f32.gmra.mxu0 %v3365
      %v4240 = vpop.f32.mrf.mxu0
      %v4241 = vadd.f32 %v4016, %v4240
      %v4242 = vpop.f32.mrf.mxu0
      %4243 = vmatprep.mubr.f32.mxu0 %v3375
      %4244 = vmatmul.mubr.f32.gmra.mxu0 %v3374
      %v4245 = vpop.f32.mrf.mxu0
      %v4246 = vadd.f32 %v4021, %v4245
      %v4247 = vpop.f32.mrf.mxu0
      %4248 = vmatprep.mubr.f32.mxu0 %v3384
      %4249 = vmatmul.mubr.f32.gmra.mxu0 %v3383
      %v4250 = vpop.f32.mrf.mxu0
      %v4251 = vadd.f32 %v4026, %v4250
      %v4252 = vpop.f32.mrf.mxu0
      %4253 = vmatprep.mubr.f32.mxu0 %v3393
      %4254 = vmatmul.mubr.f32.gmra.mxu0 %v3392
      %v4255 = vpop.f32.mrf.mxu0
      %v4256 = vadd.f32 %v4031, %v4255
      %v4257 = vpop.f32.mrf.mxu0
      %4258 = vmatprep.mubr.f32.mxu0 %v3402
      %4259 = vmatmul.mubr.f32.gmra.mxu0 %v3401
      %v4260 = vpop.f32.mrf.mxu0
      %v4261 = vadd.f32 %v4036, %v4260
      %v4262 = vpop.f32.mrf.mxu0
      %4263 = vmatprep.mubr.f32.mxu0 %v3411
      %4264 = vmatmul.mubr.f32.gmra.mxu0 %v3410
      %v4265 = vpop.f32.mrf.mxu0
      %v4266 = vadd.f32 %v4041, %v4265
      %v4267 = vpop.f32.mrf.mxu0
      %4268 = vmatprep.mubr.f32.mxu0 %v3420
      %4269 = vmatmul.mubr.f32.gmra.mxu0 %v3419
      %v4270 = vpop.f32.mrf.mxu0
      %v4271 = vadd.f32 %v4046, %v4270
      %v4272 = vpop.f32.mrf.mxu0
      %4273 = vmatprep.mubr.f32.mxu0 %v3429
      %4274 = vmatmul.mubr.f32.gmra.mxu0 %v3428
      %v4275 = vpop.f32.mrf.mxu0
      %v4276 = vadd.f32 %v4051, %v4275
      %v4277 = vpop.f32.mrf.mxu0
      %4278 = vmatprep.mubr.f32.mxu0 %v3438
      %4279 = vmatmul.mubr.f32.gmra.mxu0 %v3437
      %v4280 = vpop.f32.mrf.mxu0
      %v4281 = vadd.f32 %v4056, %v4280
      %v4282 = vpop.f32.mrf.mxu0
      %4283 = vmatprep.mubr.f32.mxu0 %v3447
      %4284 = vmatmul.mubr.f32.gmra.mxu0 %v3446
      %v4285 = vpop.f32.mrf.mxu0
      %v4286 = vadd.f32 %v4061, %v4285
      %v4287 = vpop.f32.mrf.mxu0
      %4288 = vmatprep.mubr.f32.mxu0 %v3456
      %4289 = vmatmul.mubr.f32.gmra.mxu0 %v3455
      %v4290 = vpop.f32.mrf.mxu0
      %v4291 = vadd.f32 %v4066, %v4290
      %v4292 = vpop.f32.mrf.mxu0
      %4293 = vmatprep.mubr.f32.mxu0 %v3465
      %4294 = vmatmul.mubr.f32.gmra.mxu0 %v3464
      %v4295 = vpop.f32.mrf.mxu0
      %v4296 = vadd.f32 %v4071, %v4295
      %v4297 = vpop.f32.mrf.mxu0
      %4298 = vmatprep.mubr.f32.mxu0 %v3474
      %4299 = vmatmul.mubr.f32.gmra.mxu0 %v3473
      %v4300 = vpop.f32.mrf.mxu0
      %v4301 = vadd.f32 %v4076, %v4300
      %v4302 = vpop.f32.mrf.mxu0
      %4303 = vdwg.mxu0
      %4304 = vmatprep.subr.mxu0 0.0
      %4305 = vmatpush1.msra.mxu0 %v3589
      %4306 = vmatprep.subr.mxu0 0.0
      %4307 = vmatpush1.msra.mxu0 %v3588
      %4308 = vmatprep.subr.mxu0 0.0
      %4309 = vmatpush1.msra.mxu0 %v3587
      %4310 = vmatprep.subr.mxu0 0.0
      %4311 = vmatpush1.msra.mxu0 %v3586
      %4312 = vmatprep.subr.mxu0 0.0
      %4313 = vmatpush1.msra.mxu0 %v3585
      %4314 = vmatprep.subr.mxu0 0.0
      %4315 = vmatpush1.msra.mxu0 %v3584
      %4316 = vmatprep.subr.mxu0 0.0
      %4317 = vmatpush1.msra.mxu0 %v3583
      %4318 = vmatprep.subr.mxu0 0.0
      %4319 = vmatpush1.msra.mxu0 %v3582
      %4320 = vmatprep.subr.mxu0 0.0
      %4321 = vmatpush1.msra.mxu0 %v3581
      %4322 = vmatprep.subr.mxu0 0.0
      %4323 = vmatpush1.msra.mxu0 %v3580
      %4324 = vmatprep.subr.mxu0 0.0
      %4325 = vmatpush1.msra.mxu0 %v3579
      %4326 = vmatprep.subr.mxu0 0.0
      %4327 = vmatpush1.msra.mxu0 %v3578
      %4328 = vmatprep.subr.mxu0 0.0
      %4329 = vmatpush1.msra.mxu0 %v3577
      %4330 = vmatprep.subr.mxu0 0.0
      %4331 = vmatpush1.msra.mxu0 %v3576
      %4332 = vmatprep.subr.mxu0 0.0
      %4333 = vmatpush1.msra.mxu0 %v3575
      %4334 = vmatprep.subr.mxu0 0.0
      %4335 = vmatpush1.msra.mxu0 %v3574
      %4336 = vmatprep.subr.mxu0 0.0
      %4337 = vmatpush2.msra.mxu0 %v3605
      %4338 = vmatprep.subr.mxu0 0.0
      %4339 = vmatpush2.msra.mxu0 %v3604
      %4340 = vmatprep.subr.mxu0 0.0
      %4341 = vmatpush2.msra.mxu0 %v3603
      %4342 = vmatprep.subr.mxu0 0.0
      %4343 = vmatpush2.msra.mxu0 %v3602
      %4344 = vmatprep.subr.mxu0 0.0
      %4345 = vmatpush2.msra.mxu0 %v3601
      %4346 = vmatprep.subr.mxu0 0.0
      %4347 = vmatpush2.msra.mxu0 %v3600
      %4348 = vmatprep.subr.mxu0 0.0
      %4349 = vmatpush2.msra.mxu0 %v3599
      %4350 = vmatprep.subr.mxu0 0.0
      %4351 = vmatpush2.msra.mxu0 %v3598
      %4352 = vmatprep.subr.mxu0 0.0
      %4353 = vmatpush2.msra.mxu0 %v3597
      %4354 = vmatprep.subr.mxu0 0.0
      %4355 = vmatpush2.msra.mxu0 %v3596
      %4356 = vmatprep.subr.mxu0 0.0
      %4357 = vmatpush2.msra.mxu0 %v3595
      %4358 = vmatprep.subr.mxu0 0.0
      %4359 = vmatpush2.msra.mxu0 %v3594
      %4360 = vmatprep.subr.mxu0 0.0
      %4361 = vmatpush2.msra.mxu0 %v3593
      %4362 = vmatprep.subr.mxu0 0.0
      %4363 = vmatpush2.msra.mxu0 %v3592
      %4364 = vmatprep.subr.mxu0 0.0
      %4365 = vmatpush2.msra.mxu0 %v3591
      %4366 = vmatprep.subr.mxu0 0.0
      %4367 = vmatpush2.msra.mxu0 %v3590
      %4368 = vmatprep.mubr.f32.mxu0 %v3197
      %4369 = vmatmul.mubr.f32.gmra.mxu0 %v3196
      %v4370 = vpop.f32.mrf.mxu0
      %v4371 = vadd.f32 %v4146, %v4370
      %v4372 = vpop.f32.mrf.mxu0
      %4373 = vmatprep.mubr.f32.mxu0 %v3206
      %4374 = vmatmul.mubr.f32.gmra.mxu0 %v3205
      %v4375 = vpop.f32.mrf.mxu0
      %v4376 = vadd.f32 %v4151, %v4375
      %v4377 = vpop.f32.mrf.mxu0
      %4378 = vmatprep.mubr.f32.mxu0 %v3215
      %4379 = vmatmul.mubr.f32.gmra.mxu0 %v3214
      %v4380 = vpop.f32.mrf.mxu0
      %v4381 = vadd.f32 %v4156, %v4380
      %v4382 = vpop.f32.mrf.mxu0
      %4383 = vmatprep.mubr.f32.mxu0 %v3224
      %4384 = vmatmul.mubr.f32.gmra.mxu0 %v3223
      %v4385 = vpop.f32.mrf.mxu0
      %v4386 = vadd.f32 %v4161, %v4385
      %v4387 = vpop.f32.mrf.mxu0
      %4388 = vmatprep.mubr.f32.mxu0 %v3233
      %4389 = vmatmul.mubr.f32.gmra.mxu0 %v3232
      %v4390 = vpop.f32.mrf.mxu0
      %v4391 = vadd.f32 %v4166, %v4390
      %v4392 = vpop.f32.mrf.mxu0
      %4393 = vmatprep.mubr.f32.mxu0 %v3242
      %4394 = vmatmul.mubr.f32.gmra.mxu0 %v3241
      %v4395 = vpop.f32.mrf.mxu0
      %v4396 = vadd.f32 %v4171, %v4395
      %v4397 = vpop.f32.mrf.mxu0
      %4398 = vmatprep.mubr.f32.mxu0 %v3251
      %4399 = vmatmul.mubr.f32.gmra.mxu0 %v3250
      %v4400 = vpop.f32.mrf.mxu0
      %v4401 = vadd.f32 %v4176, %v4400
      %v4402 = vpop.f32.mrf.mxu0
      %4403 = vmatprep.mubr.f32.mxu0 %v3260
      %4404 = vmatmul.mubr.f32.gmra.mxu0 %v3259
      %v4405 = vpop.f32.mrf.mxu0
      %v4406 = vadd.f32 %v4181, %v4405
      %v4407 = vpop.f32.mrf.mxu0
      %4408 = vmatprep.mubr.f32.mxu0 %v3269
      %4409 = vmatmul.mubr.f32.gmra.mxu0 %v3268
      %v4410 = vpop.f32.mrf.mxu0
      %v4411 = vadd.f32 %v4186, %v4410
      %v4412 = vpop.f32.mrf.mxu0
      %4413 = vmatprep.mubr.f32.mxu0 %v3278
      %4414 = vmatmul.mubr.f32.gmra.mxu0 %v3277
      %v4415 = vpop.f32.mrf.mxu0
      %v4416 = vadd.f32 %v4191, %v4415
      %v4417 = vpop.f32.mrf.mxu0
      %4418 = vmatprep.mubr.f32.mxu0 %v3287
      %4419 = vmatmul.mubr.f32.gmra.mxu0 %v3286
      %v4420 = vpop.f32.mrf.mxu0
      %v4421 = vadd.f32 %v4196, %v4420
      %v4422 = vpop.f32.mrf.mxu0
      %4423 = vmatprep.mubr.f32.mxu0 %v3296
      %4424 = vmatmul.mubr.f32.gmra.mxu0 %v3295
      %v4425 = vpop.f32.mrf.mxu0
      %v4426 = vadd.f32 %v4201, %v4425
      %v4427 = vpop.f32.mrf.mxu0
      %4428 = vmatprep.mubr.f32.mxu0 %v3305
      %4429 = vmatmul.mubr.f32.gmra.mxu0 %v3304
      %v4430 = vpop.f32.mrf.mxu0
      %v4431 = vadd.f32 %v4206, %v4430
      %v4432 = vpop.f32.mrf.mxu0
      %4433 = vmatprep.mubr.f32.mxu0 %v3314
      %4434 = vmatmul.mubr.f32.gmra.mxu0 %v3313
      %v4435 = vpop.f32.mrf.mxu0
      %v4436 = vadd.f32 %v4211, %v4435
      %v4437 = vpop.f32.mrf.mxu0
      %4438 = vmatprep.mubr.f32.mxu0 %v3323
      %4439 = vmatmul.mubr.f32.gmra.mxu0 %v3322
      %v4440 = vpop.f32.mrf.mxu0
      %v4441 = vadd.f32 %v4216, %v4440
      %v4442 = vpop.f32.mrf.mxu0
      %4443 = vmatprep.mubr.f32.mxu0 %v3332
      %4444 = vmatmul.mubr.f32.gmra.mxu0 %v3331
      %v4445 = vpop.f32.mrf.mxu0
      %v4446 = vadd.f32 %v4221, %v4445
      %v4447 = vpop.f32.mrf.mxu0
      %4448 = vmatprep.mubr.f32.mxu0 %v3341
      %4449 = vmatmul.mubr.f32.gmra.mxu0 %v3340
      %v4450 = vpop.f32.mrf.mxu0
      %v4451 = vadd.f32 %v4226, %v4450
      %v4452 = vpop.f32.mrf.mxu0
      %4453 = vmatprep.mubr.f32.mxu0 %v3350
      %4454 = vmatmul.mubr.f32.gmra.mxu0 %v3349
      %v4455 = vpop.f32.mrf.mxu0
      %v4456 = vadd.f32 %v4231, %v4455
      %v4457 = vpop.f32.mrf.mxu0
      %4458 = vmatprep.mubr.f32.mxu0 %v3359
      %4459 = vmatmul.mubr.f32.gmra.mxu0 %v3358
      %v4460 = vpop.f32.mrf.mxu0
      %v4461 = vadd.f32 %v4236, %v4460
      %v4462 = vpop.f32.mrf.mxu0
      %4463 = vmatprep.mubr.f32.mxu0 %v3368
      %4464 = vmatmul.mubr.f32.gmra.mxu0 %v3367
      %v4465 = vpop.f32.mrf.mxu0
      %v4466 = vadd.f32 %v4241, %v4465
      %v4467 = vpop.f32.mrf.mxu0
      %4468 = vmatprep.mubr.f32.mxu0 %v3377
      %4469 = vmatmul.mubr.f32.gmra.mxu0 %v3376
      %v4470 = vpop.f32.mrf.mxu0
      %v4471 = vadd.f32 %v4246, %v4470
      %v4472 = vpop.f32.mrf.mxu0
      %4473 = vmatprep.mubr.f32.mxu0 %v3386
      %4474 = vmatmul.mubr.f32.gmra.mxu0 %v3385
      %v4475 = vpop.f32.mrf.mxu0
      %v4476 = vadd.f32 %v4251, %v4475
      %v4477 = vpop.f32.mrf.mxu0
      %4478 = vmatprep.mubr.f32.mxu0 %v3395
      %4479 = vmatmul.mubr.f32.gmra.mxu0 %v3394
      %v4480 = vpop.f32.mrf.mxu0
      %v4481 = vadd.f32 %v4256, %v4480
      %v4482 = vpop.f32.mrf.mxu0
      %4483 = vmatprep.mubr.f32.mxu0 %v3404
      %4484 = vmatmul.mubr.f32.gmra.mxu0 %v3403
      %v4485 = vpop.f32.mrf.mxu0
      %v4486 = vadd.f32 %v4261, %v4485
      %v4487 = vpop.f32.mrf.mxu0
      %4488 = vmatprep.mubr.f32.mxu0 %v3413
      %4489 = vmatmul.mubr.f32.gmra.mxu0 %v3412
      %v4490 = vpop.f32.mrf.mxu0
      %v4491 = vadd.f32 %v4266, %v4490
      %v4492 = vpop.f32.mrf.mxu0
      %4493 = vmatprep.mubr.f32.mxu0 %v3422
      %4494 = vmatmul.mubr.f32.gmra.mxu0 %v3421
      %v4495 = vpop.f32.mrf.mxu0
      %v4496 = vadd.f32 %v4271, %v4495
      %v4497 = vpop.f32.mrf.mxu0
      %4498 = vmatprep.mubr.f32.mxu0 %v3431
      %4499 = vmatmul.mubr.f32.gmra.mxu0 %v3430
      %v4500 = vpop.f32.mrf.mxu0
      %v4501 = vadd.f32 %v4276, %v4500
      %v4502 = vpop.f32.mrf.mxu0
      %4503 = vmatprep.mubr.f32.mxu0 %v3440
      %4504 = vmatmul.mubr.f32.gmra.mxu0 %v3439
      %v4505 = vpop.f32.mrf.mxu0
      %v4506 = vadd.f32 %v4281, %v4505
      %v4507 = vpop.f32.mrf.mxu0
      %4508 = vmatprep.mubr.f32.mxu0 %v3449
      %4509 = vmatmul.mubr.f32.gmra.mxu0 %v3448
      %v4510 = vpop.f32.mrf.mxu0
      %v4511 = vadd.f32 %v4286, %v4510
      %v4512 = vpop.f32.mrf.mxu0
      %4513 = vmatprep.mubr.f32.mxu0 %v3458
      %4514 = vmatmul.mubr.f32.gmra.mxu0 %v3457
      %v4515 = vpop.f32.mrf.mxu0
      %v4516 = vadd.f32 %v4291, %v4515
      %v4517 = vpop.f32.mrf.mxu0
      %4518 = vmatprep.mubr.f32.mxu0 %v3467
      %4519 = vmatmul.mubr.f32.gmra.mxu0 %v3466
      %v4520 = vpop.f32.mrf.mxu0
      %v4521 = vadd.f32 %v4296, %v4520
      %v4522 = vpop.f32.mrf.mxu0
      %4523 = vmatprep.mubr.f32.mxu0 %v3476
      %4524 = vmatmul.mubr.f32.gmra.mxu0 %v3475
      %v4525 = vpop.f32.mrf.mxu0
      %v4526 = vadd.f32 %v4301, %v4525
      %v4527 = vpop.f32.mrf.mxu0
      %4528 = vdwg.mxu0
      %4529 = vmatprep.subr.mxu0 0.0
      %4530 = vmatpush1.msra.mxu0 %v3621
      %4531 = vmatprep.subr.mxu0 0.0
      %4532 = vmatpush1.msra.mxu0 %v3620
      %4533 = vmatprep.subr.mxu0 0.0
      %4534 = vmatpush1.msra.mxu0 %v3619
      %4535 = vmatprep.subr.mxu0 0.0
      %4536 = vmatpush1.msra.mxu0 %v3618
      %4537 = vmatprep.subr.mxu0 0.0
      %4538 = vmatpush1.msra.mxu0 %v3617
      %4539 = vmatprep.subr.mxu0 0.0
      %4540 = vmatpush1.msra.mxu0 %v3616
      %4541 = vmatprep.subr.mxu0 0.0
      %4542 = vmatpush1.msra.mxu0 %v3615
      %4543 = vmatprep.subr.mxu0 0.0
      %4544 = vmatpush1.msra.mxu0 %v3614
      %4545 = vmatprep.subr.mxu0 0.0
      %4546 = vmatpush1.msra.mxu0 %v3613
      %4547 = vmatprep.subr.mxu0 0.0
      %4548 = vmatpush1.msra.mxu0 %v3612
      %4549 = vmatprep.subr.mxu0 0.0
      %4550 = vmatpush1.msra.mxu0 %v3611
      %4551 = vmatprep.subr.mxu0 0.0
      %4552 = vmatpush1.msra.mxu0 %v3610
      %4553 = vmatprep.subr.mxu0 0.0
      %4554 = vmatpush1.msra.mxu0 %v3609
      %4555 = vmatprep.subr.mxu0 0.0
      %4556 = vmatpush1.msra.mxu0 %v3608
      %4557 = vmatprep.subr.mxu0 0.0
      %4558 = vmatpush1.msra.mxu0 %v3607
      %4559 = vmatprep.subr.mxu0 0.0
      %4560 = vmatpush1.msra.mxu0 %v3606
      %4561 = vmatprep.subr.mxu0 0.0
      %4562 = vmatpush2.msra.mxu0 0.0
      %4563 = vmatprep.subr.mxu0 0.0
      %4564 = vmatpush2.msra.mxu0 0.0
      %4565 = vmatprep.subr.mxu0 0.0
      %4566 = vmatpush2.msra.mxu0 0.0
      %4567 = vmatprep.subr.mxu0 0.0
      %4568 = vmatpush2.msra.mxu0 0.0
      %4569 = vmatprep.subr.mxu0 0.0
      %4570 = vmatpush2.msra.mxu0 0.0
      %4571 = vmatprep.subr.mxu0 0.0
      %4572 = vmatpush2.msra.mxu0 0.0
      %4573 = vmatprep.subr.mxu0 0.0
      %4574 = vmatpush2.msra.mxu0 0.0
      %4575 = vmatprep.subr.mxu0 0.0
      %4576 = vmatpush2.msra.mxu0 0.0
      %4577 = vmatprep.subr.mxu0 0.0
      %4578 = vmatpush2.msra.mxu0 0.0
      %4579 = vmatprep.subr.mxu0 0.0
      %4580 = vmatpush2.msra.mxu0 0.0
      %4581 = vmatprep.subr.mxu0 0.0
      %4582 = vmatpush2.msra.mxu0 0.0
      %4583 = vmatprep.subr.mxu0 0.0
      %4584 = vmatpush2.msra.mxu0 0.0
      %4585 = vmatprep.subr.mxu0 0.0
      %4586 = vmatpush2.msra.mxu0 0.0
      %4587 = vmatprep.subr.mxu0 0.0
      %4588 = vmatpush2.msra.mxu0 0.0
      %4589 = vmatprep.subr.mxu0 0.0
      %4590 = vmatpush2.msra.mxu0 0.0
      %4591 = vmatprep.subr.mxu0 0.0
      %4592 = vmatpush2.msra.mxu0 0.0
      %4593 = vmatprep.mubr.f32.mxu0 0.0
      %4594 = vmatmul.mubr.f32.gmra.mxu0 %v3198
      %v4595 = vpop.f32.mrf.mxu0
      %v4596 = vadd.f32 %v4371, %v4595
      %v4597 = vpop.f32.mrf.mxu0
      %4598 = vmatprep.mubr.f32.mxu0 0.0
      %4599 = vmatmul.mubr.f32.gmra.mxu0 %v3207
      %v4600 = vpop.f32.mrf.mxu0
      %v4601 = vadd.f32 %v4376, %v4600
      %v4602 = vpop.f32.mrf.mxu0
      %4603 = vmatprep.mubr.f32.mxu0 0.0
      %4604 = vmatmul.mubr.f32.gmra.mxu0 %v3216
      %v4605 = vpop.f32.mrf.mxu0
      %v4606 = vadd.f32 %v4381, %v4605
      %v4607 = vpop.f32.mrf.mxu0
      %4608 = vmatprep.mubr.f32.mxu0 0.0
      %4609 = vmatmul.mubr.f32.gmra.mxu0 %v3225
      %v4610 = vpop.f32.mrf.mxu0
      %v4611 = vadd.f32 %v4386, %v4610
      %v4612 = vpop.f32.mrf.mxu0
      %4613 = vmatprep.mubr.f32.mxu0 0.0
      %4614 = vmatmul.mubr.f32.gmra.mxu0 %v3234
      %v4615 = vpop.f32.mrf.mxu0
      %v4616 = vadd.f32 %v4391, %v4615
      %v4617 = vpop.f32.mrf.mxu0
      %4618 = vmatprep.mubr.f32.mxu0 0.0
      %4619 = vmatmul.mubr.f32.gmra.mxu0 %v3243
      %v4620 = vpop.f32.mrf.mxu0
      %v4621 = vadd.f32 %v4396, %v4620
      %v4622 = vpop.f32.mrf.mxu0
      %4623 = vmatprep.mubr.f32.mxu0 0.0
      %4624 = vmatmul.mubr.f32.gmra.mxu0 %v3252
      %v4625 = vpop.f32.mrf.mxu0
      %v4626 = vadd.f32 %v4401, %v4625
      %v4627 = vpop.f32.mrf.mxu0
      %4628 = vmatprep.mubr.f32.mxu0 0.0
      %4629 = vmatmul.mubr.f32.gmra.mxu0 %v3261
      %v4630 = vpop.f32.mrf.mxu0
      %v4631 = vadd.f32 %v4406, %v4630
      %v4632 = vpop.f32.mrf.mxu0
      %4633 = vmatprep.mubr.f32.mxu0 0.0
      %4634 = vmatmul.mubr.f32.gmra.mxu0 %v3270
      %v4635 = vpop.f32.mrf.mxu0
      %v4636 = vadd.f32 %v4411, %v4635
      %v4637 = vpop.f32.mrf.mxu0
      %4638 = vmatprep.mubr.f32.mxu0 0.0
      %4639 = vmatmul.mubr.f32.gmra.mxu0 %v3279
      %v4640 = vpop.f32.mrf.mxu0
      %v4641 = vadd.f32 %v4416, %v4640
      %v4642 = vpop.f32.mrf.mxu0
      %4643 = vmatprep.mubr.f32.mxu0 0.0
      %4644 = vmatmul.mubr.f32.gmra.mxu0 %v3288
      %v4645 = vpop.f32.mrf.mxu0
      %v4646 = vadd.f32 %v4421, %v4645
      %v4647 = vpop.f32.mrf.mxu0
      %4648 = vmatprep.mubr.f32.mxu0 0.0
      %4649 = vmatmul.mubr.f32.gmra.mxu0 %v3297
      %v4650 = vpop.f32.mrf.mxu0
      %v4651 = vadd.f32 %v4426, %v4650
      %v4652 = vpop.f32.mrf.mxu0
      %4653 = vmatprep.mubr.f32.mxu0 0.0
      %4654 = vmatmul.mubr.f32.gmra.mxu0 %v3306
      %v4655 = vpop.f32.mrf.mxu0
      %v4656 = vadd.f32 %v4431, %v4655
      %v4657 = vpop.f32.mrf.mxu0
      %4658 = vmatprep.mubr.f32.mxu0 0.0
      %4659 = vmatmul.mubr.f32.gmra.mxu0 %v3315
      %v4660 = vpop.f32.mrf.mxu0
      %v4661 = vadd.f32 %v4436, %v4660
      %v4662 = vpop.f32.mrf.mxu0
      %4663 = vmatprep.mubr.f32.mxu0 0.0
      %4664 = vmatmul.mubr.f32.gmra.mxu0 %v3324
      %v4665 = vpop.f32.mrf.mxu0
      %v4666 = vadd.f32 %v4441, %v4665
      %v4667 = vpop.f32.mrf.mxu0
      %4668 = vmatprep.mubr.f32.mxu0 0.0
      %4669 = vmatmul.mubr.f32.gmra.mxu0 %v3333
      %v4670 = vpop.f32.mrf.mxu0
      %v4671 = vadd.f32 %v4446, %v4670
      %v4672 = vpop.f32.mrf.mxu0
      %4673 = vmatprep.mubr.f32.mxu0 0.0
      %4674 = vmatmul.mubr.f32.gmra.mxu0 %v3342
      %v4675 = vpop.f32.mrf.mxu0
      %v4676 = vadd.f32 %v4451, %v4675
      %v4677 = vpop.f32.mrf.mxu0
      %4678 = vmatprep.mubr.f32.mxu0 0.0
      %4679 = vmatmul.mubr.f32.gmra.mxu0 %v3351
      %v4680 = vpop.f32.mrf.mxu0
      %v4681 = vadd.f32 %v4456, %v4680
      %v4682 = vpop.f32.mrf.mxu0
      %4683 = vmatprep.mubr.f32.mxu0 0.0
      %4684 = vmatmul.mubr.f32.gmra.mxu0 %v3360
      %v4685 = vpop.f32.mrf.mxu0
      %v4686 = vadd.f32 %v4461, %v4685
      %v4687 = vpop.f32.mrf.mxu0
      %4688 = vmatprep.mubr.f32.mxu0 0.0
      %4689 = vmatmul.mubr.f32.gmra.mxu0 %v3369
      %v4690 = vpop.f32.mrf.mxu0
      %v4691 = vadd.f32 %v4466, %v4690
      %v4692 = vpop.f32.mrf.mxu0
      %4693 = vmatprep.mubr.f32.mxu0 0.0
      %4694 = vmatmul.mubr.f32.gmra.mxu0 %v3378
      %v4695 = vpop.f32.mrf.mxu0
      %v4696 = vadd.f32 %v4471, %v4695
      %v4697 = vpop.f32.mrf.mxu0
      %4698 = vmatprep.mubr.f32.mxu0 0.0
      %4699 = vmatmul.mubr.f32.gmra.mxu0 %v3387
      %v4700 = vpop.f32.mrf.mxu0
      %v4701 = vadd.f32 %v4476, %v4700
      %v4702 = vpop.f32.mrf.mxu0
      %4703 = vmatprep.mubr.f32.mxu0 0.0
      %4704 = vmatmul.mubr.f32.gmra.mxu0 %v3396
      %v4705 = vpop.f32.mrf.mxu0
      %v4706 = vadd.f32 %v4481, %v4705
      %v4707 = vpop.f32.mrf.mxu0
      %4708 = vmatprep.mubr.f32.mxu0 0.0
      %4709 = vmatmul.mubr.f32.gmra.mxu0 %v3405
      %v4710 = vpop.f32.mrf.mxu0
      %v4711 = vadd.f32 %v4486, %v4710
      %v4712 = vpop.f32.mrf.mxu0
      %4713 = vmatprep.mubr.f32.mxu0 0.0
      %4714 = vmatmul.mubr.f32.gmra.mxu0 %v3414
      %v4715 = vpop.f32.mrf.mxu0
      %v4716 = vadd.f32 %v4491, %v4715
      %v4717 = vpop.f32.mrf.mxu0
      %4718 = vmatprep.mubr.f32.mxu0 0.0
      %4719 = vmatmul.mubr.f32.gmra.mxu0 %v3423
      %v4720 = vpop.f32.mrf.mxu0
      %v4721 = vadd.f32 %v4496, %v4720
      %v4722 = vpop.f32.mrf.mxu0
      %4723 = vmatprep.mubr.f32.mxu0 0.0
      %4724 = vmatmul.mubr.f32.gmra.mxu0 %v3432
      %v4725 = vpop.f32.mrf.mxu0
      %v4726 = vadd.f32 %v4501, %v4725
      %v4727 = vpop.f32.mrf.mxu0
      %4728 = vmatprep.mubr.f32.mxu0 0.0
      %4729 = vmatmul.mubr.f32.gmra.mxu0 %v3441
      %v4730 = vpop.f32.mrf.mxu0
      %v4731 = vadd.f32 %v4506, %v4730
      %v4732 = vpop.f32.mrf.mxu0
      %4733 = vmatprep.mubr.f32.mxu0 0.0
      %4734 = vmatmul.mubr.f32.gmra.mxu0 %v3450
      %v4735 = vpop.f32.mrf.mxu0
      %v4736 = vadd.f32 %v4511, %v4735
      %v4737 = vpop.f32.mrf.mxu0
      %4738 = vmatprep.mubr.f32.mxu0 0.0
      %4739 = vmatmul.mubr.f32.gmra.mxu0 %v3459
      %v4740 = vpop.f32.mrf.mxu0
      %v4741 = vadd.f32 %v4516, %v4740
      %v4742 = vpop.f32.mrf.mxu0
      %4743 = vmatprep.mubr.f32.mxu0 0.0
      %4744 = vmatmul.mubr.f32.gmra.mxu0 %v3468
      %v4745 = vpop.f32.mrf.mxu0
      %v4746 = vadd.f32 %v4521, %v4745
      %v4747 = vpop.f32.mrf.mxu0
      %4748 = vmatprep.mubr.f32.mxu0 0.0
      %4749 = vmatmul.mubr.f32.gmra.mxu0 %v3477
      %v4750 = vpop.f32.mrf.mxu0
      %v4751 = vadd.f32 %v4526, %v4750
      %v4752 = vpop.f32.mrf.mxu0
      %4753 = vdwg.mxu0
      %v4754 = vmul.f32 %v4596, %v4596
      %v4755 = vmul.f32 %v4601, %v4601
      %v4756 = vmul.f32 %v4606, %v4606
      %v4757 = vmul.f32 %v4611, %v4611
      %v4758 = vmul.f32 %v4616, %v4616
      %v4759 = vmul.f32 %v4621, %v4621
      %v4760 = vmul.f32 %v4626, %v4626
      %v4761 = vmul.f32 %v4631, %v4631
      %v4762 = vmul.f32 %v4636, %v4636
      %v4763 = vmul.f32 %v4641, %v4641
      %v4764 = vmul.f32 %v4646, %v4646
      %v4765 = vmul.f32 %v4651, %v4651
      %v4766 = vmul.f32 %v4656, %v4656
      %v4767 = vmul.f32 %v4661, %v4661
      %v4768 = vmul.f32 %v4666, %v4666
      %v4769 = vmul.f32 %v4671, %v4671
      %v4770 = vmul.f32 %v4676, %v4676
      %v4771 = vmul.f32 %v4681, %v4681
      %v4772 = vmul.f32 %v4686, %v4686
      %v4773 = vmul.f32 %v4691, %v4691
      %v4774 = vmul.f32 %v4696, %v4696
      %v4775 = vmul.f32 %v4701, %v4701
      %v4776 = vmul.f32 %v4706, %v4706
      %v4777 = vmul.f32 %v4711, %v4711
      %v4778 = vmul.f32 %v4716, %v4716
      %v4779 = vmul.f32 %v4721, %v4721
      %v4780 = vmul.f32 %v4726, %v4726
      %v4781 = vmul.f32 %v4731, %v4731
      %v4782 = vmul.f32 %v4736, %v4736
      %v4783 = vmul.f32 %v4741, %v4741
      %v4784 = vmul.f32 %v4746, %v4746
      %v4785 = vmul.f32 %v4751, %v4751
      %4786 = vadd.xlane.f32.xlu0 %v4754
      %v4787 = vpop.xlane.xlu0 %4786
      %4788 = vadd.xlane.f32.xlu0 %v4755
      %v4789 = vpop.xlane.xlu0 %4788
      %4790 = vadd.xlane.f32.xlu0 %v4756
      %v4791 = vpop.xlane.xlu0 %4790
      %4792 = vadd.xlane.f32.xlu0 %v4757
      %v4793 = vpop.xlane.xlu0 %4792
      %4794 = vadd.xlane.f32.xlu0 %v4758
      %v4795 = vpop.xlane.xlu0 %4794
      %4796 = vadd.xlane.f32.xlu0 %v4759
      %v4797 = vpop.xlane.xlu0 %4796
      %4798 = vadd.xlane.f32.xlu0 %v4760
      %v4799 = vpop.xlane.xlu0 %4798
      %4800 = vadd.xlane.f32.xlu0 %v4761
      %v4801 = vpop.xlane.xlu0 %4800
      %4802 = vadd.xlane.f32.xlu0 %v4762
      %v4803 = vpop.xlane.xlu0 %4802
      %4804 = vadd.xlane.f32.xlu0 %v4763
      %v4805 = vpop.xlane.xlu0 %4804
      %4806 = vadd.xlane.f32.xlu0 %v4764
      %v4807 = vpop.xlane.xlu0 %4806
      %4808 = vadd.xlane.f32.xlu0 %v4765
      %v4809 = vpop.xlane.xlu0 %4808
      %4810 = vadd.xlane.f32.xlu0 %v4766
      %v4811 = vpop.xlane.xlu0 %4810
      %4812 = vadd.xlane.f32.xlu0 %v4767
      %v4813 = vpop.xlane.xlu0 %4812
      %4814 = vadd.xlane.f32.xlu0 %v4768
      %v4815 = vpop.xlane.xlu0 %4814
      %4816 = vadd.xlane.f32.xlu0 %v4769
      %v4817 = vpop.xlane.xlu0 %4816
      %4818 = vadd.xlane.f32.xlu0 %v4770
      %v4819 = vpop.xlane.xlu0 %4818
      %4820 = vadd.xlane.f32.xlu0 %v4771
      %v4821 = vpop.xlane.xlu0 %4820
      %4822 = vadd.xlane.f32.xlu0 %v4772
      %v4823 = vpop.xlane.xlu0 %4822
      %4824 = vadd.xlane.f32.xlu0 %v4773
      %v4825 = vpop.xlane.xlu0 %4824
      %4826 = vadd.xlane.f32.xlu0 %v4774
      %v4827 = vpop.xlane.xlu0 %4826
      %4828 = vadd.xlane.f32.xlu0 %v4775
      %v4829 = vpop.xlane.xlu0 %4828
      %4830 = vadd.xlane.f32.xlu0 %v4776
      %v4831 = vpop.xlane.xlu0 %4830
      %4832 = vadd.xlane.f32.xlu0 %v4777
      %v4833 = vpop.xlane.xlu0 %4832
      %4834 = vadd.xlane.f32.xlu0 %v4778
      %v4835 = vpop.xlane.xlu0 %4834
      %4836 = vadd.xlane.f32.xlu0 %v4779
      %v4837 = vpop.xlane.xlu0 %4836
      %4838 = vadd.xlane.f32.xlu0 %v4780
      %v4839 = vpop.xlane.xlu0 %4838
      %4840 = vadd.xlane.f32.xlu0 %v4781
      %v4841 = vpop.xlane.xlu0 %4840
      %4842 = vadd.xlane.f32.xlu0 %v4782
      %v4843 = vpop.xlane.xlu0 %4842
      %4844 = vadd.xlane.f32.xlu0 %v4783
      %v4845 = vpop.xlane.xlu0 %4844
      %4846 = vadd.xlane.f32.xlu0 %v4784
      %v4847 = vpop.xlane.xlu0 %4846
      %4848 = vadd.xlane.f32.xlu0 %v4785
      %v4849 = vpop.xlane.xlu0 %4848
      %v4850 = vmul.f32 %v4787, 0.125
      %v4851 = vmul.f32 %v4789, 0.125
      %v4852 = vmul.f32 %v4791, 0.125
      %v4853 = vmul.f32 %v4793, 0.125
      %v4854 = vmul.f32 %v4795, 0.125
      %v4855 = vmul.f32 %v4797, 0.125
      %v4856 = vmul.f32 %v4799, 0.125
      %v4857 = vmul.f32 %v4801, 0.125
      %v4858 = vmul.f32 %v4803, 0.125
      %v4859 = vmul.f32 %v4805, 0.125
      %v4860 = vmul.f32 %v4807, 0.125
      %v4861 = vmul.f32 %v4809, 0.125
      %v4862 = vmul.f32 %v4811, 0.125
      %v4863 = vmul.f32 %v4813, 0.125
      %v4864 = vmul.f32 %v4815, 0.125
      %v4865 = vmul.f32 %v4817, 0.125
      %v4866 = vmul.f32 %v4819, 0.125
      %v4867 = vmul.f32 %v4821, 0.125
      %v4868 = vmul.f32 %v4823, 0.125
      %v4869 = vmul.f32 %v4825, 0.125
      %v4870 = vmul.f32 %v4827, 0.125
      %v4871 = vmul.f32 %v4829, 0.125
      %v4872 = vmul.f32 %v4831, 0.125
      %v4873 = vmul.f32 %v4833, 0.125
      %v4874 = vmul.f32 %v4835, 0.125
      %v4875 = vmul.f32 %v4837, 0.125
      %v4876 = vmul.f32 %v4839, 0.125
      %v4877 = vmul.f32 %v4841, 0.125
      %v4878 = vmul.f32 %v4843, 0.125
      %v4879 = vmul.f32 %v4845, 0.125
      %v4880 = vmul.f32 %v4847, 0.125
      %v4881 = vmul.f32 %v4849, 0.125
      %v4882 = vadd.f32 %v4850, 1e-08
      %v4883 = vadd.f32 %v4851, 1e-08
      %v4884 = vadd.f32 %v4852, 1e-08
      %v4885 = vadd.f32 %v4853, 1e-08
      %v4886 = vadd.f32 %v4854, 1e-08
      %v4887 = vadd.f32 %v4855, 1e-08
      %v4888 = vadd.f32 %v4856, 1e-08
      %v4889 = vadd.f32 %v4857, 1e-08
      %v4890 = vadd.f32 %v4858, 1e-08
      %v4891 = vadd.f32 %v4859, 1e-08
      %v4892 = vadd.f32 %v4860, 1e-08
      %v4893 = vadd.f32 %v4861, 1e-08
      %v4894 = vadd.f32 %v4862, 1e-08
      %v4895 = vadd.f32 %v4863, 1e-08
      %v4896 = vadd.f32 %v4864, 1e-08
      %v4897 = vadd.f32 %v4865, 1e-08
      %v4898 = vadd.f32 %v4866, 1e-08
      %v4899 = vadd.f32 %v4867, 1e-08
      %v4900 = vadd.f32 %v4868, 1e-08
      %v4901 = vadd.f32 %v4869, 1e-08
      %v4902 = vadd.f32 %v4870, 1e-08
      %v4903 = vadd.f32 %v4871, 1e-08
      %v4904 = vadd.f32 %v4872, 1e-08
      %v4905 = vadd.f32 %v4873, 1e-08
      %v4906 = vadd.f32 %v4874, 1e-08
      %v4907 = vadd.f32 %v4875, 1e-08
      %v4908 = vadd.f32 %v4876, 1e-08
      %v4909 = vadd.f32 %v4877, 1e-08
      %v4910 = vadd.f32 %v4878, 1e-08
      %v4911 = vadd.f32 %v4879, 1e-08
      %v4912 = vadd.f32 %v4880, 1e-08
      %v4913 = vadd.f32 %v4881, 1e-08
      %v4914 = vrsqrt.pop %v4882
      %v4915 = vrsqrt.pop %v4883
      %v4916 = vrsqrt.pop %v4884
      %v4917 = vrsqrt.pop %v4885
      %v4918 = vrsqrt.pop %v4886
      %v4919 = vrsqrt.pop %v4887
      %v4920 = vrsqrt.pop %v4888
      %v4921 = vrsqrt.pop %v4889
      %v4922 = vrsqrt.pop %v4890
      %v4923 = vrsqrt.pop %v4891
      %v4924 = vrsqrt.pop %v4892
      %v4925 = vrsqrt.pop %v4893
      %v4926 = vrsqrt.pop %v4894
      %v4927 = vrsqrt.pop %v4895
      %v4928 = vrsqrt.pop %v4896
      %v4929 = vrsqrt.pop %v4897
      %v4930 = vrsqrt.pop %v4898
      %v4931 = vrsqrt.pop %v4899
      %v4932 = vrsqrt.pop %v4900
      %v4933 = vrsqrt.pop %v4901
      %v4934 = vrsqrt.pop %v4902
      %v4935 = vrsqrt.pop %v4903
      %v4936 = vrsqrt.pop %v4904
      %v4937 = vrsqrt.pop %v4905
      %v4938 = vrsqrt.pop %v4906
      %v4939 = vrsqrt.pop %v4907
      %v4940 = vrsqrt.pop %v4908
      %v4941 = vrsqrt.pop %v4909
      %v4942 = vrsqrt.pop %v4910
      %v4943 = vrsqrt.pop %v4911
      %v4944 = vrsqrt.pop %v4912
      %v4945 = vrsqrt.pop %v4913
      %v4946 = vmul.f32 %v4596, %v4914
      %v4947 = vmul.f32 %v4601, %v4915
      %v4948 = vmul.f32 %v4606, %v4916
      %v4949 = vmul.f32 %v4611, %v4917
      %v4950 = vmul.f32 %v4616, %v4918
      %v4951 = vmul.f32 %v4621, %v4919
      %v4952 = vmul.f32 %v4626, %v4920
      %v4953 = vmul.f32 %v4631, %v4921
      %v4954 = vmul.f32 %v4636, %v4922
      %v4955 = vmul.f32 %v4641, %v4923
      %v4956 = vmul.f32 %v4646, %v4924
      %v4957 = vmul.f32 %v4651, %v4925
      %v4958 = vmul.f32 %v4656, %v4926
      %v4959 = vmul.f32 %v4661, %v4927
      %v4960 = vmul.f32 %v4666, %v4928
      %v4961 = vmul.f32 %v4671, %v4929
      %v4962 = vmul.f32 %v4676, %v4930
      %v4963 = vmul.f32 %v4681, %v4931
      %v4964 = vmul.f32 %v4686, %v4932
      %v4965 = vmul.f32 %v4691, %v4933
      %v4966 = vmul.f32 %v4696, %v4934
      %v4967 = vmul.f32 %v4701, %v4935
      %v4968 = vmul.f32 %v4706, %v4936
      %v4969 = vmul.f32 %v4711, %v4937
      %v4970 = vmul.f32 %v4716, %v4938
      %v4971 = vmul.f32 %v4721, %v4939
      %v4972 = vmul.f32 %v4726, %v4940
      %v4973 = vmul.f32 %v4731, %v4941
      %v4974 = vmul.f32 %v4736, %v4942
      %v4975 = vmul.f32 %v4741, %v4943
      %v4976 = vmul.f32 %v4746, %v4944
      %v4977 = vmul.f32 %v4751, %v4945
      %vm4978 = vcmp.gt.f32.partialorder %v4946, 0.0
      %vm4979 = vcmp.gt.f32.partialorder %v4947, 0.0
      %vm4980 = vcmp.gt.f32.partialorder %v4948, 0.0
      %vm4981 = vcmp.gt.f32.partialorder %v4949, 0.0
      %vm4982 = vcmp.gt.f32.partialorder %v4950, 0.0
      %vm4983 = vcmp.gt.f32.partialorder %v4951, 0.0
      %vm4984 = vcmp.gt.f32.partialorder %v4952, 0.0
      %vm4985 = vcmp.gt.f32.partialorder %v4953, 0.0
      %vm4986 = vcmp.gt.f32.partialorder %v4954, 0.0
      %vm4987 = vcmp.gt.f32.partialorder %v4955, 0.0
      %vm4988 = vcmp.gt.f32.partialorder %v4956, 0.0
      %vm4989 = vcmp.gt.f32.partialorder %v4957, 0.0
      %vm4990 = vcmp.gt.f32.partialorder %v4958, 0.0
      %vm4991 = vcmp.gt.f32.partialorder %v4959, 0.0
      %vm4992 = vcmp.gt.f32.partialorder %v4960, 0.0
      %vm4993 = vcmp.gt.f32.partialorder %v4961, 0.0
      %vm4994 = vcmp.gt.f32.partialorder %v4962, 0.0
      %vm4995 = vcmp.gt.f32.partialorder %v4963, 0.0
      %vm4996 = vcmp.gt.f32.partialorder %v4964, 0.0
      %vm4997 = vcmp.gt.f32.partialorder %v4965, 0.0
      %vm4998 = vcmp.gt.f32.partialorder %v4966, 0.0
      %vm4999 = vcmp.gt.f32.partialorder %v4967, 0.0
      %vm5000 = vcmp.gt.f32.partialorder %v4968, 0.0
      %vm5001 = vcmp.gt.f32.partialorder %v4969, 0.0
      %vm5002 = vcmp.gt.f32.partialorder %v4970, 0.0
      %vm5003 = vcmp.gt.f32.partialorder %v4971, 0.0
      %vm5004 = vcmp.gt.f32.partialorder %v4972, 0.0
      %vm5005 = vcmp.gt.f32.partialorder %v4973, 0.0
      %vm5006 = vcmp.gt.f32.partialorder %v4974, 0.0
      %vm5007 = vcmp.gt.f32.partialorder %v4975, 0.0
      %vm5008 = vcmp.gt.f32.partialorder %v4976, 0.0
      %vm5009 = vcmp.gt.f32.partialorder %v4977, 0.0
      %v5010 = vmul.f32 %v4946, 0.1
      %v5011 = vmul.f32 %v4947, 0.1
      %v5012 = vmul.f32 %v4948, 0.1
      %v5013 = vmul.f32 %v4949, 0.1
      %v5014 = vmul.f32 %v4950, 0.1
      %v5015 = vmul.f32 %v4951, 0.1
      %v5016 = vmul.f32 %v4952, 0.1
      %v5017 = vmul.f32 %v4953, 0.1
      %v5018 = vmul.f32 %v4954, 0.1
      %v5019 = vmul.f32 %v4955, 0.1
      %v5020 = vmul.f32 %v4956, 0.1
      %v5021 = vmul.f32 %v4957, 0.1
      %v5022 = vmul.f32 %v4958, 0.1
      %v5023 = vmul.f32 %v4959, 0.1
      %v5024 = vmul.f32 %v4960, 0.1
      %v5025 = vmul.f32 %v4961, 0.1
      %v5026 = vmul.f32 %v4962, 0.1
      %v5027 = vmul.f32 %v4963, 0.1
      %v5028 = vmul.f32 %v4964, 0.1
      %v5029 = vmul.f32 %v4965, 0.1
      %v5030 = vmul.f32 %v4966, 0.1
      %v5031 = vmul.f32 %v4967, 0.1
      %v5032 = vmul.f32 %v4968, 0.1
      %v5033 = vmul.f32 %v4969, 0.1
      %v5034 = vmul.f32 %v4970, 0.1
      %v5035 = vmul.f32 %v4971, 0.1
      %v5036 = vmul.f32 %v4972, 0.1
      %v5037 = vmul.f32 %v4973, 0.1
      %v5038 = vmul.f32 %v4974, 0.1
      %v5039 = vmul.f32 %v4975, 0.1
      %v5040 = vmul.f32 %v4976, 0.1
      %v5041 = vmul.f32 %v4977, 0.1
      %v5042 = vsel %vm4978, %v4946, %v5010
      %v5043 = vsel %vm4979, %v4947, %v5011
      %v5044 = vsel %vm4980, %v4948, %v5012
      %v5045 = vsel %vm4981, %v4949, %v5013
      %v5046 = vsel %vm4982, %v4950, %v5014
      %v5047 = vsel %vm4983, %v4951, %v5015
      %v5048 = vsel %vm4984, %v4952, %v5016
      %v5049 = vsel %vm4985, %v4953, %v5017
      %v5050 = vsel %vm4986, %v4954, %v5018
      %v5051 = vsel %vm4987, %v4955, %v5019
      %v5052 = vsel %vm4988, %v4956, %v5020
      %v5053 = vsel %vm4989, %v4957, %v5021
      %v5054 = vsel %vm4990, %v4958, %v5022
      %v5055 = vsel %vm4991, %v4959, %v5023
      %v5056 = vsel %vm4992, %v4960, %v5024
      %v5057 = vsel %vm4993, %v4961, %v5025
      %v5058 = vsel %vm4994, %v4962, %v5026
      %v5059 = vsel %vm4995, %v4963, %v5027
      %v5060 = vsel %vm4996, %v4964, %v5028
      %v5061 = vsel %vm4997, %v4965, %v5029
      %v5062 = vsel %vm4998, %v4966, %v5030
      %v5063 = vsel %vm4999, %v4967, %v5031
      %v5064 = vsel %vm5000, %v4968, %v5032
      %v5065 = vsel %vm5001, %v4969, %v5033
      %v5066 = vsel %vm5002, %v4970, %v5034
      %v5067 = vsel %vm5003, %v4971, %v5035
      %v5068 = vsel %vm5004, %v4972, %v5036
      %v5069 = vsel %vm5005, %v4973, %v5037
      %v5070 = vsel %vm5006, %v4974, %v5038
      %v5071 = vsel %vm5007, %v4975, %v5039
      %v5072 = vsel %vm5008, %v4976, %v5040
      %v5073 = vsel %vm5009, %v4977, %v5041
      %5074 = vxpose.xlu0.b32.start [1/16] %v5042, 128
      %5075 = vxpose.xlu0.b32.cont [2/16] %v5043, 128
      %5076 = vxpose.xlu0.b32.cont [3/16] %v5044, 128
      %5077 = vxpose.xlu0.b32.cont [4/16] %v5045, 128
      %5078 = vxpose.xlu0.b32.cont [5/16] %v5046, 128
      %5079 = vxpose.xlu0.b32.cont [6/16] %v5047, 128
      %5080 = vxpose.xlu0.b32.cont [7/16] %v5048, 128
      %5081 = vxpose.xlu0.b32.cont [8/16] %v5049, 128
      %5082 = vxpose.xlu0.b32.cont [9/16] %v5050, 128
      %5083 = vxpose.xlu0.b32.cont [10/16] %v5051, 128
      %5084 = vxpose.xlu0.b32.cont [11/16] %v5052, 128
      %5085 = vxpose.xlu0.b32.cont [12/16] %v5053, 128
      %5086 = vxpose.xlu0.b32.cont [13/16] %v5054, 128
      %5087 = vxpose.xlu0.b32.cont [14/16] %v5055, 128
      %5088 = vxpose.xlu0.b32.cont [15/16] %v5056, 128
      %5089 = vxpose.xlu0.b32.end [16/16] %v5057, 128
      %v5090 = vpop.trf.xlu0
      %v5091 = vpop.trf.xlu0
      %v5092 = vpop.trf.xlu0
      %v5093 = vpop.trf.xlu0
      %v5094 = vpop.trf.xlu0
      %v5095 = vpop.trf.xlu0
      %v5096 = vpop.trf.xlu0
      %v5097 = vpop.trf.xlu0
      %v5098 = vpop.trf.xlu0
      %v5099 = vpop.trf.xlu0
      %v5100 = vpop.trf.xlu0
      %v5101 = vpop.trf.xlu0
      %v5102 = vpop.trf.xlu0
      %v5103 = vpop.trf.xlu0
      %v5104 = vpop.trf.xlu0
      %v5105 = vpop.trf.xlu0
      %5106 = vxpose.xlu0.b32.start [1/16] %v5058, 128
      %5107 = vxpose.xlu0.b32.cont [2/16] %v5059, 128
      %5108 = vxpose.xlu0.b32.cont [3/16] %v5060, 128
      %5109 = vxpose.xlu0.b32.cont [4/16] %v5061, 128
      %5110 = vxpose.xlu0.b32.cont [5/16] %v5062, 128
      %5111 = vxpose.xlu0.b32.cont [6/16] %v5063, 128
      %5112 = vxpose.xlu0.b32.cont [7/16] %v5064, 128
      %5113 = vxpose.xlu0.b32.cont [8/16] %v5065, 128
      %5114 = vxpose.xlu0.b32.cont [9/16] %v5066, 128
      %5115 = vxpose.xlu0.b32.cont [10/16] %v5067, 128
      %5116 = vxpose.xlu0.b32.cont [11/16] %v5068, 128
      %5117 = vxpose.xlu0.b32.cont [12/16] %v5069, 128
      %5118 = vxpose.xlu0.b32.cont [13/16] %v5070, 128
      %5119 = vxpose.xlu0.b32.cont [14/16] %v5071, 128
      %5120 = vxpose.xlu0.b32.cont [15/16] %v5072, 128
      %5121 = vxpose.xlu0.b32.end [16/16] %v5073, 128
      %v5122 = vpop.trf.xlu0
      %v5123 = vpop.trf.xlu0
      %v5124 = vpop.trf.xlu0
      %v5125 = vpop.trf.xlu0
      %v5126 = vpop.trf.xlu0
      %v5127 = vpop.trf.xlu0
      %v5128 = vpop.trf.xlu0
      %v5129 = vpop.trf.xlu0
      %v5130 = vpop.trf.xlu0
      %v5131 = vpop.trf.xlu0
      %v5132 = vpop.trf.xlu0
      %v5133 = vpop.trf.xlu0
      %v5134 = vpop.trf.xlu0
      %v5135 = vpop.trf.xlu0
      %v5136 = vpop.trf.xlu0
      %v5137 = vpop.trf.xlu0
      %5138 = vst [vmem:[%s224] sm:$0xff] %v5090
      %5139 = vst [vmem:[%s224 + $0x8] sm:$0xff] %v5122
      %p5140 = scmp.lt.s32.totalorder %s16, 1
      %s5141 = scalar_select %p5140, %s16, 1
      %s5142 = smul.addr %s5141, 2
      %s5143 = smul.addr %s5142, 8
      %s5144 = scalar_lea.vmem %s5, %s5143
      // Predicated region
      $region41: #{conv_block_forward.1} parent=39 // pred_check
        %p5145 = pneg %p144
      $region42: #{conv_block_forward.1} parent=39 // pred_check_branch
        %5147 = sbr.rel (%p5145) target = $region44
      $region43: #{conv_block_forward.1} parent=39 // pred_region
        _
      $region44: #{conv_block_forward.1} parent=39 // pred_fallthru
        _
    $region40: #{conv_block_forward.1} parent=5 // pred_fallthru
      _
    %p5148 = scmp.le.s32.totalorder 2, %s11
    // Predicated region
    $region45: #{conv_block_forward.1} parent=5 // pred_check
      %p5149 = pneg %p5148
    $region46: #{conv_block_forward.1} parent=5 // pred_check_branch
      %5151 = sbr.rel (%p5149) target = $region48
    $region47: #{conv_block_forward.1} parent=5 // pred_region
      %s5152 = ssub.s32 %s11, 2
      // Predicated region
      $region49: #{conv_block_forward.1} parent=47 // pred_check
        %p5153 = pneg %p150
      $region50: #{conv_block_forward.1} parent=47 // pred_check_branch
        %5155 = sbr.rel (%p5153) target = $region52
      $region51: #{conv_block_forward.1} parent=47 // pred_region
        %p5156 = scmp.lt.s32.totalorder %s17, 1
        %s5157 = scalar_select %p5156, %s17, 1
        %s5158 = smul.addr %s5157, 2
        %s5159 = smul.addr %s5158, 8
        %s5160 = scalar_lea.vmem %s5, %s5159
      $region52: #{conv_block_forward.1} parent=47 // pred_fallthru
        _
    $region48: #{conv_block_forward.1} parent=5 // pred_fallthru
      _
  $region6: #{conv_block_forward.1} parent=0 // loop_footer
    %s15 = sadd.s32 1, %s11
  $region7: #{conv_block_forward.1} parent=0 // loop_footer_branch
    %10 = sbr.rel target = $region3
  $region8: #{conv_block_forward.1} parent=0 // loop_exit
    _

</llo_original>
